<compile_context>
chip_gen: v6e
topology: v6e:2x2x1
jax: 0.10.0
libtpu: 0.0.40
codegen_flags: <defaults>
</compile_context>

<pallas_src>
import math
import functools

import jax
import jax.numpy as jnp
from jax.experimental import pallas as pl
from jax.experimental.pallas import tpu as pltpu

_LN_EPS = 1e-5  # PyTorch nn.LayerNorm default


def _layernorm(z, gamma, beta):
    mu = jnp.mean(z, axis=-1, keepdims=True)
    var = jnp.mean((z - mu) ** 2, axis=-1, keepdims=True)       # biased var (matches torch)
    return (z - mu) * jax.lax.rsqrt(var + _LN_EPS) * gamma + beta


def _softmax_lastdim(s):
    s = s - jnp.max(s, axis=-1, keepdims=True)
    p = jnp.exp(s)
    return p * pl.reciprocal(jnp.sum(p, axis=-1, keepdims=True), approx=True)


def _multi_head_attn(q, k, v, head_num, head_dim, scale):
    """q, k, v: (L, H). Standard per-head attention; heads batched in one dot_general."""
    qh = jnp.stack([q[:, n * head_dim:(n + 1) * head_dim] for n in range(head_num)])
    kh = jnp.stack([k[:, n * head_dim:(n + 1) * head_dim] for n in range(head_num)])
    vh = jnp.stack([v[:, n * head_dim:(n + 1) * head_dim] for n in range(head_num)])
    s = jnp.einsum('nld,nmd->nlm', qh, kh, preferred_element_type=jnp.float32) * scale
    w = _softmax_lastdim(s)
    a = jnp.einsum('nlm,nmd->nld', w, vh, preferred_element_type=jnp.float32)   # (hn, L, hd)
    return jnp.concatenate([a[n] for n in range(head_num)], axis=-1)            # (L, H)


# --------------------------------------------------------------------------- #
# XQ path kernel: one grid step == b_tile batch elements.
# --------------------------------------------------------------------------- #
def _xq_kernel(x_ref, wqkv_ref, bqkv_ref, gamma_ref, beta_ref, wo_ref, bo_ref,
               out_ref, *, b_tile, seq, head_num, head_dim):
    dim = head_num * head_dim
    scale = 1.0 / math.sqrt(head_dim)

    # One fused projection for all b_tile*seq rows of this tile.
    x = x_ref[...].reshape(b_tile * seq, dim)
    qkv = jnp.dot(x, wqkv_ref[...], preferred_element_type=jnp.float32) + bqkv_ref[...]
    q, k, v = qkv[:, :dim], qkv[:, dim:2 * dim], qkv[:, 2 * dim:]

    attn_rows = []
    for b in range(b_tile):                                      # static unroll
        sl = slice(b * seq, (b + 1) * seq)
        attn_rows.append(_multi_head_attn(q[sl], k[sl], v[sl], head_num, head_dim, scale))
    attn = jnp.concatenate(attn_rows, axis=0)                    # (b_tile*L, H)
    attn = _layernorm(attn, gamma_ref[...], beta_ref[...])
    # nn.Dropout(0.1) is the identity in eval mode.
    out = jnp.dot(attn, wo_ref[...], preferred_element_type=jnp.float32) + bo_ref[...]
    pooled = jnp.concatenate(
        [jnp.sum(out[b * seq:(b + 1) * seq], axis=0, keepdims=True) for b in range(b_tile)],
        axis=0)                                                  # sum over seq -> (b_tile, H)
    out_ref[0] = pooled


# --------------------------------------------------------------------------- #
# XS path kernel: one grid step == one "way".
# --------------------------------------------------------------------------- #
def _xs_kernel(x_ref, wqkv_ref, bqkv_ref, gamma_ref, beta_ref, wp_ref, bp_ref,
               wo_ref, bo_ref, out_ref, *, shot, seq, head_num, head_dim):
    dim = head_num * head_dim
    scale = 1.0 / math.sqrt(head_dim)
    gamma, beta = gamma_ref[...], beta_ref[...]

    # One fused projection for all shot*seq rows of this way.
    x = x_ref[...].reshape(shot * seq, dim)
    qkv = jnp.dot(x, wqkv_ref[...], preferred_element_type=jnp.float32) + bqkv_ref[...]
    q, k, v = qkv[:, :dim], qkv[:, dim:2 * dim], qkv[:, 2 * dim:]
    q3 = q.reshape(shot, seq, dim)
    k3 = k.reshape(shot, seq, dim)
    v3 = v.reshape(shot, seq, dim)

    # ---- branch 1 (scores1): per-head attention over the sequence axis, max-pool over L ----
    pooled1 = jnp.concatenate(
        [jnp.max(_multi_head_attn(q3[s], k3[s], v3[s], head_num, head_dim, scale),
                 axis=0, keepdims=True)
         for s in range(shot)], axis=0)                          # (SHOT, H)

    # ---- branch 2 (scores2): per-channel attention over the shot axis (vectorized) ----
    # scores2[s, t, c] = sum_l q3[s, l, c] * k3[t, l, c] / sqrt(hd)
    sc2 = jnp.sum(q3[:, None, :, :] * k3[None, :, :, :], axis=2) * scale     # (SHOT, SHOT, H)
    sc2 = sc2 - jnp.max(sc2, axis=1, keepdims=True)              # softmax over t (axis=1)
    p2 = jnp.exp(sc2)
    w2 = p2 * pl.reciprocal(jnp.sum(p2, axis=1, keepdims=True), approx=True)
    # attn2[s, l, c] = sum_t w2[s, t, c] * v3[t, l, c]
    a2 = jnp.sum(w2[:, :, None, :] * v3[None, :, :, :], axis=1)              # (SHOT, L, H)
    pooled2 = jnp.max(a2, axis=1)                                             # (SHOT, H)

    attn_out = (_layernorm(pooled1, gamma, beta)
                + _layernorm(pooled2, gamma, beta)) * 0.5                    # (SHOT, H)

    proto_t = jnp.tanh(attn_out)
    logits = jnp.dot(proto_t, wp_ref[...], preferred_element_type=jnp.float32) + bp_ref[...]
    logits = logits - jnp.max(logits, axis=0, keepdims=True)     # softmax over shots
    e = jnp.exp(logits)
    pw = e * pl.reciprocal(jnp.sum(e, axis=0, keepdims=True), approx=True)   # (SHOT, 1)
    proto = pw * attn_out                                                     # (SHOT, H)
    # nn.Dropout(0.1) is the identity in eval mode.
    proto = jnp.dot(proto, wo_ref[...], preferred_element_type=jnp.float32) + bo_ref[...]
    out_ref[0] = jnp.sum(proto, axis=0, keepdims=True)           # sum over shots -> (1, H)


# --------------------------------------------------------------------------- #
# Wrapper
# --------------------------------------------------------------------------- #
def _const_spec(shape):
    nd = len(shape)
    return pl.BlockSpec(shape, lambda i, _nd=nd: (0,) * _nd)


def _batch_tiling(n):
    # >= 2 grid steps keeps both v7x TensorCores busy; fatter tiles amortize the
    # ~0.35us per-grid-step overhead and batch the QKV projection rows.
    if n >= 2 and n % 2 == 0:
        return 2, n // 2
    return n, 1


def proto_mul_head_attn(x, params, *, head_num, flag='XQ', way=None, shot=None,
                        compute_dtype=jnp.float32):
    # TODO(synk): mask argument not implemented (module default is mask=None).
    # compute_dtype=jnp.bfloat16 can be used on v6e/v7x for full-rate MXU (f32 accumulation
    # is kept via preferred_element_type); elementwise math stays f32 either way.
    dim = params['wq'].shape[0]
    head_dim = dim // head_num
    f32 = jnp.float32
    row = lambda b: b.reshape(1, -1).astype(f32)

    # Pre-transpose weights on the host (kernels compute x @ W, no in-kernel .T) and
    # fuse Q/K/V weights into a single (dim, 3*dim) matrix -> one projection matmul.
    w_qkv = jnp.concatenate([params['wq'].T, params['wk'].T, params['wv'].T],
                            axis=1).astype(compute_dtype)                 # (dim, 3*dim)
    b_qkv = jnp.concatenate([row(params['bq']), row(params['bk']), row(params['bv'])],
                            axis=1)                                       # (1, 3*dim)
    w_o = params['wo'].T.astype(compute_dtype)                            # (dim, dim)
    b_o = row(params['bo'])
    gamma, beta = row(params['gamma']), row(params['beta'])
    x = x.astype(compute_dtype)

    # NOTE: weight inputs have constant index_maps; if dim/seq scale up on v7x (64 MiB VMEM),
    # single-buffer them (pipeline_mode=pl.Buffered(1)) and set vmem_limit_bytes explicitly.

    if flag == 'XS':
        seq = x.shape[-2]
        x4 = x.reshape(way, shot, seq, dim)
        w_p = params['wp'].T.astype(f32)                                  # (dim, 1)
        b_p = params['bp'].reshape(1, 1).astype(f32)
        ws = (w_qkv, b_qkv, gamma, beta, w_p, b_p, w_o, b_o)
        kernel = functools.partial(_xs_kernel, shot=shot, seq=seq,
                                   head_num=head_num, head_dim=head_dim)
        out = pl.pallas_call(
            kernel,
            out_shape=jax.ShapeDtypeStruct((way, 1, dim), f32),
            grid=(way,),
            in_specs=[pl.BlockSpec((1, shot, seq, dim), lambda i: (i, 0, 0, 0))]
                     + [_const_spec(w.shape) for w in ws],
            out_specs=pl.BlockSpec((1, 1, dim), lambda i: (i, 0, 0)),
            compiler_params=pltpu.CompilerParams(dimension_semantics=("parallel",)),
        )(x4, *ws)
        return out[:, 0, :]                                               # (WAY, H)
    else:
        batch, seq, _ = x.shape
        n_steps, b_tile = _batch_tiling(batch)
        ws = (w_qkv, b_qkv, gamma, beta, w_o, b_o)
        kernel = functools.partial(_xq_kernel, b_tile=b_tile, seq=seq,
                                   head_num=head_num, head_dim=head_dim)
        out = pl.pallas_call(
            kernel,
            out_shape=jax.ShapeDtypeStruct((n_steps, b_tile, dim), f32),
            grid=(n_steps,),
            in_specs=[pl.BlockSpec((b_tile, seq, dim), lambda i: (i, 0, 0))]
                     + [_const_spec(w.shape) for w in ws],
            out_specs=pl.BlockSpec((1, b_tile, dim), lambda i: (i, 0, 0)),
            compiler_params=pltpu.CompilerParams(dimension_semantics=("parallel",)),
        )(x, *ws)
        return out.reshape(batch, dim)                                    # (B, H)


def init_params(key, dim):
    ks = jax.random.split(key, 5)

    def linear(k, out_f, in_f):
        k1, k2 = jax.random.split(k)
        bound = 1.0 / math.sqrt(in_f)
        w = jax.random.uniform(k1, (out_f, in_f), jnp.float32, -bound, bound)
        b = jax.random.uniform(k2, (out_f,), jnp.float32, -bound, bound)
        return w, b

    wq, bq = linear(ks[0], dim, dim)
    wk, bk = linear(ks[1], dim, dim)
    wv, bv = linear(ks[2], dim, dim)
    wp, bp = linear(ks[3], 1, dim)        # proto_fc2: Linear(dim, 1)
    wo, bo = linear(ks[4], dim, dim)      # output:    Linear(dim, dim)
    return dict(wq=wq, bq=bq, wk=wk, bk=bk, wv=wv, bv=bv,
                gamma=jnp.ones((dim,), jnp.float32),
                beta=jnp.zeros((dim,), jnp.float32),
                wp=wp, bp=bp, wo=wo, bo=bo)


if __name__ == "__main__":
    dim = 32          # hidden
    head_num = 4      # -> head_dim = 8
    way, shot = 2, 2  # args.way, args.shot
    seq = 8           # tokens per sample
    batch = 4         # query batch (-> 2 grid steps x 2 samples per step)

    key = jax.random.PRNGKey(0)
    kp, kq, ks = jax.random.split(key, 3)
    params = init_params(kp, dim)

    x_q = jax.random.normal(kq, (batch, seq, dim), jnp.float32)          # XQ input (B, L, H)
    x_s = jax.random.normal(ks, (way * shot, seq, dim), jnp.float32)     # XS input (WAY*SHOT, L, H)

    @jax.jit
    def run(params, x_q, x_s):
        # Both paths dispatched back-to-back under a single jit (shared weight uploads).
        out_q = proto_mul_head_attn(x_q, params, head_num=head_num, flag='XQ')
        out_s = proto_mul_head_attn(x_s, params, head_num=head_num, flag='XS',
                                    way=way, shot=shot)
        return out_q, out_s

    out_q, out_s = run(params, x_q, x_s)
    jax.block_until_ready((out_q, out_s))
    assert out_q.shape == (batch, dim)
    assert out_s.shape == (way, dim)
    print("KERNEL_OK")
</pallas_src>

<mosaic_0001>
module attributes {stable_mosaic.version = 11 : i64} {
  func.func @_xq_kernel(%arg0: i32, %arg1: memref<2x8x32xf32, #tpu.memory_space<vmem>>, %arg2: memref<32x96xf32, #tpu.memory_space<vmem>>, %arg3: memref<1x96xf32, #tpu.memory_space<vmem>>, %arg4: memref<1x32xf32, #tpu.memory_space<vmem>>, %arg5: memref<1x32xf32, #tpu.memory_space<vmem>>, %arg6: memref<32x32xf32, #tpu.memory_space<vmem>>, %arg7: memref<1x32xf32, #tpu.memory_space<vmem>>, %arg8: memref<1x2x32xf32, #tpu.memory_space<vmem>>) attributes {dimension_semantics = [#tpu.dimension_semantics<parallel>], iteration_bounds = array<i64: 2>, scalar_prefetch = 0 : i64, scratch_operands = 0 : i64, tpu.core_type = #tpu.core_type<tc>, window_params = [{transform_indices = @transform_0, window_bounds = array<i64: 2, 8, 32>}, {pipeline_mode = #tpu.pipeline_mode<synchronous>, transform_indices = @transform_1, window_bounds = array<i64: 32, 96>}, {pipeline_mode = #tpu.pipeline_mode<synchronous>, transform_indices = @transform_2, window_bounds = array<i64: 1, 96>}, {pipeline_mode = #tpu.pipeline_mode<synchronous>, transform_indices = @transform_3, window_bounds = array<i64: 1, 32>}, {pipeline_mode = #tpu.pipeline_mode<synchronous>, transform_indices = @transform_4, window_bounds = array<i64: 1, 32>}, {pipeline_mode = #tpu.pipeline_mode<synchronous>, transform_indices = @transform_5, window_bounds = array<i64: 32, 32>}, {pipeline_mode = #tpu.pipeline_mode<synchronous>, transform_indices = @transform_6, window_bounds = array<i64: 1, 32>}, {transform_indices = @transform_7, window_bounds = array<i64: 1, 2, 32>}]} {
    %c0 = arith.constant 0 : index
    %c0_0 = arith.constant 0 : index
    %c0_1 = arith.constant 0 : index
    %0 = vector.load %arg1[%c0, %c0_0, %c0_1] : memref<2x8x32xf32, #tpu.memory_space<vmem>>, vector<2x8x32xf32>
    %1 = vector.shape_cast %0 : vector<2x8x32xf32> to vector<16x32xf32>
    %c0_2 = arith.constant 0 : index
    %c0_3 = arith.constant 0 : index
    %2 = vector.load %arg2[%c0_2, %c0_3] : memref<32x96xf32, #tpu.memory_space<vmem>>, vector<32x96xf32>
    %cst = arith.constant dense<0.000000e+00> : vector<16x96xf32>
    %3 = tpu.matmul %1, %2, %cst {dimension_numbers = #tpu.dot_dimension_numbers<[1], [0], [0], [1], [0, 0, 1, 1], [], []>} : vector<16x32xf32>, vector<32x96xf32>, vector<16x96xf32> -> vector<16x96xf32>
    %c0_4 = arith.constant 0 : index
    %c0_5 = arith.constant 0 : index
    %4 = vector.load %arg3[%c0_4, %c0_5] : memref<1x96xf32, #tpu.memory_space<vmem>>, vector<1x96xf32>
    %5 = vector.broadcast %4 : vector<1x96xf32> to vector<16x96xf32>
    %6 = arith.addf %3, %5 : vector<16x96xf32>
    %7 = vector.extract_strided_slice %6 {offsets = [0, 0], sizes = [16, 32], strides = [1, 1]} : vector<16x96xf32> to vector<16x32xf32>
    %8 = vector.extract_strided_slice %6 {offsets = [0, 32], sizes = [16, 32], strides = [1, 1]} : vector<16x96xf32> to vector<16x32xf32>
    %9 = vector.extract_strided_slice %6 {offsets = [0, 64], sizes = [16, 32], strides = [1, 1]} : vector<16x96xf32> to vector<16x32xf32>
    %10 = vector.extract_strided_slice %7 {offsets = [0, 0], sizes = [8, 32], strides = [1, 1]} : vector<16x32xf32> to vector<8x32xf32>
    %11 = vector.extract_strided_slice %8 {offsets = [0, 0], sizes = [8, 32], strides = [1, 1]} : vector<16x32xf32> to vector<8x32xf32>
    %12 = vector.extract_strided_slice %9 {offsets = [0, 0], sizes = [8, 32], strides = [1, 1]} : vector<16x32xf32> to vector<8x32xf32>
    %13 = vector.extract_strided_slice %10 {offsets = [0, 0], sizes = [8, 8], strides = [1, 1]} : vector<8x32xf32> to vector<8x8xf32>
    %14 = vector.extract_strided_slice %10 {offsets = [0, 8], sizes = [8, 8], strides = [1, 1]} : vector<8x32xf32> to vector<8x8xf32>
    %15 = vector.extract_strided_slice %10 {offsets = [0, 16], sizes = [8, 8], strides = [1, 1]} : vector<8x32xf32> to vector<8x8xf32>
    %16 = vector.extract_strided_slice %10 {offsets = [0, 24], sizes = [8, 8], strides = [1, 1]} : vector<8x32xf32> to vector<8x8xf32>
    %17 = vector.shape_cast %13 : vector<8x8xf32> to vector<1x8x8xf32>
    %18 = vector.shape_cast %14 : vector<8x8xf32> to vector<1x8x8xf32>
    %19 = vector.shape_cast %15 : vector<8x8xf32> to vector<1x8x8xf32>
    %20 = vector.shape_cast %16 : vector<8x8xf32> to vector<1x8x8xf32>
    %21 = tpu.concatenate %17, %18, %19, %20 in 0 : vector<1x8x8xf32>, vector<1x8x8xf32>, vector<1x8x8xf32>, vector<1x8x8xf32> -> vector<4x8x8xf32>
    %22 = vector.extract_strided_slice %11 {offsets = [0, 0], sizes = [8, 8], strides = [1, 1]} : vector<8x32xf32> to vector<8x8xf32>
    %23 = vector.extract_strided_slice %11 {offsets = [0, 8], sizes = [8, 8], strides = [1, 1]} : vector<8x32xf32> to vector<8x8xf32>
    %24 = vector.extract_strided_slice %11 {offsets = [0, 16], sizes = [8, 8], strides = [1, 1]} : vector<8x32xf32> to vector<8x8xf32>
    %25 = vector.extract_strided_slice %11 {offsets = [0, 24], sizes = [8, 8], strides = [1, 1]} : vector<8x32xf32> to vector<8x8xf32>
    %26 = vector.shape_cast %22 : vector<8x8xf32> to vector<1x8x8xf32>
    %27 = vector.shape_cast %23 : vector<8x8xf32> to vector<1x8x8xf32>
    %28 = vector.shape_cast %24 : vector<8x8xf32> to vector<1x8x8xf32>
    %29 = vector.shape_cast %25 : vector<8x8xf32> to vector<1x8x8xf32>
    %30 = tpu.concatenate %26, %27, %28, %29 in 0 : vector<1x8x8xf32>, vector<1x8x8xf32>, vector<1x8x8xf32>, vector<1x8x8xf32> -> vector<4x8x8xf32>
    %31 = vector.extract_strided_slice %12 {offsets = [0, 0], sizes = [8, 8], strides = [1, 1]} : vector<8x32xf32> to vector<8x8xf32>
    %32 = vector.extract_strided_slice %12 {offsets = [0, 8], sizes = [8, 8], strides = [1, 1]} : vector<8x32xf32> to vector<8x8xf32>
    %33 = vector.extract_strided_slice %12 {offsets = [0, 16], sizes = [8, 8], strides = [1, 1]} : vector<8x32xf32> to vector<8x8xf32>
    %34 = vector.extract_strided_slice %12 {offsets = [0, 24], sizes = [8, 8], strides = [1, 1]} : vector<8x32xf32> to vector<8x8xf32>
    %35 = vector.shape_cast %31 : vector<8x8xf32> to vector<1x8x8xf32>
    %36 = vector.shape_cast %32 : vector<8x8xf32> to vector<1x8x8xf32>
    %37 = vector.shape_cast %33 : vector<8x8xf32> to vector<1x8x8xf32>
    %38 = vector.shape_cast %34 : vector<8x8xf32> to vector<1x8x8xf32>
    %39 = tpu.concatenate %35, %36, %37, %38 in 0 : vector<1x8x8xf32>, vector<1x8x8xf32>, vector<1x8x8xf32>, vector<1x8x8xf32> -> vector<4x8x8xf32>
    "tpu.trace_start"() <{level = 10 : i32, message = "nld,nmd->nlm"}> : () -> ()
    %cst_6 = arith.constant dense<0.000000e+00> : vector<4x8x8xf32>
    %40 = tpu.matmul %21, %30, %cst_6 {dimension_numbers = #tpu.dot_dimension_numbers<[2], [2], [1], [1], [0, 0, 0, 1, 1, 1], [0], [0]>} : vector<4x8x8xf32>, vector<4x8x8xf32>, vector<4x8x8xf32> -> vector<4x8x8xf32>
    "tpu.trace_stop"() : () -> ()
    %cst_7 = arith.constant 0.353553385 : f32
    %41 = vector.broadcast %cst_7 : f32 to vector<4x8x8xf32>
    %42 = arith.mulf %40, %41 : vector<4x8x8xf32>
    %cst_8 = arith.constant dense<0xFF800000> : vector<4x8xf32>
    %43 = vector.multi_reduction <maximumf>, %42, %cst_8 [2] : vector<4x8x8xf32> to vector<4x8xf32>
    %44 = vector.shape_cast %43 : vector<4x8xf32> to vector<4x8x1xf32>
    %45 = vector.broadcast %44 : vector<4x8x1xf32> to vector<4x8x8xf32>
    %46 = arith.subf %42, %45 : vector<4x8x8xf32>
    %47 = math.exp %46 : vector<4x8x8xf32>
    %cst_9 = arith.constant dense<0.000000e+00> : vector<4x8xf32>
    %48 = vector.multi_reduction <add>, %47, %cst_9 [2] : vector<4x8x8xf32> to vector<4x8xf32>
    %49 = vector.shape_cast %48 : vector<4x8xf32> to vector<4x8x1xf32>
    %50 = tpu.reciprocal %49 {approx = true} : vector<4x8x1xf32> -> vector<4x8x1xf32>
    %51 = vector.broadcast %50 : vector<4x8x1xf32> to vector<4x8x8xf32>
    %52 = arith.mulf %47, %51 : vector<4x8x8xf32>
    "tpu.trace_start"() <{level = 10 : i32, message = "nlm,nmd->nld"}> : () -> ()
    %cst_10 = arith.constant dense<0.000000e+00> : vector<4x8x8xf32>
    %53 = tpu.matmul %52, %39, %cst_10 {dimension_numbers = #tpu.dot_dimension_numbers<[2], [1], [1], [2], [0, 0, 0, 1, 1, 2], [0], [0]>} : vector<4x8x8xf32>, vector<4x8x8xf32>, vector<4x8x8xf32> -> vector<4x8x8xf32>
    "tpu.trace_stop"() : () -> ()
    %54 = vector.extract_strided_slice %53 {offsets = [0, 0, 0], sizes = [1, 8, 8], strides = [1, 1, 1]} : vector<4x8x8xf32> to vector<1x8x8xf32>
    %55 = vector.shape_cast %54 : vector<1x8x8xf32> to vector<8x8xf32>
    %56 = vector.extract_strided_slice %53 {offsets = [1, 0, 0], sizes = [1, 8, 8], strides = [1, 1, 1]} : vector<4x8x8xf32> to vector<1x8x8xf32>
    %57 = vector.shape_cast %56 : vector<1x8x8xf32> to vector<8x8xf32>
    %58 = vector.extract_strided_slice %53 {offsets = [2, 0, 0], sizes = [1, 8, 8], strides = [1, 1, 1]} : vector<4x8x8xf32> to vector<1x8x8xf32>
    %59 = vector.shape_cast %58 : vector<1x8x8xf32> to vector<8x8xf32>
    %60 = vector.extract_strided_slice %53 {offsets = [3, 0, 0], sizes = [1, 8, 8], strides = [1, 1, 1]} : vector<4x8x8xf32> to vector<1x8x8xf32>
    %61 = vector.shape_cast %60 : vector<1x8x8xf32> to vector<8x8xf32>
    %62 = tpu.concatenate %55, %57, %59, %61 in 1 : vector<8x8xf32>, vector<8x8xf32>, vector<8x8xf32>, vector<8x8xf32> -> vector<8x32xf32>
    %63 = vector.extract_strided_slice %7 {offsets = [8, 0], sizes = [8, 32], strides = [1, 1]} : vector<16x32xf32> to vector<8x32xf32>
    %64 = vector.extract_strided_slice %8 {offsets = [8, 0], sizes = [8, 32], strides = [1, 1]} : vector<16x32xf32> to vector<8x32xf32>
    %65 = vector.extract_strided_slice %9 {offsets = [8, 0], sizes = [8, 32], strides = [1, 1]} : vector<16x32xf32> to vector<8x32xf32>
    %66 = vector.extract_strided_slice %63 {offsets = [0, 0], sizes = [8, 8], strides = [1, 1]} : vector<8x32xf32> to vector<8x8xf32>
    %67 = vector.extract_strided_slice %63 {offsets = [0, 8], sizes = [8, 8], strides = [1, 1]} : vector<8x32xf32> to vector<8x8xf32>
    %68 = vector.extract_strided_slice %63 {offsets = [0, 16], sizes = [8, 8], strides = [1, 1]} : vector<8x32xf32> to vector<8x8xf32>
    %69 = vector.extract_strided_slice %63 {offsets = [0, 24], sizes = [8, 8], strides = [1, 1]} : vector<8x32xf32> to vector<8x8xf32>
    %70 = vector.shape_cast %66 : vector<8x8xf32> to vector<1x8x8xf32>
    %71 = vector.shape_cast %67 : vector<8x8xf32> to vector<1x8x8xf32>
    %72 = vector.shape_cast %68 : vector<8x8xf32> to vector<1x8x8xf32>
    %73 = vector.shape_cast %69 : vector<8x8xf32> to vector<1x8x8xf32>
    %74 = tpu.concatenate %70, %71, %72, %73 in 0 : vector<1x8x8xf32>, vector<1x8x8xf32>, vector<1x8x8xf32>, vector<1x8x8xf32> -> vector<4x8x8xf32>
    %75 = vector.extract_strided_slice %64 {offsets = [0, 0], sizes = [8, 8], strides = [1, 1]} : vector<8x32xf32> to vector<8x8xf32>
    %76 = vector.extract_strided_slice %64 {offsets = [0, 8], sizes = [8, 8], strides = [1, 1]} : vector<8x32xf32> to vector<8x8xf32>
    %77 = vector.extract_strided_slice %64 {offsets = [0, 16], sizes = [8, 8], strides = [1, 1]} : vector<8x32xf32> to vector<8x8xf32>
    %78 = vector.extract_strided_slice %64 {offsets = [0, 24], sizes = [8, 8], strides = [1, 1]} : vector<8x32xf32> to vector<8x8xf32>
    %79 = vector.shape_cast %75 : vector<8x8xf32> to vector<1x8x8xf32>
    %80 = vector.shape_cast %76 : vector<8x8xf32> to vector<1x8x8xf32>
    %81 = vector.shape_cast %77 : vector<8x8xf32> to vector<1x8x8xf32>
    %82 = vector.shape_cast %78 : vector<8x8xf32> to vector<1x8x8xf32>
    %83 = tpu.concatenate %79, %80, %81, %82 in 0 : vector<1x8x8xf32>, vector<1x8x8xf32>, vector<1x8x8xf32>, vector<1x8x8xf32> -> vector<4x8x8xf32>
    %84 = vector.extract_strided_slice %65 {offsets = [0, 0], sizes = [8, 8], strides = [1, 1]} : vector<8x32xf32> to vector<8x8xf32>
    %85 = vector.extract_strided_slice %65 {offsets = [0, 8], sizes = [8, 8], strides = [1, 1]} : vector<8x32xf32> to vector<8x8xf32>
    %86 = vector.extract_strided_slice %65 {offsets = [0, 16], sizes = [8, 8], strides = [1, 1]} : vector<8x32xf32> to vector<8x8xf32>
    %87 = vector.extract_strided_slice %65 {offsets = [0, 24], sizes = [8, 8], strides = [1, 1]} : vector<8x32xf32> to vector<8x8xf32>
    %88 = vector.shape_cast %84 : vector<8x8xf32> to vector<1x8x8xf32>
    %89 = vector.shape_cast %85 : vector<8x8xf32> to vector<1x8x8xf32>
    %90 = vector.shape_cast %86 : vector<8x8xf32> to vector<1x8x8xf32>
    %91 = vector.shape_cast %87 : vector<8x8xf32> to vector<1x8x8xf32>
    %92 = tpu.concatenate %88, %89, %90, %91 in 0 : vector<1x8x8xf32>, vector<1x8x8xf32>, vector<1x8x8xf32>, vector<1x8x8xf32> -> vector<4x8x8xf32>
    "tpu.trace_start"() <{level = 10 : i32, message = "nld,nmd->nlm"}> : () -> ()
    %cst_11 = arith.constant dense<0.000000e+00> : vector<4x8x8xf32>
    %93 = tpu.matmul %74, %83, %cst_11 {dimension_numbers = #tpu.dot_dimension_numbers<[2], [2], [1], [1], [0, 0, 0, 1, 1, 1], [0], [0]>} : vector<4x8x8xf32>, vector<4x8x8xf32>, vector<4x8x8xf32> -> vector<4x8x8xf32>
    "tpu.trace_stop"() : () -> ()
    %cst_12 = arith.constant 0.353553385 : f32
    %94 = vector.broadcast %cst_12 : f32 to vector<4x8x8xf32>
    %95 = arith.mulf %93, %94 : vector<4x8x8xf32>
    %cst_13 = arith.constant dense<0xFF800000> : vector<4x8xf32>
    %96 = vector.multi_reduction <maximumf>, %95, %cst_13 [2] : vector<4x8x8xf32> to vector<4x8xf32>
    %97 = vector.shape_cast %96 : vector<4x8xf32> to vector<4x8x1xf32>
    %98 = vector.broadcast %97 : vector<4x8x1xf32> to vector<4x8x8xf32>
    %99 = arith.subf %95, %98 : vector<4x8x8xf32>
    %100 = math.exp %99 : vector<4x8x8xf32>
    %cst_14 = arith.constant dense<0.000000e+00> : vector<4x8xf32>
    %101 = vector.multi_reduction <add>, %100, %cst_14 [2] : vector<4x8x8xf32> to vector<4x8xf32>
    %102 = vector.shape_cast %101 : vector<4x8xf32> to vector<4x8x1xf32>
    %103 = tpu.reciprocal %102 {approx = true} : vector<4x8x1xf32> -> vector<4x8x1xf32>
    %104 = vector.broadcast %103 : vector<4x8x1xf32> to vector<4x8x8xf32>
    %105 = arith.mulf %100, %104 : vector<4x8x8xf32>
    "tpu.trace_start"() <{level = 10 : i32, message = "nlm,nmd->nld"}> : () -> ()
    %cst_15 = arith.constant dense<0.000000e+00> : vector<4x8x8xf32>
    %106 = tpu.matmul %105, %92, %cst_15 {dimension_numbers = #tpu.dot_dimension_numbers<[2], [1], [1], [2], [0, 0, 0, 1, 1, 2], [0], [0]>} : vector<4x8x8xf32>, vector<4x8x8xf32>, vector<4x8x8xf32> -> vector<4x8x8xf32>
    "tpu.trace_stop"() : () -> ()
    %107 = vector.extract_strided_slice %106 {offsets = [0, 0, 0], sizes = [1, 8, 8], strides = [1, 1, 1]} : vector<4x8x8xf32> to vector<1x8x8xf32>
    %108 = vector.shape_cast %107 : vector<1x8x8xf32> to vector<8x8xf32>
    %109 = vector.extract_strided_slice %106 {offsets = [1, 0, 0], sizes = [1, 8, 8], strides = [1, 1, 1]} : vector<4x8x8xf32> to vector<1x8x8xf32>
    %110 = vector.shape_cast %109 : vector<1x8x8xf32> to vector<8x8xf32>
    %111 = vector.extract_strided_slice %106 {offsets = [2, 0, 0], sizes = [1, 8, 8], strides = [1, 1, 1]} : vector<4x8x8xf32> to vector<1x8x8xf32>
    %112 = vector.shape_cast %111 : vector<1x8x8xf32> to vector<8x8xf32>
    %113 = vector.extract_strided_slice %106 {offsets = [3, 0, 0], sizes = [1, 8, 8], strides = [1, 1, 1]} : vector<4x8x8xf32> to vector<1x8x8xf32>
    %114 = vector.shape_cast %113 : vector<1x8x8xf32> to vector<8x8xf32>
    %115 = tpu.concatenate %108, %110, %112, %114 in 1 : vector<8x8xf32>, vector<8x8xf32>, vector<8x8xf32>, vector<8x8xf32> -> vector<8x32xf32>
    %116 = tpu.concatenate %62, %115 in 0 : vector<8x32xf32>, vector<8x32xf32> -> vector<16x32xf32>
    %c0_16 = arith.constant 0 : index
    %c0_17 = arith.constant 0 : index
    %117 = vector.load %arg4[%c0_16, %c0_17] : memref<1x32xf32, #tpu.memory_space<vmem>>, vector<1x32xf32>
    %c0_18 = arith.constant 0 : index
    %c0_19 = arith.constant 0 : index
    %118 = vector.load %arg5[%c0_18, %c0_19] : memref<1x32xf32, #tpu.memory_space<vmem>>, vector<1x32xf32>
    %cst_20 = arith.constant dense<0.000000e+00> : vector<16xf32>
    %119 = vector.multi_reduction <add>, %116, %cst_20 [1] : vector<16x32xf32> to vector<16xf32>
    %120 = vector.shape_cast %119 : vector<16xf32> to vector<16x1xf32>
    %cst_21 = arith.constant 3.200000e+01 : f32
    %121 = vector.broadcast %cst_21 : f32 to vector<16x1xf32>
    %122 = arith.divf %120, %121 : vector<16x1xf32>
    %123 = vector.broadcast %122 : vector<16x1xf32> to vector<16x32xf32>
    %124 = arith.subf %116, %123 : vector<16x32xf32>
    %125 = arith.mulf %124, %124 : vector<16x32xf32>
    %cst_22 = arith.constant dense<0.000000e+00> : vector<16xf32>
    %126 = vector.multi_reduction <add>, %125, %cst_22 [1] : vector<16x32xf32> to vector<16xf32>
    %127 = vector.shape_cast %126 : vector<16xf32> to vector<16x1xf32>
    %cst_23 = arith.constant 3.200000e+01 : f32
    %128 = vector.broadcast %cst_23 : f32 to vector<16x1xf32>
    %129 = arith.divf %127, %128 : vector<16x1xf32>
    %130 = vector.broadcast %122 : vector<16x1xf32> to vector<16x32xf32>
    %131 = arith.subf %116, %130 : vector<16x32xf32>
    %cst_24 = arith.constant 9.99999974E-6 : f32
    %132 = vector.broadcast %cst_24 : f32 to vector<16x1xf32>
    %133 = arith.addf %129, %132 : vector<16x1xf32>
    %134 = math.rsqrt %133 : vector<16x1xf32>
    %135 = vector.broadcast %134 : vector<16x1xf32> to vector<16x32xf32>
    %136 = arith.mulf %131, %135 : vector<16x32xf32>
    %137 = vector.broadcast %117 : vector<1x32xf32> to vector<16x32xf32>
    %138 = arith.mulf %136, %137 : vector<16x32xf32>
    %139 = vector.broadcast %118 : vector<1x32xf32> to vector<16x32xf32>
    %140 = arith.addf %138, %139 : vector<16x32xf32>
    %c0_25 = arith.constant 0 : index
    %c0_26 = arith.constant 0 : index
    %141 = vector.load %arg6[%c0_25, %c0_26] : memref<32x32xf32, #tpu.memory_space<vmem>>, vector<32x32xf32>
    %cst_27 = arith.constant dense<0.000000e+00> : vector<16x32xf32>
    %142 = tpu.matmul %140, %141, %cst_27 {dimension_numbers = #tpu.dot_dimension_numbers<[1], [0], [0], [1], [0, 0, 1, 1], [], []>} : vector<16x32xf32>, vector<32x32xf32>, vector<16x32xf32> -> vector<16x32xf32>
    %c0_28 = arith.constant 0 : index
    %c0_29 = arith.constant 0 : index
    %143 = vector.load %arg7[%c0_28, %c0_29] : memref<1x32xf32, #tpu.memory_space<vmem>>, vector<1x32xf32>
    %144 = vector.broadcast %143 : vector<1x32xf32> to vector<16x32xf32>
    %145 = arith.addf %142, %144 : vector<16x32xf32>
    %146 = vector.extract_strided_slice %145 {offsets = [0, 0], sizes = [8, 32], strides = [1, 1]} : vector<16x32xf32> to vector<8x32xf32>
    %cst_30 = arith.constant dense<0.000000e+00> : vector<32xf32>
    %147 = vector.multi_reduction <add>, %146, %cst_30 [0] : vector<8x32xf32> to vector<32xf32>
    %148 = vector.shape_cast %147 : vector<32xf32> to vector<1x32xf32>
    %149 = vector.extract_strided_slice %145 {offsets = [8, 0], sizes = [8, 32], strides = [1, 1]} : vector<16x32xf32> to vector<8x32xf32>
    %cst_31 = arith.constant dense<0.000000e+00> : vector<32xf32>
    %150 = vector.multi_reduction <add>, %149, %cst_31 [0] : vector<8x32xf32> to vector<32xf32>
    %151 = vector.shape_cast %150 : vector<32xf32> to vector<1x32xf32>
    %152 = tpu.concatenate %148, %151 in 0 : vector<1x32xf32>, vector<1x32xf32> -> vector<2x32xf32>
    %c0_32 = arith.constant 0 : index
    %c0_33 = arith.constant 0 : index
    %c0_34 = arith.constant 0 : index
    %153 = vector.load %arg8[%c0_32, %c0_33, %c0_34] : memref<1x2x32xf32, #tpu.memory_space<vmem>>, vector<1x2x32xf32>
    %154 = vector.shape_cast %153 : vector<1x2x32xf32> to vector<2x32xf32>
    %155 = vector.shape_cast %152 : vector<2x32xf32> to vector<1x2x32xf32>
    tpu.vector_store %arg8[%c0_32, %c0_33, %c0_34], %155 {strides = array<i32>} : memref<1x2x32xf32, #tpu.memory_space<vmem>>, vector<1x2x32xf32>,
    return
  }
  func.func @transform_0(%arg0: i32) -> (i32, i32, i32) {
    %c0_i32 = arith.constant 0 : i32
    %c0_i32_0 = arith.constant 0 : i32
    %c0_i32_1 = arith.constant 0 : i32
    return %arg0, %c0_i32, %c0_i32_0 : i32, i32, i32
  }
  func.func @transform_1(%arg0: i32) -> (i32, i32) {
    %c0_i32 = arith.constant 0 : i32
    %c0_i32_0 = arith.constant 0 : i32
    %c0_i32_1 = arith.constant 0 : i32
    return %c0_i32, %c0_i32_0 : i32, i32
  }
  func.func @transform_2(%arg0: i32) -> (i32, i32) {
    %c0_i32 = arith.constant 0 : i32
    %c0_i32_0 = arith.constant 0 : i32
    %c0_i32_1 = arith.constant 0 : i32
    return %c0_i32, %c0_i32_0 : i32, i32
  }
  func.func @transform_3(%arg0: i32) -> (i32, i32) {
    %c0_i32 = arith.constant 0 : i32
    %c0_i32_0 = arith.constant 0 : i32
    %c0_i32_1 = arith.constant 0 : i32
    return %c0_i32, %c0_i32_0 : i32, i32
  }
  func.func @transform_4(%arg0: i32) -> (i32, i32) {
    %c0_i32 = arith.constant 0 : i32
    %c0_i32_0 = arith.constant 0 : i32
    %c0_i32_1 = arith.constant 0 : i32
    return %c0_i32, %c0_i32_0 : i32, i32
  }
  func.func @transform_5(%arg0: i32) -> (i32, i32) {
    %c0_i32 = arith.constant 0 : i32
    %c0_i32_0 = arith.constant 0 : i32
    %c0_i32_1 = arith.constant 0 : i32
    return %c0_i32, %c0_i32_0 : i32, i32
  }
  func.func @transform_6(%arg0: i32) -> (i32, i32) {
    %c0_i32 = arith.constant 0 : i32
    %c0_i32_0 = arith.constant 0 : i32
    %c0_i32_1 = arith.constant 0 : i32
    return %c0_i32, %c0_i32_0 : i32, i32
  }
  func.func @transform_7(%arg0: i32) -> (i32, i32, i32) {
    %c0_i32 = arith.constant 0 : i32
    %c0_i32_0 = arith.constant 0 : i32
    %c0_i32_1 = arith.constant 0 : i32
    return %arg0, %c0_i32, %c0_i32_0 : i32, i32, i32
  }
}

module attributes {stable_mosaic.version = 11 : i64} {
  func.func @_xs_kernel(%arg0: i32, %arg1: memref<1x2x8x32xf32, #tpu.memory_space<vmem>>, %arg2: memref<32x96xf32, #tpu.memory_space<vmem>>, %arg3: memref<1x96xf32, #tpu.memory_space<vmem>>, %arg4: memref<1x32xf32, #tpu.memory_space<vmem>>, %arg5: memref<1x32xf32, #tpu.memory_space<vmem>>, %arg6: memref<32x1xf32, #tpu.memory_space<vmem>>, %arg7: memref<1x1xf32, #tpu.memory_space<vmem>>, %arg8: memref<32x32xf32, #tpu.memory_space<vmem>>, %arg9: memref<1x32xf32, #tpu.memory_space<vmem>>, %arg10: memref<1x1x32xf32, #tpu.memory_space<vmem>>) attributes {dimension_semantics = [#tpu.dimension_semantics<parallel>], iteration_bounds = array<i64: 2>, scalar_prefetch = 0 : i64, scratch_operands = 0 : i64, tpu.core_type = #tpu.core_type<tc>, window_params = [{transform_indices = @transform_0, window_bounds = array<i64: 1, 2, 8, 32>}, {pipeline_mode = #tpu.pipeline_mode<synchronous>, transform_indices = @transform_1, window_bounds = array<i64: 32, 96>}, {pipeline_mode = #tpu.pipeline_mode<synchronous>, transform_indices = @transform_2, window_bounds = array<i64: 1, 96>}, {pipeline_mode = #tpu.pipeline_mode<synchronous>, transform_indices = @transform_3, window_bounds = array<i64: 1, 32>}, {pipeline_mode = #tpu.pipeline_mode<synchronous>, transform_indices = @transform_4, window_bounds = array<i64: 1, 32>}, {pipeline_mode = #tpu.pipeline_mode<synchronous>, transform_indices = @transform_5, window_bounds = array<i64: 32, 1>}, {pipeline_mode = #tpu.pipeline_mode<synchronous>, transform_indices = @transform_6, window_bounds = array<i64: 1, 1>}, {pipeline_mode = #tpu.pipeline_mode<synchronous>, transform_indices = @transform_7, window_bounds = array<i64: 32, 32>}, {pipeline_mode = #tpu.pipeline_mode<synchronous>, transform_indices = @transform_8, window_bounds = array<i64: 1, 32>}, {transform_indices = @transform_9, window_bounds = array<i64: 1, 1, 32>}]} {
    %c0 = arith.constant 0 : index
    %c0_0 = arith.constant 0 : index
    %0 = vector.load %arg4[%c0, %c0_0] : memref<1x32xf32, #tpu.memory_space<vmem>>, vector<1x32xf32>
    %c0_1 = arith.constant 0 : index
    %c0_2 = arith.constant 0 : index
    %1 = vector.load %arg5[%c0_1, %c0_2] : memref<1x32xf32, #tpu.memory_space<vmem>>, vector<1x32xf32>
    %c0_3 = arith.constant 0 : index
    %c0_4 = arith.constant 0 : index
    %c0_5 = arith.constant 0 : index
    %c0_6 = arith.constant 0 : index
    %2 = vector.load %arg1[%c0_3, %c0_4, %c0_5, %c0_6] : memref<1x2x8x32xf32, #tpu.memory_space<vmem>>, vector<1x2x8x32xf32>
    %3 = vector.shape_cast %2 : vector<1x2x8x32xf32> to vector<16x32xf32>
    %c0_7 = arith.constant 0 : index
    %c0_8 = arith.constant 0 : index
    %4 = vector.load %arg2[%c0_7, %c0_8] : memref<32x96xf32, #tpu.memory_space<vmem>>, vector<32x96xf32>
    %cst = arith.constant dense<0.000000e+00> : vector<16x96xf32>
    %5 = tpu.matmul %3, %4, %cst {dimension_numbers = #tpu.dot_dimension_numbers<[1], [0], [0], [1], [0, 0, 1, 1], [], []>} : vector<16x32xf32>, vector<32x96xf32>, vector<16x96xf32> -> vector<16x96xf32>
    %c0_9 = arith.constant 0 : index
    %c0_10 = arith.constant 0 : index
    %6 = vector.load %arg3[%c0_9, %c0_10] : memref<1x96xf32, #tpu.memory_space<vmem>>, vector<1x96xf32>
    %7 = vector.broadcast %6 : vector<1x96xf32> to vector<16x96xf32>
    %8 = arith.addf %5, %7 : vector<16x96xf32>
    %9 = vector.extract_strided_slice %8 {offsets = [0, 0], sizes = [16, 32], strides = [1, 1]} : vector<16x96xf32> to vector<16x32xf32>
    %10 = vector.extract_strided_slice %8 {offsets = [0, 32], sizes = [16, 32], strides = [1, 1]} : vector<16x96xf32> to vector<16x32xf32>
    %11 = vector.extract_strided_slice %8 {offsets = [0, 64], sizes = [16, 32], strides = [1, 1]} : vector<16x96xf32> to vector<16x32xf32>
    %12 = vector.shape_cast %9 : vector<16x32xf32> to vector<2x8x32xf32>
    %13 = vector.shape_cast %10 : vector<16x32xf32> to vector<2x8x32xf32>
    %14 = vector.shape_cast %11 : vector<16x32xf32> to vector<2x8x32xf32>
    %15 = vector.extract_strided_slice %12 {offsets = [0, 0, 0], sizes = [1, 8, 32], strides = [1, 1, 1]} : vector<2x8x32xf32> to vector<1x8x32xf32>
    %16 = vector.shape_cast %15 : vector<1x8x32xf32> to vector<8x32xf32>
    %17 = vector.extract_strided_slice %13 {offsets = [0, 0, 0], sizes = [1, 8, 32], strides = [1, 1, 1]} : vector<2x8x32xf32> to vector<1x8x32xf32>
    %18 = vector.shape_cast %17 : vector<1x8x32xf32> to vector<8x32xf32>
    %19 = vector.extract_strided_slice %14 {offsets = [0, 0, 0], sizes = [1, 8, 32], strides = [1, 1, 1]} : vector<2x8x32xf32> to vector<1x8x32xf32>
    %20 = vector.shape_cast %19 : vector<1x8x32xf32> to vector<8x32xf32>
    %21 = vector.extract_strided_slice %16 {offsets = [0, 0], sizes = [8, 8], strides = [1, 1]} : vector<8x32xf32> to vector<8x8xf32>
    %22 = vector.extract_strided_slice %16 {offsets = [0, 8], sizes = [8, 8], strides = [1, 1]} : vector<8x32xf32> to vector<8x8xf32>
    %23 = vector.extract_strided_slice %16 {offsets = [0, 16], sizes = [8, 8], strides = [1, 1]} : vector<8x32xf32> to vector<8x8xf32>
    %24 = vector.extract_strided_slice %16 {offsets = [0, 24], sizes = [8, 8], strides = [1, 1]} : vector<8x32xf32> to vector<8x8xf32>
    %25 = vector.shape_cast %21 : vector<8x8xf32> to vector<1x8x8xf32>
    %26 = vector.shape_cast %22 : vector<8x8xf32> to vector<1x8x8xf32>
    %27 = vector.shape_cast %23 : vector<8x8xf32> to vector<1x8x8xf32>
    %28 = vector.shape_cast %24 : vector<8x8xf32> to vector<1x8x8xf32>
    %29 = tpu.concatenate %25, %26, %27, %28 in 0 : vector<1x8x8xf32>, vector<1x8x8xf32>, vector<1x8x8xf32>, vector<1x8x8xf32> -> vector<4x8x8xf32>
    %30 = vector.extract_strided_slice %18 {offsets = [0, 0], sizes = [8, 8], strides = [1, 1]} : vector<8x32xf32> to vector<8x8xf32>
    %31 = vector.extract_strided_slice %18 {offsets = [0, 8], sizes = [8, 8], strides = [1, 1]} : vector<8x32xf32> to vector<8x8xf32>
    %32 = vector.extract_strided_slice %18 {offsets = [0, 16], sizes = [8, 8], strides = [1, 1]} : vector<8x32xf32> to vector<8x8xf32>
    %33 = vector.extract_strided_slice %18 {offsets = [0, 24], sizes = [8, 8], strides = [1, 1]} : vector<8x32xf32> to vector<8x8xf32>
    %34 = vector.shape_cast %30 : vector<8x8xf32> to vector<1x8x8xf32>
    %35 = vector.shape_cast %31 : vector<8x8xf32> to vector<1x8x8xf32>
    %36 = vector.shape_cast %32 : vector<8x8xf32> to vector<1x8x8xf32>
    %37 = vector.shape_cast %33 : vector<8x8xf32> to vector<1x8x8xf32>
    %38 = tpu.concatenate %34, %35, %36, %37 in 0 : vector<1x8x8xf32>, vector<1x8x8xf32>, vector<1x8x8xf32>, vector<1x8x8xf32> -> vector<4x8x8xf32>
    %39 = vector.extract_strided_slice %20 {offsets = [0, 0], sizes = [8, 8], strides = [1, 1]} : vector<8x32xf32> to vector<8x8xf32>
    %40 = vector.extract_strided_slice %20 {offsets = [0, 8], sizes = [8, 8], strides = [1, 1]} : vector<8x32xf32> to vector<8x8xf32>
    %41 = vector.extract_strided_slice %20 {offsets = [0, 16], sizes = [8, 8], strides = [1, 1]} : vector<8x32xf32> to vector<8x8xf32>
    %42 = vector.extract_strided_slice %20 {offsets = [0, 24], sizes = [8, 8], strides = [1, 1]} : vector<8x32xf32> to vector<8x8xf32>
    %43 = vector.shape_cast %39 : vector<8x8xf32> to vector<1x8x8xf32>
    %44 = vector.shape_cast %40 : vector<8x8xf32> to vector<1x8x8xf32>
    %45 = vector.shape_cast %41 : vector<8x8xf32> to vector<1x8x8xf32>
    %46 = vector.shape_cast %42 : vector<8x8xf32> to vector<1x8x8xf32>
    %47 = tpu.concatenate %43, %44, %45, %46 in 0 : vector<1x8x8xf32>, vector<1x8x8xf32>, vector<1x8x8xf32>, vector<1x8x8xf32> -> vector<4x8x8xf32>
    "tpu.trace_start"() <{level = 10 : i32, message = "nld,nmd->nlm"}> : () -> ()
    %cst_11 = arith.constant dense<0.000000e+00> : vector<4x8x8xf32>
    %48 = tpu.matmul %29, %38, %cst_11 {dimension_numbers = #tpu.dot_dimension_numbers<[2], [2], [1], [1], [0, 0, 0, 1, 1, 1], [0], [0]>} : vector<4x8x8xf32>, vector<4x8x8xf32>, vector<4x8x8xf32> -> vector<4x8x8xf32>
    "tpu.trace_stop"() : () -> ()
    %cst_12 = arith.constant 0.353553385 : f32
    %49 = vector.broadcast %cst_12 : f32 to vector<4x8x8xf32>
    %50 = arith.mulf %48, %49 : vector<4x8x8xf32>
    %cst_13 = arith.constant dense<0xFF800000> : vector<4x8xf32>
    %51 = vector.multi_reduction <maximumf>, %50, %cst_13 [2] : vector<4x8x8xf32> to vector<4x8xf32>
    %52 = vector.shape_cast %51 : vector<4x8xf32> to vector<4x8x1xf32>
    %53 = vector.broadcast %52 : vector<4x8x1xf32> to vector<4x8x8xf32>
    %54 = arith.subf %50, %53 : vector<4x8x8xf32>
    %55 = math.exp %54 : vector<4x8x8xf32>
    %cst_14 = arith.constant dense<0.000000e+00> : vector<4x8xf32>
    %56 = vector.multi_reduction <add>, %55, %cst_14 [2] : vector<4x8x8xf32> to vector<4x8xf32>
    %57 = vector.shape_cast %56 : vector<4x8xf32> to vector<4x8x1xf32>
    %58 = tpu.reciprocal %57 {approx = true} : vector<4x8x1xf32> -> vector<4x8x1xf32>
    %59 = vector.broadcast %58 : vector<4x8x1xf32> to vector<4x8x8xf32>
    %60 = arith.mulf %55, %59 : vector<4x8x8xf32>
    "tpu.trace_start"() <{level = 10 : i32, message = "nlm,nmd->nld"}> : () -> ()
    %cst_15 = arith.constant dense<0.000000e+00> : vector<4x8x8xf32>
    %61 = tpu.matmul %60, %47, %cst_15 {dimension_numbers = #tpu.dot_dimension_numbers<[2], [1], [1], [2], [0, 0, 0, 1, 1, 2], [0], [0]>} : vector<4x8x8xf32>, vector<4x8x8xf32>, vector<4x8x8xf32> -> vector<4x8x8xf32>
    "tpu.trace_stop"() : () -> ()
    %62 = vector.extract_strided_slice %61 {offsets = [0, 0, 0], sizes = [1, 8, 8], strides = [1, 1, 1]} : vector<4x8x8xf32> to vector<1x8x8xf32>
    %63 = vector.shape_cast %62 : vector<1x8x8xf32> to vector<8x8xf32>
    %64 = vector.extract_strided_slice %61 {offsets = [1, 0, 0], sizes = [1, 8, 8], strides = [1, 1, 1]} : vector<4x8x8xf32> to vector<1x8x8xf32>
    %65 = vector.shape_cast %64 : vector<1x8x8xf32> to vector<8x8xf32>
    %66 = vector.extract_strided_slice %61 {offsets = [2, 0, 0], sizes = [1, 8, 8], strides = [1, 1, 1]} : vector<4x8x8xf32> to vector<1x8x8xf32>
    %67 = vector.shape_cast %66 : vector<1x8x8xf32> to vector<8x8xf32>
    %68 = vector.extract_strided_slice %61 {offsets = [3, 0, 0], sizes = [1, 8, 8], strides = [1, 1, 1]} : vector<4x8x8xf32> to vector<1x8x8xf32>
    %69 = vector.shape_cast %68 : vector<1x8x8xf32> to vector<8x8xf32>
    %70 = tpu.concatenate %63, %65, %67, %69 in 1 : vector<8x8xf32>, vector<8x8xf32>, vector<8x8xf32>, vector<8x8xf32> -> vector<8x32xf32>
    %cst_16 = arith.constant dense<0xFF800000> : vector<32xf32>
    %71 = vector.multi_reduction <maximumf>, %70, %cst_16 [0] : vector<8x32xf32> to vector<32xf32>
    %72 = vector.shape_cast %71 : vector<32xf32> to vector<1x32xf32>
    %73 = vector.extract_strided_slice %12 {offsets = [1, 0, 0], sizes = [1, 8, 32], strides = [1, 1, 1]} : vector<2x8x32xf32> to vector<1x8x32xf32>
    %74 = vector.shape_cast %73 : vector<1x8x32xf32> to vector<8x32xf32>
    %75 = vector.extract_strided_slice %13 {offsets = [1, 0, 0], sizes = [1, 8, 32], strides = [1, 1, 1]} : vector<2x8x32xf32> to vector<1x8x32xf32>
    %76 = vector.shape_cast %75 : vector<1x8x32xf32> to vector<8x32xf32>
    %77 = vector.extract_strided_slice %14 {offsets = [1, 0, 0], sizes = [1, 8, 32], strides = [1, 1, 1]} : vector<2x8x32xf32> to vector<1x8x32xf32>
    %78 = vector.shape_cast %77 : vector<1x8x32xf32> to vector<8x32xf32>
    %79 = vector.extract_strided_slice %74 {offsets = [0, 0], sizes = [8, 8], strides = [1, 1]} : vector<8x32xf32> to vector<8x8xf32>
    %80 = vector.extract_strided_slice %74 {offsets = [0, 8], sizes = [8, 8], strides = [1, 1]} : vector<8x32xf32> to vector<8x8xf32>
    %81 = vector.extract_strided_slice %74 {offsets = [0, 16], sizes = [8, 8], strides = [1, 1]} : vector<8x32xf32> to vector<8x8xf32>
    %82 = vector.extract_strided_slice %74 {offsets = [0, 24], sizes = [8, 8], strides = [1, 1]} : vector<8x32xf32> to vector<8x8xf32>
    %83 = vector.shape_cast %79 : vector<8x8xf32> to vector<1x8x8xf32>
    %84 = vector.shape_cast %80 : vector<8x8xf32> to vector<1x8x8xf32>
    %85 = vector.shape_cast %81 : vector<8x8xf32> to vector<1x8x8xf32>
    %86 = vector.shape_cast %82 : vector<8x8xf32> to vector<1x8x8xf32>
    %87 = tpu.concatenate %83, %84, %85, %86 in 0 : vector<1x8x8xf32>, vector<1x8x8xf32>, vector<1x8x8xf32>, vector<1x8x8xf32> -> vector<4x8x8xf32>
    %88 = vector.extract_strided_slice %76 {offsets = [0, 0], sizes = [8, 8], strides = [1, 1]} : vector<8x32xf32> to vector<8x8xf32>
    %89 = vector.extract_strided_slice %76 {offsets = [0, 8], sizes = [8, 8], strides = [1, 1]} : vector<8x32xf32> to vector<8x8xf32>
    %90 = vector.extract_strided_slice %76 {offsets = [0, 16], sizes = [8, 8], strides = [1, 1]} : vector<8x32xf32> to vector<8x8xf32>
    %91 = vector.extract_strided_slice %76 {offsets = [0, 24], sizes = [8, 8], strides = [1, 1]} : vector<8x32xf32> to vector<8x8xf32>
    %92 = vector.shape_cast %88 : vector<8x8xf32> to vector<1x8x8xf32>
    %93 = vector.shape_cast %89 : vector<8x8xf32> to vector<1x8x8xf32>
    %94 = vector.shape_cast %90 : vector<8x8xf32> to vector<1x8x8xf32>
    %95 = vector.shape_cast %91 : vector<8x8xf32> to vector<1x8x8xf32>
    %96 = tpu.concatenate %92, %93, %94, %95 in 0 : vector<1x8x8xf32>, vector<1x8x8xf32>, vector<1x8x8xf32>, vector<1x8x8xf32> -> vector<4x8x8xf32>
    %97 = vector.extract_strided_slice %78 {offsets = [0, 0], sizes = [8, 8], strides = [1, 1]} : vector<8x32xf32> to vector<8x8xf32>
    %98 = vector.extract_strided_slice %78 {offsets = [0, 8], sizes = [8, 8], strides = [1, 1]} : vector<8x32xf32> to vector<8x8xf32>
    %99 = vector.extract_strided_slice %78 {offsets = [0, 16], sizes = [8, 8], strides = [1, 1]} : vector<8x32xf32> to vector<8x8xf32>
    %100 = vector.extract_strided_slice %78 {offsets = [0, 24], sizes = [8, 8], strides = [1, 1]} : vector<8x32xf32> to vector<8x8xf32>
    %101 = vector.shape_cast %97 : vector<8x8xf32> to vector<1x8x8xf32>
    %102 = vector.shape_cast %98 : vector<8x8xf32> to vector<1x8x8xf32>
    %103 = vector.shape_cast %99 : vector<8x8xf32> to vector<1x8x8xf32>
    %104 = vector.shape_cast %100 : vector<8x8xf32> to vector<1x8x8xf32>
    %105 = tpu.concatenate %101, %102, %103, %104 in 0 : vector<1x8x8xf32>, vector<1x8x8xf32>, vector<1x8x8xf32>, vector<1x8x8xf32> -> vector<4x8x8xf32>
    "tpu.trace_start"() <{level = 10 : i32, message = "nld,nmd->nlm"}> : () -> ()
    %cst_17 = arith.constant dense<0.000000e+00> : vector<4x8x8xf32>
    %106 = tpu.matmul %87, %96, %cst_17 {dimension_numbers = #tpu.dot_dimension_numbers<[2], [2], [1], [1], [0, 0, 0, 1, 1, 1], [0], [0]>} : vector<4x8x8xf32>, vector<4x8x8xf32>, vector<4x8x8xf32> -> vector<4x8x8xf32>
    "tpu.trace_stop"() : () -> ()
    %cst_18 = arith.constant 0.353553385 : f32
    %107 = vector.broadcast %cst_18 : f32 to vector<4x8x8xf32>
    %108 = arith.mulf %106, %107 : vector<4x8x8xf32>
    %cst_19 = arith.constant dense<0xFF800000> : vector<4x8xf32>
    %109 = vector.multi_reduction <maximumf>, %108, %cst_19 [2] : vector<4x8x8xf32> to vector<4x8xf32>
    %110 = vector.shape_cast %109 : vector<4x8xf32> to vector<4x8x1xf32>
    %111 = vector.broadcast %110 : vector<4x8x1xf32> to vector<4x8x8xf32>
    %112 = arith.subf %108, %111 : vector<4x8x8xf32>
    %113 = math.exp %112 : vector<4x8x8xf32>
    %cst_20 = arith.constant dense<0.000000e+00> : vector<4x8xf32>
    %114 = vector.multi_reduction <add>, %113, %cst_20 [2] : vector<4x8x8xf32> to vector<4x8xf32>
    %115 = vector.shape_cast %114 : vector<4x8xf32> to vector<4x8x1xf32>
    %116 = tpu.reciprocal %115 {approx = true} : vector<4x8x1xf32> -> vector<4x8x1xf32>
    %117 = vector.broadcast %116 : vector<4x8x1xf32> to vector<4x8x8xf32>
    %118 = arith.mulf %113, %117 : vector<4x8x8xf32>
    "tpu.trace_start"() <{level = 10 : i32, message = "nlm,nmd->nld"}> : () -> ()
    %cst_21 = arith.constant dense<0.000000e+00> : vector<4x8x8xf32>
    %119 = tpu.matmul %118, %105, %cst_21 {dimension_numbers = #tpu.dot_dimension_numbers<[2], [1], [1], [2], [0, 0, 0, 1, 1, 2], [0], [0]>} : vector<4x8x8xf32>, vector<4x8x8xf32>, vector<4x8x8xf32> -> vector<4x8x8xf32>
    "tpu.trace_stop"() : () -> ()
    %120 = vector.extract_strided_slice %119 {offsets = [0, 0, 0], sizes = [1, 8, 8], strides = [1, 1, 1]} : vector<4x8x8xf32> to vector<1x8x8xf32>
    %121 = vector.shape_cast %120 : vector<1x8x8xf32> to vector<8x8xf32>
    %122 = vector.extract_strided_slice %119 {offsets = [1, 0, 0], sizes = [1, 8, 8], strides = [1, 1, 1]} : vector<4x8x8xf32> to vector<1x8x8xf32>
    %123 = vector.shape_cast %122 : vector<1x8x8xf32> to vector<8x8xf32>
    %124 = vector.extract_strided_slice %119 {offsets = [2, 0, 0], sizes = [1, 8, 8], strides = [1, 1, 1]} : vector<4x8x8xf32> to vector<1x8x8xf32>
    %125 = vector.shape_cast %124 : vector<1x8x8xf32> to vector<8x8xf32>
    %126 = vector.extract_strided_slice %119 {offsets = [3, 0, 0], sizes = [1, 8, 8], strides = [1, 1, 1]} : vector<4x8x8xf32> to vector<1x8x8xf32>
    %127 = vector.shape_cast %126 : vector<1x8x8xf32> to vector<8x8xf32>
    %128 = tpu.concatenate %121, %123, %125, %127 in 1 : vector<8x8xf32>, vector<8x8xf32>, vector<8x8xf32>, vector<8x8xf32> -> vector<8x32xf32>
    %cst_22 = arith.constant dense<0xFF800000> : vector<32xf32>
    %129 = vector.multi_reduction <maximumf>, %128, %cst_22 [0] : vector<8x32xf32> to vector<32xf32>
    %130 = vector.shape_cast %129 : vector<32xf32> to vector<1x32xf32>
    %131 = tpu.concatenate %72, %130 in 0 : vector<1x32xf32>, vector<1x32xf32> -> vector<2x32xf32>
    %132 = vector.shape_cast %12 : vector<2x8x32xf32> to vector<2x1x8x32xf32>
    %133 = vector.shape_cast %13 : vector<2x8x32xf32> to vector<1x2x8x32xf32>
    %134 = vector.broadcast %132 : vector<2x1x8x32xf32> to vector<2x2x8x32xf32>
    %135 = vector.broadcast %133 : vector<1x2x8x32xf32> to vector<2x2x8x32xf32>
    %136 = arith.mulf %134, %135 : vector<2x2x8x32xf32>
    %cst_23 = arith.constant dense<0.000000e+00> : vector<2x2x32xf32>
    %137 = vector.multi_reduction <add>, %136, %cst_23 [2] : vector<2x2x8x32xf32> to vector<2x2x32xf32>
    %cst_24 = arith.constant 0.353553385 : f32
    %138 = vector.broadcast %cst_24 : f32 to vector<2x2x32xf32>
    %139 = arith.mulf %137, %138 : vector<2x2x32xf32>
    %cst_25 = arith.constant dense<0xFF800000> : vector<2x32xf32>
    %140 = vector.multi_reduction <maximumf>, %139, %cst_25 [1] : vector<2x2x32xf32> to vector<2x32xf32>
    %141 = vector.shape_cast %140 : vector<2x32xf32> to vector<2x1x32xf32>
    %142 = vector.broadcast %141 : vector<2x1x32xf32> to vector<2x2x32xf32>
    %143 = arith.subf %139, %142 : vector<2x2x32xf32>
    %144 = math.exp %143 : vector<2x2x32xf32>
    %cst_26 = arith.constant dense<0.000000e+00> : vector<2x32xf32>
    %145 = vector.multi_reduction <add>, %144, %cst_26 [1] : vector<2x2x32xf32> to vector<2x32xf32>
    %146 = vector.shape_cast %145 : vector<2x32xf32> to vector<2x1x32xf32>
    %147 = tpu.reciprocal %146 {approx = true} : vector<2x1x32xf32> -> vector<2x1x32xf32>
    %148 = vector.broadcast %147 : vector<2x1x32xf32> to vector<2x2x32xf32>
    %149 = arith.mulf %144, %148 : vector<2x2x32xf32>
    %150 = vector.shape_cast %149 : vector<2x2x32xf32> to vector<2x2x1x32xf32>
    %151 = vector.shape_cast %14 : vector<2x8x32xf32> to vector<1x2x8x32xf32>
    %152 = vector.broadcast %150 : vector<2x2x1x32xf32> to vector<2x2x8x32xf32>
    %153 = vector.broadcast %151 : vector<1x2x8x32xf32> to vector<2x2x8x32xf32>
    %154 = arith.mulf %152, %153 : vector<2x2x8x32xf32>
    %cst_27 = arith.constant dense<0.000000e+00> : vector<2x8x32xf32>
    %155 = vector.multi_reduction <add>, %154, %cst_27 [1] : vector<2x2x8x32xf32> to vector<2x8x32xf32>
    %cst_28 = arith.constant dense<0xFF800000> : vector<2x32xf32>
    %156 = vector.multi_reduction <maximumf>, %155, %cst_28 [1] : vector<2x8x32xf32> to vector<2x32xf32>
    %cst_29 = arith.constant dense<0.000000e+00> : vector<2xf32>
    %157 = vector.multi_reduction <add>, %131, %cst_29 [1] : vector<2x32xf32> to vector<2xf32>
    %158 = vector.shape_cast %157 : vector<2xf32> to vector<2x1xf32>
    %cst_30 = arith.constant 3.200000e+01 : f32
    %159 = vector.broadcast %cst_30 : f32 to vector<2x1xf32>
    %160 = arith.divf %158, %159 : vector<2x1xf32>
    %161 = vector.broadcast %160 : vector<2x1xf32> to vector<2x32xf32>
    %162 = arith.subf %131, %161 : vector<2x32xf32>
    %163 = arith.mulf %162, %162 : vector<2x32xf32>
    %cst_31 = arith.constant dense<0.000000e+00> : vector<2xf32>
    %164 = vector.multi_reduction <add>, %163, %cst_31 [1] : vector<2x32xf32> to vector<2xf32>
    %165 = vector.shape_cast %164 : vector<2xf32> to vector<2x1xf32>
    %cst_32 = arith.constant 3.200000e+01 : f32
    %166 = vector.broadcast %cst_32 : f32 to vector<2x1xf32>
    %167 = arith.divf %165, %166 : vector<2x1xf32>
    %168 = vector.broadcast %160 : vector<2x1xf32> to vector<2x32xf32>
    %169 = arith.subf %131, %168 : vector<2x32xf32>
    %cst_33 = arith.constant 9.99999974E-6 : f32
    %170 = vector.broadcast %cst_33 : f32 to vector<2x1xf32>
    %171 = arith.addf %167, %170 : vector<2x1xf32>
    %172 = math.rsqrt %171 : vector<2x1xf32>
    %173 = vector.broadcast %172 : vector<2x1xf32> to vector<2x32xf32>
    %174 = arith.mulf %169, %173 : vector<2x32xf32>
    %175 = vector.broadcast %0 : vector<1x32xf32> to vector<2x32xf32>
    %176 = arith.mulf %174, %175 : vector<2x32xf32>
    %177 = vector.broadcast %1 : vector<1x32xf32> to vector<2x32xf32>
    %178 = arith.addf %176, %177 : vector<2x32xf32>
    %cst_34 = arith.constant dense<0.000000e+00> : vector<2xf32>
    %179 = vector.multi_reduction <add>, %156, %cst_34 [1] : vector<2x32xf32> to vector<2xf32>
    %180 = vector.shape_cast %179 : vector<2xf32> to vector<2x1xf32>
    %cst_35 = arith.constant 3.200000e+01 : f32
    %181 = vector.broadcast %cst_35 : f32 to vector<2x1xf32>
    %182 = arith.divf %180, %181 : vector<2x1xf32>
    %183 = vector.broadcast %182 : vector<2x1xf32> to vector<2x32xf32>
    %184 = arith.subf %156, %183 : vector<2x32xf32>
    %185 = arith.mulf %184, %184 : vector<2x32xf32>
    %cst_36 = arith.constant dense<0.000000e+00> : vector<2xf32>
    %186 = vector.multi_reduction <add>, %185, %cst_36 [1] : vector<2x32xf32> to vector<2xf32>
    %187 = vector.shape_cast %186 : vector<2xf32> to vector<2x1xf32>
    %cst_37 = arith.constant 3.200000e+01 : f32
    %188 = vector.broadcast %cst_37 : f32 to vector<2x1xf32>
    %189 = arith.divf %187, %188 : vector<2x1xf32>
    %190 = vector.broadcast %182 : vector<2x1xf32> to vector<2x32xf32>
    %191 = arith.subf %156, %190 : vector<2x32xf32>
    %cst_38 = arith.constant 9.99999974E-6 : f32
    %192 = vector.broadcast %cst_38 : f32 to vector<2x1xf32>
    %193 = arith.addf %189, %192 : vector<2x1xf32>
    %194 = math.rsqrt %193 : vector<2x1xf32>
    %195 = vector.broadcast %194 : vector<2x1xf32> to vector<2x32xf32>
    %196 = arith.mulf %191, %195 : vector<2x32xf32>
    %197 = vector.broadcast %0 : vector<1x32xf32> to vector<2x32xf32>
    %198 = arith.mulf %196, %197 : vector<2x32xf32>
    %199 = vector.broadcast %1 : vector<1x32xf32> to vector<2x32xf32>
    %200 = arith.addf %198, %199 : vector<2x32xf32>
    %201 = arith.addf %178, %200 : vector<2x32xf32>
    %cst_39 = arith.constant 5.000000e-01 : f32
    %202 = vector.broadcast %cst_39 : f32 to vector<2x32xf32>
    %203 = arith.mulf %201, %202 : vector<2x32xf32>
    %204 = math.tanh %203 : vector<2x32xf32>
    %c0_40 = arith.constant 0 : index
    %c0_41 = arith.constant 0 : index
    %205 = vector.load %arg6[%c0_40, %c0_41] : memref<32x1xf32, #tpu.memory_space<vmem>>, vector<32x1xf32>
    %cst_42 = arith.constant dense<0.000000e+00> : vector<2x1xf32>
    %206 = tpu.matmul %204, %205, %cst_42 {dimension_numbers = #tpu.dot_dimension_numbers<[1], [0], [0], [1], [0, 0, 1, 1], [], []>} : vector<2x32xf32>, vector<32x1xf32>, vector<2x1xf32> -> vector<2x1xf32>
    %c0_43 = arith.constant 0 : index
    %c0_44 = arith.constant 0 : index
    %207 = vector.load %arg7[%c0_43, %c0_44] : memref<1x1xf32, #tpu.memory_space<vmem>>, vector<1x1xf32>
    %208 = vector.broadcast %207 : vector<1x1xf32> to vector<2x1xf32>
    %209 = arith.addf %206, %208 : vector<2x1xf32>
    %cst_45 = arith.constant dense<0xFF800000> : vector<1xf32>
    %210 = vector.multi_reduction <maximumf>, %209, %cst_45 [0] : vector<2x1xf32> to vector<1xf32>
    %211 = vector.shape_cast %210 : vector<1xf32> to vector<1x1xf32>
    %212 = vector.broadcast %211 : vector<1x1xf32> to vector<2x1xf32>
    %213 = arith.subf %209, %212 : vector<2x1xf32>
    %214 = math.exp %213 : vector<2x1xf32>
    %cst_46 = arith.constant dense<0.000000e+00> : vector<1xf32>
    %215 = vector.multi_reduction <add>, %214, %cst_46 [0] : vector<2x1xf32> to vector<1xf32>
    %216 = vector.shape_cast %215 : vector<1xf32> to vector<1x1xf32>
    %217 = tpu.reciprocal %216 {approx = true} : vector<1x1xf32> -> vector<1x1xf32>
    %218 = vector.broadcast %217 : vector<1x1xf32> to vector<2x1xf32>
    %219 = arith.mulf %214, %218 : vector<2x1xf32>
    %220 = vector.broadcast %219 : vector<2x1xf32> to vector<2x32xf32>
    %221 = arith.mulf %220, %203 : vector<2x32xf32>
    %c0_47 = arith.constant 0 : index
    %c0_48 = arith.constant 0 : index
    %222 = vector.load %arg8[%c0_47, %c0_48] : memref<32x32xf32, #tpu.memory_space<vmem>>, vector<32x32xf32>
    %cst_49 = arith.constant dense<0.000000e+00> : vector<2x32xf32>
    %223 = tpu.matmul %221, %222, %cst_49 {dimension_numbers = #tpu.dot_dimension_numbers<[1], [0], [0], [1], [0, 0, 1, 1], [], []>} : vector<2x32xf32>, vector<32x32xf32>, vector<2x32xf32> -> vector<2x32xf32>
    %c0_50 = arith.constant 0 : index
    %c0_51 = arith.constant 0 : index
    %224 = vector.load %arg9[%c0_50, %c0_51] : memref<1x32xf32, #tpu.memory_space<vmem>>, vector<1x32xf32>
    %225 = vector.broadcast %224 : vector<1x32xf32> to vector<2x32xf32>
    %226 = arith.addf %223, %225 : vector<2x32xf32>
    %cst_52 = arith.constant dense<0.000000e+00> : vector<32xf32>
    %227 = vector.multi_reduction <add>, %226, %cst_52 [0] : vector<2x32xf32> to vector<32xf32>
    %228 = vector.shape_cast %227 : vector<32xf32> to vector<1x32xf32>
    %c0_53 = arith.constant 0 : index
    %c0_54 = arith.constant 0 : index
    %c0_55 = arith.constant 0 : index
    %229 = vector.load %arg10[%c0_53, %c0_54, %c0_55] : memref<1x1x32xf32, #tpu.memory_space<vmem>>, vector<1x1x32xf32>
    %230 = vector.shape_cast %229 : vector<1x1x32xf32> to vector<1x32xf32>
    %231 = vector.shape_cast %228 : vector<1x32xf32> to vector<1x1x32xf32>
    tpu.vector_store %arg10[%c0_53, %c0_54, %c0_55], %231 {strides = array<i32>} : memref<1x1x32xf32, #tpu.memory_space<vmem>>, vector<1x1x32xf32>,
    return
  }
  func.func @transform_0(%arg0: i32) -> (i32, i32, i32, i32) {
    %c0_i32 = arith.constant 0 : i32
    %c0_i32_0 = arith.constant 0 : i32
    %c0_i32_1 = arith.constant 0 : i32
    %c0_i32_2 = arith.constant 0 : i32
    return %arg0, %c0_i32, %c0_i32_0, %c0_i32_1 : i32, i32, i32, i32
  }
  func.func @transform_1(%arg0: i32) -> (i32, i32) {
    %c0_i32 = arith.constant 0 : i32
    %c0_i32_0 = arith.constant 0 : i32
    %c0_i32_1 = arith.constant 0 : i32
    return %c0_i32, %c0_i32_0 : i32, i32
  }
  func.func @transform_2(%arg0: i32) -> (i32, i32) {
    %c0_i32 = arith.constant 0 : i32
    %c0_i32_0 = arith.constant 0 : i32
    %c0_i32_1 = arith.constant 0 : i32
    return %c0_i32, %c0_i32_0 : i32, i32
  }
  func.func @transform_3(%arg0: i32) -> (i32, i32) {
    %c0_i32 = arith.constant 0 : i32
    %c0_i32_0 = arith.constant 0 : i32
    %c0_i32_1 = arith.constant 0 : i32
    return %c0_i32, %c0_i32_0 : i32, i32
  }
  func.func @transform_4(%arg0: i32) -> (i32, i32) {
    %c0_i32 = arith.constant 0 : i32
    %c0_i32_0 = arith.constant 0 : i32
    %c0_i32_1 = arith.constant 0 : i32
    return %c0_i32, %c0_i32_0 : i32, i32
  }
  func.func @transform_5(%arg0: i32) -> (i32, i32) {
    %c0_i32 = arith.constant 0 : i32
    %c0_i32_0 = arith.constant 0 : i32
    %c0_i32_1 = arith.constant 0 : i32
    return %c0_i32, %c0_i32_0 : i32, i32
  }
  func.func @transform_6(%arg0: i32) -> (i32, i32) {
    %c0_i32 = arith.constant 0 : i32
    %c0_i32_0 = arith.constant 0 : i32
    %c0_i32_1 = arith.constant 0 : i32
    return %c0_i32, %c0_i32_0 : i32, i32
  }
  func.func @transform_7(%arg0: i32) -> (i32, i32) {
    %c0_i32 = arith.constant 0 : i32
    %c0_i32_0 = arith.constant 0 : i32
    %c0_i32_1 = arith.constant 0 : i32
    return %c0_i32, %c0_i32_0 : i32, i32
  }
  func.func @transform_8(%arg0: i32) -> (i32, i32) {
    %c0_i32 = arith.constant 0 : i32
    %c0_i32_0 = arith.constant 0 : i32
    %c0_i32_1 = arith.constant 0 : i32
    return %c0_i32, %c0_i32_0 : i32, i32
  }
  func.func @transform_9(%arg0: i32) -> (i32, i32, i32) {
    %c0_i32 = arith.constant 0 : i32
    %c0_i32_0 = arith.constant 0 : i32
    %c0_i32_1 = arith.constant 0 : i32
    return %arg0, %c0_i32, %c0_i32_0 : i32, i32, i32
  }
}

</mosaic_0001>

<llo_original>
// kernel: run.2
$region0: #{run.2}
  #allocation0 [shape = 'u32[]', space=smem, size = 0x4, offset = 0x4, fixed_abs, tag = 'smem constant byte address 0x4 - core index']
  #allocation1 [shape = 'u32[144,128]{1,0:T(1,128)}', space=vmem, size = 0x12000, scoped, tag = 'internal scratch']
  %s0 = inlined_call_operand.vmem [shape: f32[4,8,32], index: 0, kind: input, shape index: {}]
  %s1 = inlined_call_operand.vmem [shape: f32[32,96], index: 1, kind: input, shape index: {}]
  %s2 = inlined_call_operand.vmem [shape: f32[1,96], index: 2, kind: input, shape index: {}]
  %s3 = inlined_call_operand.vmem [shape: f32[1,32], index: 3, kind: input, shape index: {}]
  %s4 = inlined_call_operand.vmem [shape: f32[1,32], index: 4, kind: input, shape index: {}]
  %s5 = inlined_call_operand.vmem [shape: f32[32,32], index: 5, kind: input, shape index: {}]
  %s6 = inlined_call_operand.vmem [shape: f32[1,32], index: 6, kind: input, shape index: {}]
  %s7 = inlined_call_operand.hbm [shape: f32[2,2,32], index: 7, kind: output, shape index: {}]
  %s8 = sld [smem:[#allocation0]]
  $region61: #{run.2} parent=0
    _
  %s10 = ssub.s32 1, %s8
  %s11 = scalar_select 0, %s10, %s8
  $region1: #{run.2} parent=0
    #allocation2 [shape = 'u8[2048]{0}', space=vmem, size = 0x800, scoped, tag = 'output window, operand 0']
    #allocation3 [shape = 's32[2]{0}', space=sflag, size = 0x8, scoped, tag = 'scoped memory for run.2']
    %12 = vsyncpa [#allocation3], 0
    %s13 = scalar_lea.sflag [#allocation3], 1
    %14 = vsyncpa %s13, 0
    loop: start=0, step=1, limit=4
    $region2: #{run.2} parent=1 // loop_pre_header
      _
    $region3: #{run.2} parent=1 // loop_header
      %s16 = sphi 0, %s20
      %p17 = scmp.ge.s32.totalorder %s16, 4
      %s26 = sphi 0, %s28
      %s29 = sphi 0, %s26
      %s30 = sphi 0, %s29
      %s46 = sphi 0, %s30
      %s50 = sphi 0, %s50
      %s52 = sphi 0, %s50
      %s53 = sphi 0, %s52
      %s67 = sphi 0, %s53
      %s71 = sphi 0, %s71
      %s73 = sphi 0, %s71
      %s74 = sphi 0, %s73
      %s88 = sphi 0, %s74
      %s92 = sphi 0, %s92
      %s94 = sphi 0, %s92
      %s95 = sphi 0, %s94
      %s109 = sphi 0, %s95
      %s113 = sphi 0, %s113
      %s115 = sphi 0, %s113
      %s116 = sphi 0, %s115
      %s130 = sphi 0, %s116
      %s134 = sphi 0, %s134
      %s136 = sphi 0, %s134
      %s137 = sphi 0, %s136
      %s151 = sphi 0, %s137
      %s155 = sphi 0, %s155
      %s157 = sphi 0, %s155
      %s158 = sphi 0, %s157
      %s172 = sphi 0, %s158
      %s178 = sphi 0, %s180
      %s181 = sphi 0, %s178
      %s182 = sphi 0, %s181
      %s198 = sphi 0, %s182
    $region4: #{run.2} parent=1 // loop_header_branch
      %19 = sbr.rel (%p17) target = $region8
    $region5: #{run.2} parent=1 // loop_body
      %s21 = ssub.s32 %s16, 1
      %s22 = ssub.s32 %s16, 2
      %s23 = sadd.s32 %s16, 1
      %s24 = ssub.s32 %s16, %s23
      %p25 = scmp.eq.s32.totalorder %s24, 0
      %s27 = sadd.s32 %s26, 1
      %s28 = scalar_select %p25, %s26, %s27
      %p31 = pneg %p25
      %p32 = scmp.eq.s32.totalorder %s16, 1
      %p33 = por %p31, %p32
      %p34 = scmp.ne.s32.totalorder %s26, %s29
      %p35 = scmp.eq.s32.totalorder %s16, 0
      %p36 = por %p34, %p35
      %p37 = scmp.ne.s32.totalorder %s26, %s29
      %p38 = scmp.eq.s32.totalorder %s21, 1
      %p39 = por %p37, %p38
      %p40 = scmp.ne.s32.totalorder %s29, %s30
      %p41 = scmp.eq.s32.totalorder %s21, 0
      %p42 = por %p40, %p41
      %p43 = scmp.ne.s32.totalorder %s29, %s30
      %p44 = scmp.eq.s32.totalorder %s22, 1
      %p45 = por %p43, %p44
      %p47 = scmp.ne.s32.totalorder %s30, %s46
      %p48 = scmp.eq.s32.totalorder %s22, 0
      %p49 = por %p47, %p48
      %s51 = sadd.s32 %s50, 1
      %p54 = scmp.eq.s32.totalorder %s16, 1
      %p55 = scmp.ne.s32.totalorder %s50, %s52
      %p56 = scmp.eq.s32.totalorder %s16, 0
      %p57 = por %p55, %p56
      %p58 = scmp.ne.s32.totalorder %s50, %s52
      %p59 = scmp.eq.s32.totalorder %s21, 1
      %p60 = por %p58, %p59
      %p61 = scmp.ne.s32.totalorder %s52, %s53
      %p62 = scmp.eq.s32.totalorder %s21, 0
      %p63 = por %p61, %p62
      %p64 = scmp.ne.s32.totalorder %s52, %s53
      %p65 = scmp.eq.s32.totalorder %s22, 1
      %p66 = por %p64, %p65
      %p68 = scmp.ne.s32.totalorder %s53, %s67
      %p69 = scmp.eq.s32.totalorder %s22, 0
      %p70 = por %p68, %p69
      %s72 = sadd.s32 %s71, 1
      %p75 = scmp.eq.s32.totalorder %s16, 1
      %p76 = scmp.ne.s32.totalorder %s71, %s73
      %p77 = scmp.eq.s32.totalorder %s16, 0
      %p78 = por %p76, %p77
      %p79 = scmp.ne.s32.totalorder %s71, %s73
      %p80 = scmp.eq.s32.totalorder %s21, 1
      %p81 = por %p79, %p80
      %p82 = scmp.ne.s32.totalorder %s73, %s74
      %p83 = scmp.eq.s32.totalorder %s21, 0
      %p84 = por %p82, %p83
      %p85 = scmp.ne.s32.totalorder %s73, %s74
      %p86 = scmp.eq.s32.totalorder %s22, 1
      %p87 = por %p85, %p86
      %p89 = scmp.ne.s32.totalorder %s74, %s88
      %p90 = scmp.eq.s32.totalorder %s22, 0
      %p91 = por %p89, %p90
      %s93 = sadd.s32 %s92, 1
      %p96 = scmp.eq.s32.totalorder %s16, 1
      %p97 = scmp.ne.s32.totalorder %s92, %s94
      %p98 = scmp.eq.s32.totalorder %s16, 0
      %p99 = por %p97, %p98
      %p100 = scmp.ne.s32.totalorder %s92, %s94
      %p101 = scmp.eq.s32.totalorder %s21, 1
      %p102 = por %p100, %p101
      %p103 = scmp.ne.s32.totalorder %s94, %s95
      %p104 = scmp.eq.s32.totalorder %s21, 0
      %p105 = por %p103, %p104
      %p106 = scmp.ne.s32.totalorder %s94, %s95
      %p107 = scmp.eq.s32.totalorder %s22, 1
      %p108 = por %p106, %p107
      %p110 = scmp.ne.s32.totalorder %s95, %s109
      %p111 = scmp.eq.s32.totalorder %s22, 0
      %p112 = por %p110, %p111
      %s114 = sadd.s32 %s113, 1
      %p117 = scmp.eq.s32.totalorder %s16, 1
      %p118 = scmp.ne.s32.totalorder %s113, %s115
      %p119 = scmp.eq.s32.totalorder %s16, 0
      %p120 = por %p118, %p119
      %p121 = scmp.ne.s32.totalorder %s113, %s115
      %p122 = scmp.eq.s32.totalorder %s21, 1
      %p123 = por %p121, %p122
      %p124 = scmp.ne.s32.totalorder %s115, %s116
      %p125 = scmp.eq.s32.totalorder %s21, 0
      %p126 = por %p124, %p125
      %p127 = scmp.ne.s32.totalorder %s115, %s116
      %p128 = scmp.eq.s32.totalorder %s22, 1
      %p129 = por %p127, %p128
      %p131 = scmp.ne.s32.totalorder %s116, %s130
      %p132 = scmp.eq.s32.totalorder %s22, 0
      %p133 = por %p131, %p132
      %s135 = sadd.s32 %s134, 1
      %p138 = scmp.eq.s32.totalorder %s16, 1
      %p139 = scmp.ne.s32.totalorder %s134, %s136
      %p140 = scmp.eq.s32.totalorder %s16, 0
      %p141 = por %p139, %p140
      %p142 = scmp.ne.s32.totalorder %s134, %s136
      %p143 = scmp.eq.s32.totalorder %s21, 1
      %p144 = por %p142, %p143
      %p145 = scmp.ne.s32.totalorder %s136, %s137
      %p146 = scmp.eq.s32.totalorder %s21, 0
      %p147 = por %p145, %p146
      %p148 = scmp.ne.s32.totalorder %s136, %s137
      %p149 = scmp.eq.s32.totalorder %s22, 1
      %p150 = por %p148, %p149
      %p152 = scmp.ne.s32.totalorder %s137, %s151
      %p153 = scmp.eq.s32.totalorder %s22, 0
      %p154 = por %p152, %p153
      %s156 = sadd.s32 %s155, 1
      %p159 = scmp.eq.s32.totalorder %s16, 1
      %p160 = scmp.ne.s32.totalorder %s155, %s157
      %p161 = scmp.eq.s32.totalorder %s16, 0
      %p162 = por %p160, %p161
      %p163 = scmp.ne.s32.totalorder %s155, %s157
      %p164 = scmp.eq.s32.totalorder %s21, 1
      %p165 = por %p163, %p164
      %p166 = scmp.ne.s32.totalorder %s157, %s158
      %p167 = scmp.eq.s32.totalorder %s21, 0
      %p168 = por %p166, %p167
      %p169 = scmp.ne.s32.totalorder %s157, %s158
      %p170 = scmp.eq.s32.totalorder %s22, 1
      %p171 = por %p169, %p170
      %p173 = scmp.ne.s32.totalorder %s158, %s172
      %p174 = scmp.eq.s32.totalorder %s22, 0
      %p175 = por %p173, %p174
      %s176 = ssub.s32 %s16, %s23
      %p177 = scmp.eq.s32.totalorder %s176, 0
      %s179 = sadd.s32 %s178, 1
      %s180 = scalar_select %p177, %s178, %s179
      %p183 = pneg %p177
      %p184 = scmp.eq.s32.totalorder %s16, 1
      %p185 = por %p183, %p184
      %p186 = scmp.ne.s32.totalorder %s178, %s181
      %p187 = scmp.eq.s32.totalorder %s16, 0
      %p188 = por %p186, %p187
      %p189 = scmp.ne.s32.totalorder %s178, %s181
      %p190 = scmp.eq.s32.totalorder %s21, 1
      %p191 = por %p189, %p190
      %p192 = scmp.ne.s32.totalorder %s181, %s182
      %p193 = scmp.eq.s32.totalorder %s21, 0
      %p194 = por %p192, %p193
      %p195 = scmp.ne.s32.totalorder %s181, %s182
      %p196 = scmp.eq.s32.totalorder %s22, 1
      %p197 = por %p195, %p196
      %p199 = scmp.ne.s32.totalorder %s182, %s198
      %p200 = scmp.eq.s32.totalorder %s22, 0
      %p201 = por %p199, %p200
      %p202 = scmp.le.s32.totalorder 1, %s16
      %p203 = scmp.lt.s32.totalorder %s16, 3
      %p204 = pnand %p202, %p203
      %p205 = pneg %p204
      // Predicated region
      $region9: #{run.2} parent=5 // pred_check
        _
      $region10: #{run.2} parent=5 // pred_check_branch
        %207 = sbr.rel (%p204) target = $region12
      $region11: #{run.2} parent=5 // pred_region
        %s208 = ssub.s32 %s16, 1
        // Predicated region
        $region13: #{run.2} parent=11 // pred_check
          %p209 = pneg %p63
        $region14: #{run.2} parent=11 // pred_check_branch
          %211 = sbr.rel (%p209) target = $region16
        $region15: #{run.2} parent=11 // pred_region
          _
        $region16: #{run.2} parent=11 // pred_fallthru
          _
        // Predicated region
        $region17: #{run.2} parent=11 // pred_check
          %p212 = pneg %p84
        $region18: #{run.2} parent=11 // pred_check_branch
          %214 = sbr.rel (%p212) target = $region20
        $region19: #{run.2} parent=11 // pred_region
          _
        $region20: #{run.2} parent=11 // pred_fallthru
          _
        // Predicated region
        $region21: #{run.2} parent=11 // pred_check
          %p215 = pneg %p105
        $region22: #{run.2} parent=11 // pred_check_branch
          %217 = sbr.rel (%p215) target = $region24
        $region23: #{run.2} parent=11 // pred_region
          _
        $region24: #{run.2} parent=11 // pred_fallthru
          _
        // Predicated region
        $region25: #{run.2} parent=11 // pred_check
          %p218 = pneg %p126
        $region26: #{run.2} parent=11 // pred_check_branch
          %220 = sbr.rel (%p218) target = $region28
        $region27: #{run.2} parent=11 // pred_region
          _
        $region28: #{run.2} parent=11 // pred_fallthru
          _
        // Predicated region
        $region29: #{run.2} parent=11 // pred_check
          %p221 = pneg %p147
        $region30: #{run.2} parent=11 // pred_check_branch
          %223 = sbr.rel (%p221) target = $region32
        $region31: #{run.2} parent=11 // pred_region
          _
        $region32: #{run.2} parent=11 // pred_fallthru
          _
        // Predicated region
        $region33: #{run.2} parent=11 // pred_check
          %p224 = pneg %p168
        $region34: #{run.2} parent=11 // pred_check_branch
          %226 = sbr.rel (%p224) target = $region36
        $region35: #{run.2} parent=11 // pred_region
          _
        $region36: #{run.2} parent=11 // pred_fallthru
          _
      $region12: #{run.2} parent=5 // pred_fallthru
        _
      %p227 = scmp.lt.s32.totalorder %s16, 2
      // Predicated region
      $region37: #{run.2} parent=5 // pred_check
        %p228 = pneg %p227
      $region38: #{run.2} parent=5 // pred_check_branch
        %230 = sbr.rel (%p228) target = $region40
      $region39: #{run.2} parent=5 // pred_region
        // Predicated region
        $region41: #{run.2} parent=39 // pred_check
          %p231 = pneg %p36
        $region42: #{run.2} parent=39 // pred_check_branch
          %233 = sbr.rel (%p231) target = $region44
        $region43: #{run.2} parent=39 // pred_region
          %s234 = smul.u32 2, %s16
          %p235 = scmp.lt.s32.totalorder %s234, 3
          %s236 = scalar_select %p235, %s234, 3
          %s237 = smul.addr %s236, 8
          %s238 = scalar_lea.vmem %s0, %s237
          %s239 = smul.u32 2, %s16
        $region44: #{run.2} parent=39 // pred_fallthru
          _
      $region40: #{run.2} parent=5 // pred_fallthru
        _
      %p240 = scmp.le.s32.totalorder 1, %s16
      %p241 = scmp.lt.s32.totalorder %s16, 3
      %p242 = pnand %p240, %p241
      %p243 = pneg %p242
      // Predicated region
      $region45: #{run.2} parent=5 // pred_check
        _
      $region46: #{run.2} parent=5 // pred_check_branch
        %245 = sbr.rel (%p242) target = $region48
      $region47: #{run.2} parent=5 // pred_region
        %s246 = ssub.s32 %s16, 1
        %s247 = smul.u32 2, %s21
        %p248 = scmp.lt.s32.totalorder %s247, 3
        %s249 = scalar_select %p248, %s247, 3
        %s250 = smul.addr %s249, 8
        %s251 = scalar_lea.vmem %s0, %s250
        %p252 = pneg %p42
        %p253 = pneg %p39
        %p254 = pneg %p63
        %p255 = pneg %p60
        %p256 = pneg %p84
        %p257 = pneg %p81
        %p258 = pneg %p105
        %p259 = pneg %p102
        %p260 = pneg %p126
        %p261 = pneg %p123
        %p262 = pneg %p147
        %p263 = pneg %p144
        %p264 = pneg %p168
        %p265 = pneg %p165
        %p266 = pneg %p194
        %p267 = pneg %p191
        %s268 = sand.u32 %s181, 1
        %s269 = scalar_lea.sflag [#allocation3], %s268
        %s270 = sand.u32 %s181, 1
        %s271 = smul.addr %s270, 2
        %s272 = scalar_lea.vmem [#allocation2], %s271
        %s273 = smul.u32 2, %s21
        %p274 = scmp.lt.s32.totalorder %s273, 3
        %s275 = scalar_select %p274, %s273, 3
        %s276 = smul.addr %s275, 8
        %s277 = scalar_lea.vmem %s0, %s276
        %s278 = smul.u32 2, %s21
        %v279 = vld [vmem:[%s277] sm:$0xff]
        %v280 = vld [vmem:[%s277 + $0x8] sm:$0xff]
        %v281 = vld [vmem:[%s1] sm:$0xff]
        %v282 = vld [vmem:[%s1 + $0x8] sm:$0xff]
        %v283 = vld [vmem:[%s1 + $0x10] sm:$0xff]
        %v284 = vld [vmem:[%s1 + $0x18] sm:$0xff]
        %v285 = vld [vmem:[%s2] sm:$0x1]
        %v287 = vlaneseq
        %v288 = vshrl.u32 %v287, 7
        %v289 = vsub.s32 0, %v288
        %v290 = vrot.slane %v285, %v289
        %vm292 = vcmask 261120
        %v294 = vsel %vm292, %v279, 0
        %v297 = vsel %vm292, %v280, 0
        %299 = vmatprep.subr.mxu0 0.0
        %300 = vmatpush1.msra.mxu0 0.0
        %301 = vmatprep.subr.mxu0 0.0
        %302 = vmatpush1.msra.mxu0 0.0
        %303 = vmatprep.subr.mxu0 0.0
        %304 = vmatpush1.msra.mxu0 0.0
        %305 = vmatprep.subr.mxu0 0.0
        %306 = vmatpush1.msra.mxu0 0.0
        %307 = vmatprep.subr.mxu0 0.0
        %308 = vmatpush1.msra.mxu0 0.0
        %309 = vmatprep.subr.mxu0 0.0
        %310 = vmatpush1.msra.mxu0 0.0
        %311 = vmatprep.subr.mxu0 0.0
        %312 = vmatpush1.msra.mxu0 0.0
        %313 = vmatprep.subr.mxu0 0.0
        %314 = vmatpush1.msra.mxu0 0.0
        %315 = vmatprep.subr.mxu0 0.0
        %316 = vmatpush1.msra.mxu0 0.0
        %317 = vmatprep.subr.mxu0 0.0
        %318 = vmatpush1.msra.mxu0 0.0
        %319 = vmatprep.subr.mxu0 0.0
        %320 = vmatpush1.msra.mxu0 0.0
        %321 = vmatprep.subr.mxu0 0.0
        %322 = vmatpush1.msra.mxu0 0.0
        %323 = vmatprep.subr.mxu0 0.0
        %324 = vmatpush1.msra.mxu0 %v284
        %325 = vmatprep.subr.mxu0 0.0
        %326 = vmatpush1.msra.mxu0 %v283
        %327 = vmatprep.subr.mxu0 0.0
        %328 = vmatpush1.msra.mxu0 %v282
        %329 = vmatprep.subr.mxu0 0.0
        %330 = vmatpush1.msra.mxu0 %v281
        %331 = vmatprep.subr.mxu0 0.0
        %332 = vmatpush2.msra.mxu0 0.0
        %333 = vmatprep.subr.mxu0 0.0
        %334 = vmatpush2.msra.mxu0 0.0
        %335 = vmatprep.subr.mxu0 0.0
        %336 = vmatpush2.msra.mxu0 0.0
        %337 = vmatprep.subr.mxu0 0.0
        %338 = vmatpush2.msra.mxu0 0.0
        %339 = vmatprep.subr.mxu0 0.0
        %340 = vmatpush2.msra.mxu0 0.0
        %341 = vmatprep.subr.mxu0 0.0
        %342 = vmatpush2.msra.mxu0 0.0
        %343 = vmatprep.subr.mxu0 0.0
        %344 = vmatpush2.msra.mxu0 0.0
        %345 = vmatprep.subr.mxu0 0.0
        %346 = vmatpush2.msra.mxu0 0.0
        %347 = vmatprep.subr.mxu0 0.0
        %348 = vmatpush2.msra.mxu0 0.0
        %349 = vmatprep.subr.mxu0 0.0
        %350 = vmatpush2.msra.mxu0 0.0
        %351 = vmatprep.subr.mxu0 0.0
        %352 = vmatpush2.msra.mxu0 0.0
        %353 = vmatprep.subr.mxu0 0.0
        %354 = vmatpush2.msra.mxu0 0.0
        %355 = vmatprep.subr.mxu0 0.0
        %356 = vmatpush2.msra.mxu0 0.0
        %357 = vmatprep.subr.mxu0 0.0
        %358 = vmatpush2.msra.mxu0 0.0
        %359 = vmatprep.subr.mxu0 0.0
        %360 = vmatpush2.msra.mxu0 0.0
        %361 = vmatprep.subr.mxu0 0.0
        %362 = vmatpush2.msra.mxu0 0.0
        %363 = vmatprep.mubr.f32.mxu0 0.0
        %364 = vmatmul.mubr.f32.gmra.mxu0 %v294
        %v365 = vpop.f32.mrf.mxu0
        %v366 = vadd.f32 %v290, %v365
        %v367 = vpop.f32.mrf.mxu0
        %368 = vmatprep.mubr.f32.mxu0 0.0
        %369 = vmatmul.mubr.f32.gmra.mxu0 %v297
        %v370 = vpop.f32.mrf.mxu0
        %v371 = vadd.f32 %v290, %v370
        %v372 = vpop.f32.mrf.mxu0
        %373 = vdwg.mxu0
        %375 = vrot.lane.b32.xlu0 %v366, 120
        %v376 = vpop.permute.xlu0 %375
        %377 = vrot.lane.b32.xlu0 %v366, 112
        %v378 = vpop.permute.xlu0 %377
        %379 = vrot.lane.b32.xlu0 %v366, 104
        %v380 = vpop.permute.xlu0 %379
        %381 = vrot.lane.b32.xlu0 %v366, 96
        %v382 = vpop.permute.xlu0 %381
        %vm383 = vcmask 64512
        %v384 = vsel %vm383, %v366, 0
        %v386 = vsel %vm383, %v382, 0
        %388 = vmatprep.subr.mxu0 0.0
        %389 = vmatpush1.xpose.msra.mxu0 0.0
        %390 = vmatprep.subr.mxu0 0.0
        %391 = vmatpush1.xpose.msra.mxu0 0.0
        %392 = vmatprep.subr.mxu0 0.0
        %393 = vmatpush1.xpose.msra.mxu0 0.0
        %394 = vmatprep.subr.mxu0 0.0
        %395 = vmatpush1.xpose.msra.mxu0 0.0
        %396 = vmatprep.subr.mxu0 0.0
        %397 = vmatpush1.xpose.msra.mxu0 0.0
        %398 = vmatprep.subr.mxu0 0.0
        %399 = vmatpush1.xpose.msra.mxu0 0.0
        %400 = vmatprep.subr.mxu0 0.0
        %401 = vmatpush1.xpose.msra.mxu0 0.0
        %402 = vmatprep.subr.mxu0 0.0
        %403 = vmatpush1.xpose.msra.mxu0 0.0
        %404 = vmatprep.subr.mxu0 0.0
        %405 = vmatpush1.xpose.msra.mxu0 0.0
        %406 = vmatprep.subr.mxu0 0.0
        %407 = vmatpush1.xpose.msra.mxu0 0.0
        %408 = vmatprep.subr.mxu0 0.0
        %409 = vmatpush1.xpose.msra.mxu0 0.0
        %410 = vmatprep.subr.mxu0 0.0
        %411 = vmatpush1.xpose.msra.mxu0 0.0
        %412 = vmatprep.subr.mxu0 0.0
        %413 = vmatpush1.xpose.msra.mxu0 0.0
        %414 = vmatprep.subr.mxu0 0.0
        %415 = vmatpush1.xpose.msra.mxu0 0.0
        %416 = vmatprep.subr.mxu0 0.0
        %417 = vmatpush1.xpose.msra.mxu0 0.0
        %418 = vmatprep.subr.mxu0 0.0
        %419 = vmatpush1.xpose.msra.mxu0 %v386
        %420 = vmatprep.subr.mxu0 0.0
        %421 = vmatpush2.xpose.msra.mxu0 0.0
        %422 = vmatprep.subr.mxu0 0.0
        %423 = vmatpush2.xpose.msra.mxu0 0.0
        %424 = vmatprep.subr.mxu0 0.0
        %425 = vmatpush2.xpose.msra.mxu0 0.0
        %426 = vmatprep.subr.mxu0 0.0
        %427 = vmatpush2.xpose.msra.mxu0 0.0
        %428 = vmatprep.subr.mxu0 0.0
        %429 = vmatpush2.xpose.msra.mxu0 0.0
        %430 = vmatprep.subr.mxu0 0.0
        %431 = vmatpush2.xpose.msra.mxu0 0.0
        %432 = vmatprep.subr.mxu0 0.0
        %433 = vmatpush2.xpose.msra.mxu0 0.0
        %434 = vmatprep.subr.mxu0 0.0
        %435 = vmatpush2.xpose.msra.mxu0 0.0
        %436 = vmatprep.subr.mxu0 0.0
        %437 = vmatpush2.xpose.msra.mxu0 0.0
        %438 = vmatprep.subr.mxu0 0.0
        %439 = vmatpush2.xpose.msra.mxu0 0.0
        %440 = vmatprep.subr.mxu0 0.0
        %441 = vmatpush2.xpose.msra.mxu0 0.0
        %442 = vmatprep.subr.mxu0 0.0
        %443 = vmatpush2.xpose.msra.mxu0 0.0
        %444 = vmatprep.subr.mxu0 0.0
        %445 = vmatpush2.xpose.msra.mxu0 0.0
        %446 = vmatprep.subr.mxu0 0.0
        %447 = vmatpush2.xpose.msra.mxu0 0.0
        %448 = vmatprep.subr.mxu0 0.0
        %449 = vmatpush2.xpose.msra.mxu0 0.0
        %450 = vmatprep.subr.mxu0 0.0
        %451 = vmatpush2.xpose.msra.mxu0 0.0
        %452 = vmatprep.mubr.f32.mxu0 0.0
        %453 = vmatmul.mubr.f32.gmra.mxu0 %v384
        %v454 = vpop.f32.mrf.mxu0
        %v455 = vadd.f32 0.0, %v454
        %v456 = vpop.f32.mrf.mxu0
        %457 = vdwg.mxu0
        %458 = vrot.lane.b32.xlu0 %v376, 96
        %v459 = vpop.permute.xlu0 %458
        %v460 = vsel %vm383, %v376, 0
        %v462 = vsel %vm383, %v459, 0
        %464 = vmatprep.subr.mxu0 0.0
        %465 = vmatpush1.xpose.msra.mxu0 0.0
        %466 = vmatprep.subr.mxu0 0.0
        %467 = vmatpush1.xpose.msra.mxu0 0.0
        %468 = vmatprep.subr.mxu0 0.0
        %469 = vmatpush1.xpose.msra.mxu0 0.0
        %470 = vmatprep.subr.mxu0 0.0
        %471 = vmatpush1.xpose.msra.mxu0 0.0
        %472 = vmatprep.subr.mxu0 0.0
        %473 = vmatpush1.xpose.msra.mxu0 0.0
        %474 = vmatprep.subr.mxu0 0.0
        %475 = vmatpush1.xpose.msra.mxu0 0.0
        %476 = vmatprep.subr.mxu0 0.0
        %477 = vmatpush1.xpose.msra.mxu0 0.0
        %478 = vmatprep.subr.mxu0 0.0
        %479 = vmatpush1.xpose.msra.mxu0 0.0
        %480 = vmatprep.subr.mxu0 0.0
        %481 = vmatpush1.xpose.msra.mxu0 0.0
        %482 = vmatprep.subr.mxu0 0.0
        %483 = vmatpush1.xpose.msra.mxu0 0.0
        %484 = vmatprep.subr.mxu0 0.0
        %485 = vmatpush1.xpose.msra.mxu0 0.0
        %486 = vmatprep.subr.mxu0 0.0
        %487 = vmatpush1.xpose.msra.mxu0 0.0
        %488 = vmatprep.subr.mxu0 0.0
        %489 = vmatpush1.xpose.msra.mxu0 0.0
        %490 = vmatprep.subr.mxu0 0.0
        %491 = vmatpush1.xpose.msra.mxu0 0.0
        %492 = vmatprep.subr.mxu0 0.0
        %493 = vmatpush1.xpose.msra.mxu0 0.0
        %494 = vmatprep.subr.mxu0 0.0
        %495 = vmatpush1.xpose.msra.mxu0 %v462
        %496 = vmatprep.subr.mxu0 0.0
        %497 = vmatpush2.xpose.msra.mxu0 0.0
        %498 = vmatprep.subr.mxu0 0.0
        %499 = vmatpush2.xpose.msra.mxu0 0.0
        %500 = vmatprep.subr.mxu0 0.0
        %501 = vmatpush2.xpose.msra.mxu0 0.0
        %502 = vmatprep.subr.mxu0 0.0
        %503 = vmatpush2.xpose.msra.mxu0 0.0
        %504 = vmatprep.subr.mxu0 0.0
        %505 = vmatpush2.xpose.msra.mxu0 0.0
        %506 = vmatprep.subr.mxu0 0.0
        %507 = vmatpush2.xpose.msra.mxu0 0.0
        %508 = vmatprep.subr.mxu0 0.0
        %509 = vmatpush2.xpose.msra.mxu0 0.0
        %510 = vmatprep.subr.mxu0 0.0
        %511 = vmatpush2.xpose.msra.mxu0 0.0
        %512 = vmatprep.subr.mxu0 0.0
        %513 = vmatpush2.xpose.msra.mxu0 0.0
        %514 = vmatprep.subr.mxu0 0.0
        %515 = vmatpush2.xpose.msra.mxu0 0.0
        %516 = vmatprep.subr.mxu0 0.0
        %517 = vmatpush2.xpose.msra.mxu0 0.0
        %518 = vmatprep.subr.mxu0 0.0
        %519 = vmatpush2.xpose.msra.mxu0 0.0
        %520 = vmatprep.subr.mxu0 0.0
        %521 = vmatpush2.xpose.msra.mxu0 0.0
        %522 = vmatprep.subr.mxu0 0.0
        %523 = vmatpush2.xpose.msra.mxu0 0.0
        %524 = vmatprep.subr.mxu0 0.0
        %525 = vmatpush2.xpose.msra.mxu0 0.0
        %526 = vmatprep.subr.mxu0 0.0
        %527 = vmatpush2.xpose.msra.mxu0 0.0
        %528 = vmatprep.mubr.f32.mxu0 0.0
        %529 = vmatmul.mubr.f32.gmra.mxu0 %v460
        %v530 = vpop.f32.mrf.mxu0
        %v531 = vadd.f32 0.0, %v530
        %v532 = vpop.f32.mrf.mxu0
        %533 = vdwg.mxu0
        %534 = vrot.lane.b32.xlu0 %v378, 96
        %v535 = vpop.permute.xlu0 %534
        %v536 = vsel %vm383, %v378, 0
        %v538 = vsel %vm383, %v535, 0
        %540 = vmatprep.subr.mxu0 0.0
        %541 = vmatpush1.xpose.msra.mxu0 0.0
        %542 = vmatprep.subr.mxu0 0.0
        %543 = vmatpush1.xpose.msra.mxu0 0.0
        %544 = vmatprep.subr.mxu0 0.0
        %545 = vmatpush1.xpose.msra.mxu0 0.0
        %546 = vmatprep.subr.mxu0 0.0
        %547 = vmatpush1.xpose.msra.mxu0 0.0
        %548 = vmatprep.subr.mxu0 0.0
        %549 = vmatpush1.xpose.msra.mxu0 0.0
        %550 = vmatprep.subr.mxu0 0.0
        %551 = vmatpush1.xpose.msra.mxu0 0.0
        %552 = vmatprep.subr.mxu0 0.0
        %553 = vmatpush1.xpose.msra.mxu0 0.0
        %554 = vmatprep.subr.mxu0 0.0
        %555 = vmatpush1.xpose.msra.mxu0 0.0
        %556 = vmatprep.subr.mxu0 0.0
        %557 = vmatpush1.xpose.msra.mxu0 0.0
        %558 = vmatprep.subr.mxu0 0.0
        %559 = vmatpush1.xpose.msra.mxu0 0.0
        %560 = vmatprep.subr.mxu0 0.0
        %561 = vmatpush1.xpose.msra.mxu0 0.0
        %562 = vmatprep.subr.mxu0 0.0
        %563 = vmatpush1.xpose.msra.mxu0 0.0
        %564 = vmatprep.subr.mxu0 0.0
        %565 = vmatpush1.xpose.msra.mxu0 0.0
        %566 = vmatprep.subr.mxu0 0.0
        %567 = vmatpush1.xpose.msra.mxu0 0.0
        %568 = vmatprep.subr.mxu0 0.0
        %569 = vmatpush1.xpose.msra.mxu0 0.0
        %570 = vmatprep.subr.mxu0 0.0
        %571 = vmatpush1.xpose.msra.mxu0 %v538
        %572 = vmatprep.subr.mxu0 0.0
        %573 = vmatpush2.xpose.msra.mxu0 0.0
        %574 = vmatprep.subr.mxu0 0.0
        %575 = vmatpush2.xpose.msra.mxu0 0.0
        %576 = vmatprep.subr.mxu0 0.0
        %577 = vmatpush2.xpose.msra.mxu0 0.0
        %578 = vmatprep.subr.mxu0 0.0
        %579 = vmatpush2.xpose.msra.mxu0 0.0
        %580 = vmatprep.subr.mxu0 0.0
        %581 = vmatpush2.xpose.msra.mxu0 0.0
        %582 = vmatprep.subr.mxu0 0.0
        %583 = vmatpush2.xpose.msra.mxu0 0.0
        %584 = vmatprep.subr.mxu0 0.0
        %585 = vmatpush2.xpose.msra.mxu0 0.0
        %586 = vmatprep.subr.mxu0 0.0
        %587 = vmatpush2.xpose.msra.mxu0 0.0
        %588 = vmatprep.subr.mxu0 0.0
        %589 = vmatpush2.xpose.msra.mxu0 0.0
        %590 = vmatprep.subr.mxu0 0.0
        %591 = vmatpush2.xpose.msra.mxu0 0.0
        %592 = vmatprep.subr.mxu0 0.0
        %593 = vmatpush2.xpose.msra.mxu0 0.0
        %594 = vmatprep.subr.mxu0 0.0
        %595 = vmatpush2.xpose.msra.mxu0 0.0
        %596 = vmatprep.subr.mxu0 0.0
        %597 = vmatpush2.xpose.msra.mxu0 0.0
        %598 = vmatprep.subr.mxu0 0.0
        %599 = vmatpush2.xpose.msra.mxu0 0.0
        %600 = vmatprep.subr.mxu0 0.0
        %601 = vmatpush2.xpose.msra.mxu0 0.0
        %602 = vmatprep.subr.mxu0 0.0
        %603 = vmatpush2.xpose.msra.mxu0 0.0
        %604 = vmatprep.mubr.f32.mxu0 0.0
        %605 = vmatmul.mubr.f32.gmra.mxu0 %v536
        %v606 = vpop.f32.mrf.mxu0
        %v607 = vadd.f32 0.0, %v606
        %v608 = vpop.f32.mrf.mxu0
        %609 = vdwg.mxu0
        %610 = vrot.lane.b32.xlu0 %v380, 96
        %v611 = vpop.permute.xlu0 %610
        %v612 = vsel %vm383, %v380, 0
        %v614 = vsel %vm383, %v611, 0
        %616 = vmatprep.subr.mxu0 0.0
        %617 = vmatpush1.xpose.msra.mxu0 0.0
        %618 = vmatprep.subr.mxu0 0.0
        %619 = vmatpush1.xpose.msra.mxu0 0.0
        %620 = vmatprep.subr.mxu0 0.0
        %621 = vmatpush1.xpose.msra.mxu0 0.0
        %622 = vmatprep.subr.mxu0 0.0
        %623 = vmatpush1.xpose.msra.mxu0 0.0
        %624 = vmatprep.subr.mxu0 0.0
        %625 = vmatpush1.xpose.msra.mxu0 0.0
        %626 = vmatprep.subr.mxu0 0.0
        %627 = vmatpush1.xpose.msra.mxu0 0.0
        %628 = vmatprep.subr.mxu0 0.0
        %629 = vmatpush1.xpose.msra.mxu0 0.0
        %630 = vmatprep.subr.mxu0 0.0
        %631 = vmatpush1.xpose.msra.mxu0 0.0
        %632 = vmatprep.subr.mxu0 0.0
        %633 = vmatpush1.xpose.msra.mxu0 0.0
        %634 = vmatprep.subr.mxu0 0.0
        %635 = vmatpush1.xpose.msra.mxu0 0.0
        %636 = vmatprep.subr.mxu0 0.0
        %637 = vmatpush1.xpose.msra.mxu0 0.0
        %638 = vmatprep.subr.mxu0 0.0
        %639 = vmatpush1.xpose.msra.mxu0 0.0
        %640 = vmatprep.subr.mxu0 0.0
        %641 = vmatpush1.xpose.msra.mxu0 0.0
        %642 = vmatprep.subr.mxu0 0.0
        %643 = vmatpush1.xpose.msra.mxu0 0.0
        %644 = vmatprep.subr.mxu0 0.0
        %645 = vmatpush1.xpose.msra.mxu0 0.0
        %646 = vmatprep.subr.mxu0 0.0
        %647 = vmatpush1.xpose.msra.mxu0 %v614
        %648 = vmatprep.subr.mxu0 0.0
        %649 = vmatpush2.xpose.msra.mxu0 0.0
        %650 = vmatprep.subr.mxu0 0.0
        %651 = vmatpush2.xpose.msra.mxu0 0.0
        %652 = vmatprep.subr.mxu0 0.0
        %653 = vmatpush2.xpose.msra.mxu0 0.0
        %654 = vmatprep.subr.mxu0 0.0
        %655 = vmatpush2.xpose.msra.mxu0 0.0
        %656 = vmatprep.subr.mxu0 0.0
        %657 = vmatpush2.xpose.msra.mxu0 0.0
        %658 = vmatprep.subr.mxu0 0.0
        %659 = vmatpush2.xpose.msra.mxu0 0.0
        %660 = vmatprep.subr.mxu0 0.0
        %661 = vmatpush2.xpose.msra.mxu0 0.0
        %662 = vmatprep.subr.mxu0 0.0
        %663 = vmatpush2.xpose.msra.mxu0 0.0
        %664 = vmatprep.subr.mxu0 0.0
        %665 = vmatpush2.xpose.msra.mxu0 0.0
        %666 = vmatprep.subr.mxu0 0.0
        %667 = vmatpush2.xpose.msra.mxu0 0.0
        %668 = vmatprep.subr.mxu0 0.0
        %669 = vmatpush2.xpose.msra.mxu0 0.0
        %670 = vmatprep.subr.mxu0 0.0
        %671 = vmatpush2.xpose.msra.mxu0 0.0
        %672 = vmatprep.subr.mxu0 0.0
        %673 = vmatpush2.xpose.msra.mxu0 0.0
        %674 = vmatprep.subr.mxu0 0.0
        %675 = vmatpush2.xpose.msra.mxu0 0.0
        %676 = vmatprep.subr.mxu0 0.0
        %677 = vmatpush2.xpose.msra.mxu0 0.0
        %678 = vmatprep.subr.mxu0 0.0
        %679 = vmatpush2.xpose.msra.mxu0 0.0
        %680 = vmatprep.mubr.f32.mxu0 0.0
        %681 = vmatmul.mubr.f32.gmra.mxu0 %v612
        %v682 = vpop.f32.mrf.mxu0
        %v683 = vadd.f32 0.0, %v682
        %v684 = vpop.f32.mrf.mxu0
        %685 = vdwg.mxu0
        %v686 = vmul.f32 %v455, 0.35355338
        %v687 = vmul.f32 %v531, 0.35355338
        %v688 = vmul.f32 %v607, 0.35355338
        %v689 = vmul.f32 %v683, 0.35355338
        %v690 = vsel %vm383, %v686, -inf
        %691 = vmax.xlane.f32.xlu0 %v690
        %v692 = vpop.xlane.xlu0 %691
        %v693 = vsel %vm383, %v687, -inf
        %694 = vmax.xlane.f32.xlu0 %v693
        %v695 = vpop.xlane.xlu0 %694
        %v696 = vsel %vm383, %v688, -inf
        %697 = vmax.xlane.f32.xlu0 %v696
        %v698 = vpop.xlane.xlu0 %697
        %v699 = vsel %vm383, %v689, -inf
        %700 = vmax.xlane.f32.xlu0 %v699
        %v701 = vpop.xlane.xlu0 %700
        %v702 = vsub.f32 %v686, %v692
        %v703 = vsub.f32 %v687, %v695
        %v704 = vsub.f32 %v688, %v698
        %v705 = vsub.f32 %v689, %v701
        %v706 = vmul.f32 %v702, 1.442695
        %v707 = vpow.pop %v706
        %v708 = vmul.f32 %v703, 1.442695
        %v709 = vpow.pop %v708
        %v710 = vmul.f32 %v704, 1.442695
        %v711 = vpow.pop %v710
        %v712 = vmul.f32 %v705, 1.442695
        %v713 = vpow.pop %v712
        %v714 = vsel %vm383, %v707, 0.0
        %715 = vadd.xlane.f32.xlu0 %v714
        %v716 = vpop.xlane.xlu0 %715
        %v717 = vsel %vm383, %v709, 0.0
        %718 = vadd.xlane.f32.xlu0 %v717
        %v719 = vpop.xlane.xlu0 %718
        %v720 = vsel %vm383, %v711, 0.0
        %721 = vadd.xlane.f32.xlu0 %v720
        %v722 = vpop.xlane.xlu0 %721
        %v723 = vsel %vm383, %v713, 0.0
        %724 = vadd.xlane.f32.xlu0 %v723
        %v725 = vpop.xlane.xlu0 %724
        %v726 = vrcp.pop %v716
        %v727 = vrcp.pop %v719
        %v728 = vrcp.pop %v722
        %v729 = vrcp.pop %v725
        %v730 = vmul.f32 %v707, %v726
        %v731 = vmul.f32 %v709, %v727
        %v732 = vmul.f32 %v711, %v728
        %v733 = vmul.f32 %v713, %v729
        %734 = vrot.lane.b32.xlu0 %v366, 64
        %v735 = vpop.permute.xlu0 %734
        %v738 = vsel %vm383, %v730, 0
        %740 = vmatprep.subr.mxu0 0.0
        %741 = vmatpush1.msra.mxu0 0.0
        %742 = vmatprep.subr.mxu0 0.0
        %743 = vmatpush1.msra.mxu0 0.0
        %744 = vmatprep.subr.mxu0 0.0
        %745 = vmatpush1.msra.mxu0 0.0
        %746 = vmatprep.subr.mxu0 0.0
        %747 = vmatpush1.msra.mxu0 0.0
        %748 = vmatprep.subr.mxu0 0.0
        %749 = vmatpush1.msra.mxu0 0.0
        %750 = vmatprep.subr.mxu0 0.0
        %751 = vmatpush1.msra.mxu0 0.0
        %752 = vmatprep.subr.mxu0 0.0
        %753 = vmatpush1.msra.mxu0 0.0
        %754 = vmatprep.subr.mxu0 0.0
        %755 = vmatpush1.msra.mxu0 0.0
        %756 = vmatprep.subr.mxu0 0.0
        %757 = vmatpush1.msra.mxu0 0.0
        %758 = vmatprep.subr.mxu0 0.0
        %759 = vmatpush1.msra.mxu0 0.0
        %760 = vmatprep.subr.mxu0 0.0
        %761 = vmatpush1.msra.mxu0 0.0
        %762 = vmatprep.subr.mxu0 0.0
        %763 = vmatpush1.msra.mxu0 0.0
        %764 = vmatprep.subr.mxu0 0.0
        %765 = vmatpush1.msra.mxu0 0.0
        %766 = vmatprep.subr.mxu0 0.0
        %767 = vmatpush1.msra.mxu0 0.0
        %768 = vmatprep.subr.mxu0 0.0
        %769 = vmatpush1.msra.mxu0 0.0
        %770 = vmatprep.subr.mxu0 0.0
        %771 = vmatpush1.msra.mxu0 %v735
        %772 = vmatprep.subr.mxu0 0.0
        %773 = vmatpush2.msra.mxu0 0.0
        %774 = vmatprep.subr.mxu0 0.0
        %775 = vmatpush2.msra.mxu0 0.0
        %776 = vmatprep.subr.mxu0 0.0
        %777 = vmatpush2.msra.mxu0 0.0
        %778 = vmatprep.subr.mxu0 0.0
        %779 = vmatpush2.msra.mxu0 0.0
        %780 = vmatprep.subr.mxu0 0.0
        %781 = vmatpush2.msra.mxu0 0.0
        %782 = vmatprep.subr.mxu0 0.0
        %783 = vmatpush2.msra.mxu0 0.0
        %784 = vmatprep.subr.mxu0 0.0
        %785 = vmatpush2.msra.mxu0 0.0
        %786 = vmatprep.subr.mxu0 0.0
        %787 = vmatpush2.msra.mxu0 0.0
        %788 = vmatprep.subr.mxu0 0.0
        %789 = vmatpush2.msra.mxu0 0.0
        %790 = vmatprep.subr.mxu0 0.0
        %791 = vmatpush2.msra.mxu0 0.0
        %792 = vmatprep.subr.mxu0 0.0
        %793 = vmatpush2.msra.mxu0 0.0
        %794 = vmatprep.subr.mxu0 0.0
        %795 = vmatpush2.msra.mxu0 0.0
        %796 = vmatprep.subr.mxu0 0.0
        %797 = vmatpush2.msra.mxu0 0.0
        %798 = vmatprep.subr.mxu0 0.0
        %799 = vmatpush2.msra.mxu0 0.0
        %800 = vmatprep.subr.mxu0 0.0
        %801 = vmatpush2.msra.mxu0 0.0
        %802 = vmatprep.subr.mxu0 0.0
        %803 = vmatpush2.msra.mxu0 0.0
        %804 = vmatprep.mubr.f32.mxu0 0.0
        %805 = vmatmul.mubr.f32.gmra.mxu0 %v738
        %v806 = vpop.f32.mrf.mxu0
        %v807 = vadd.f32 0.0, %v806
        %v808 = vpop.f32.mrf.mxu0
        %809 = vdwg.mxu0
        %810 = vrot.lane.b32.xlu0 %v376, 64
        %v811 = vpop.permute.xlu0 %810
        %v814 = vsel %vm383, %v731, 0
        %816 = vmatprep.subr.mxu0 0.0
        %817 = vmatpush1.msra.mxu0 0.0
        %818 = vmatprep.subr.mxu0 0.0
        %819 = vmatpush1.msra.mxu0 0.0
        %820 = vmatprep.subr.mxu0 0.0
        %821 = vmatpush1.msra.mxu0 0.0
        %822 = vmatprep.subr.mxu0 0.0
        %823 = vmatpush1.msra.mxu0 0.0
        %824 = vmatprep.subr.mxu0 0.0
        %825 = vmatpush1.msra.mxu0 0.0
        %826 = vmatprep.subr.mxu0 0.0
        %827 = vmatpush1.msra.mxu0 0.0
        %828 = vmatprep.subr.mxu0 0.0
        %829 = vmatpush1.msra.mxu0 0.0
        %830 = vmatprep.subr.mxu0 0.0
        %831 = vmatpush1.msra.mxu0 0.0
        %832 = vmatprep.subr.mxu0 0.0
        %833 = vmatpush1.msra.mxu0 0.0
        %834 = vmatprep.subr.mxu0 0.0
        %835 = vmatpush1.msra.mxu0 0.0
        %836 = vmatprep.subr.mxu0 0.0
        %837 = vmatpush1.msra.mxu0 0.0
        %838 = vmatprep.subr.mxu0 0.0
        %839 = vmatpush1.msra.mxu0 0.0
        %840 = vmatprep.subr.mxu0 0.0
        %841 = vmatpush1.msra.mxu0 0.0
        %842 = vmatprep.subr.mxu0 0.0
        %843 = vmatpush1.msra.mxu0 0.0
        %844 = vmatprep.subr.mxu0 0.0
        %845 = vmatpush1.msra.mxu0 0.0
        %846 = vmatprep.subr.mxu0 0.0
        %847 = vmatpush1.msra.mxu0 %v811
        %848 = vmatprep.subr.mxu0 0.0
        %849 = vmatpush2.msra.mxu0 0.0
        %850 = vmatprep.subr.mxu0 0.0
        %851 = vmatpush2.msra.mxu0 0.0
        %852 = vmatprep.subr.mxu0 0.0
        %853 = vmatpush2.msra.mxu0 0.0
        %854 = vmatprep.subr.mxu0 0.0
        %855 = vmatpush2.msra.mxu0 0.0
        %856 = vmatprep.subr.mxu0 0.0
        %857 = vmatpush2.msra.mxu0 0.0
        %858 = vmatprep.subr.mxu0 0.0
        %859 = vmatpush2.msra.mxu0 0.0
        %860 = vmatprep.subr.mxu0 0.0
        %861 = vmatpush2.msra.mxu0 0.0
        %862 = vmatprep.subr.mxu0 0.0
        %863 = vmatpush2.msra.mxu0 0.0
        %864 = vmatprep.subr.mxu0 0.0
        %865 = vmatpush2.msra.mxu0 0.0
        %866 = vmatprep.subr.mxu0 0.0
        %867 = vmatpush2.msra.mxu0 0.0
        %868 = vmatprep.subr.mxu0 0.0
        %869 = vmatpush2.msra.mxu0 0.0
        %870 = vmatprep.subr.mxu0 0.0
        %871 = vmatpush2.msra.mxu0 0.0
        %872 = vmatprep.subr.mxu0 0.0
        %873 = vmatpush2.msra.mxu0 0.0
        %874 = vmatprep.subr.mxu0 0.0
        %875 = vmatpush2.msra.mxu0 0.0
        %876 = vmatprep.subr.mxu0 0.0
        %877 = vmatpush2.msra.mxu0 0.0
        %878 = vmatprep.subr.mxu0 0.0
        %879 = vmatpush2.msra.mxu0 0.0
        %880 = vmatprep.mubr.f32.mxu0 0.0
        %881 = vmatmul.mubr.f32.gmra.mxu0 %v814
        %v882 = vpop.f32.mrf.mxu0
        %v883 = vadd.f32 0.0, %v882
        %v884 = vpop.f32.mrf.mxu0
        %885 = vdwg.mxu0
        %886 = vrot.lane.b32.xlu0 %v378, 64
        %v887 = vpop.permute.xlu0 %886
        %v890 = vsel %vm383, %v732, 0
        %892 = vmatprep.subr.mxu0 0.0
        %893 = vmatpush1.msra.mxu0 0.0
        %894 = vmatprep.subr.mxu0 0.0
        %895 = vmatpush1.msra.mxu0 0.0
        %896 = vmatprep.subr.mxu0 0.0
        %897 = vmatpush1.msra.mxu0 0.0
        %898 = vmatprep.subr.mxu0 0.0
        %899 = vmatpush1.msra.mxu0 0.0
        %900 = vmatprep.subr.mxu0 0.0
        %901 = vmatpush1.msra.mxu0 0.0
        %902 = vmatprep.subr.mxu0 0.0
        %903 = vmatpush1.msra.mxu0 0.0
        %904 = vmatprep.subr.mxu0 0.0
        %905 = vmatpush1.msra.mxu0 0.0
        %906 = vmatprep.subr.mxu0 0.0
        %907 = vmatpush1.msra.mxu0 0.0
        %908 = vmatprep.subr.mxu0 0.0
        %909 = vmatpush1.msra.mxu0 0.0
        %910 = vmatprep.subr.mxu0 0.0
        %911 = vmatpush1.msra.mxu0 0.0
        %912 = vmatprep.subr.mxu0 0.0
        %913 = vmatpush1.msra.mxu0 0.0
        %914 = vmatprep.subr.mxu0 0.0
        %915 = vmatpush1.msra.mxu0 0.0
        %916 = vmatprep.subr.mxu0 0.0
        %917 = vmatpush1.msra.mxu0 0.0
        %918 = vmatprep.subr.mxu0 0.0
        %919 = vmatpush1.msra.mxu0 0.0
        %920 = vmatprep.subr.mxu0 0.0
        %921 = vmatpush1.msra.mxu0 0.0
        %922 = vmatprep.subr.mxu0 0.0
        %923 = vmatpush1.msra.mxu0 %v887
        %924 = vmatprep.subr.mxu0 0.0
        %925 = vmatpush2.msra.mxu0 0.0
        %926 = vmatprep.subr.mxu0 0.0
        %927 = vmatpush2.msra.mxu0 0.0
        %928 = vmatprep.subr.mxu0 0.0
        %929 = vmatpush2.msra.mxu0 0.0
        %930 = vmatprep.subr.mxu0 0.0
        %931 = vmatpush2.msra.mxu0 0.0
        %932 = vmatprep.subr.mxu0 0.0
        %933 = vmatpush2.msra.mxu0 0.0
        %934 = vmatprep.subr.mxu0 0.0
        %935 = vmatpush2.msra.mxu0 0.0
        %936 = vmatprep.subr.mxu0 0.0
        %937 = vmatpush2.msra.mxu0 0.0
        %938 = vmatprep.subr.mxu0 0.0
        %939 = vmatpush2.msra.mxu0 0.0
        %940 = vmatprep.subr.mxu0 0.0
        %941 = vmatpush2.msra.mxu0 0.0
        %942 = vmatprep.subr.mxu0 0.0
        %943 = vmatpush2.msra.mxu0 0.0
        %944 = vmatprep.subr.mxu0 0.0
        %945 = vmatpush2.msra.mxu0 0.0
        %946 = vmatprep.subr.mxu0 0.0
        %947 = vmatpush2.msra.mxu0 0.0
        %948 = vmatprep.subr.mxu0 0.0
        %949 = vmatpush2.msra.mxu0 0.0
        %950 = vmatprep.subr.mxu0 0.0
        %951 = vmatpush2.msra.mxu0 0.0
        %952 = vmatprep.subr.mxu0 0.0
        %953 = vmatpush2.msra.mxu0 0.0
        %954 = vmatprep.subr.mxu0 0.0
        %955 = vmatpush2.msra.mxu0 0.0
        %956 = vmatprep.mubr.f32.mxu0 0.0
        %957 = vmatmul.mubr.f32.gmra.mxu0 %v890
        %v958 = vpop.f32.mrf.mxu0
        %v959 = vadd.f32 0.0, %v958
        %v960 = vpop.f32.mrf.mxu0
        %961 = vdwg.mxu0
        %962 = vrot.lane.b32.xlu0 %v380, 64
        %v963 = vpop.permute.xlu0 %962
        %v966 = vsel %vm383, %v733, 0
        %968 = vmatprep.subr.mxu0 0.0
        %969 = vmatpush1.msra.mxu0 0.0
        %970 = vmatprep.subr.mxu0 0.0
        %971 = vmatpush1.msra.mxu0 0.0
        %972 = vmatprep.subr.mxu0 0.0
        %973 = vmatpush1.msra.mxu0 0.0
        %974 = vmatprep.subr.mxu0 0.0
        %975 = vmatpush1.msra.mxu0 0.0
        %976 = vmatprep.subr.mxu0 0.0
        %977 = vmatpush1.msra.mxu0 0.0
        %978 = vmatprep.subr.mxu0 0.0
        %979 = vmatpush1.msra.mxu0 0.0
        %980 = vmatprep.subr.mxu0 0.0
        %981 = vmatpush1.msra.mxu0 0.0
        %982 = vmatprep.subr.mxu0 0.0
        %983 = vmatpush1.msra.mxu0 0.0
        %984 = vmatprep.subr.mxu0 0.0
        %985 = vmatpush1.msra.mxu0 0.0
        %986 = vmatprep.subr.mxu0 0.0
        %987 = vmatpush1.msra.mxu0 0.0
        %988 = vmatprep.subr.mxu0 0.0
        %989 = vmatpush1.msra.mxu0 0.0
        %990 = vmatprep.subr.mxu0 0.0
        %991 = vmatpush1.msra.mxu0 0.0
        %992 = vmatprep.subr.mxu0 0.0
        %993 = vmatpush1.msra.mxu0 0.0
        %994 = vmatprep.subr.mxu0 0.0
        %995 = vmatpush1.msra.mxu0 0.0
        %996 = vmatprep.subr.mxu0 0.0
        %997 = vmatpush1.msra.mxu0 0.0
        %998 = vmatprep.subr.mxu0 0.0
        %999 = vmatpush1.msra.mxu0 %v963
        %1000 = vmatprep.subr.mxu0 0.0
        %1001 = vmatpush2.msra.mxu0 0.0
        %1002 = vmatprep.subr.mxu0 0.0
        %1003 = vmatpush2.msra.mxu0 0.0
        %1004 = vmatprep.subr.mxu0 0.0
        %1005 = vmatpush2.msra.mxu0 0.0
        %1006 = vmatprep.subr.mxu0 0.0
        %1007 = vmatpush2.msra.mxu0 0.0
        %1008 = vmatprep.subr.mxu0 0.0
        %1009 = vmatpush2.msra.mxu0 0.0
        %1010 = vmatprep.subr.mxu0 0.0
        %1011 = vmatpush2.msra.mxu0 0.0
        %1012 = vmatprep.subr.mxu0 0.0
        %1013 = vmatpush2.msra.mxu0 0.0
        %1014 = vmatprep.subr.mxu0 0.0
        %1015 = vmatpush2.msra.mxu0 0.0
        %1016 = vmatprep.subr.mxu0 0.0
        %1017 = vmatpush2.msra.mxu0 0.0
        %1018 = vmatprep.subr.mxu0 0.0
        %1019 = vmatpush2.msra.mxu0 0.0
        %1020 = vmatprep.subr.mxu0 0.0
        %1021 = vmatpush2.msra.mxu0 0.0
        %1022 = vmatprep.subr.mxu0 0.0
        %1023 = vmatpush2.msra.mxu0 0.0
        %1024 = vmatprep.subr.mxu0 0.0
        %1025 = vmatpush2.msra.mxu0 0.0
        %1026 = vmatprep.subr.mxu0 0.0
        %1027 = vmatpush2.msra.mxu0 0.0
        %1028 = vmatprep.subr.mxu0 0.0
        %1029 = vmatpush2.msra.mxu0 0.0
        %1030 = vmatprep.subr.mxu0 0.0
        %1031 = vmatpush2.msra.mxu0 0.0
        %1032 = vmatprep.mubr.f32.mxu0 0.0
        %1033 = vmatmul.mubr.f32.gmra.mxu0 %v966
        %v1034 = vpop.f32.mrf.mxu0
        %v1035 = vadd.f32 0.0, %v1034
        %v1036 = vpop.f32.mrf.mxu0
        %1037 = vdwg.mxu0
        %1039 = vrot.lane.b32.xlu0 %v883, 8
        %v1040 = vpop.permute.xlu0 %1039
        %1043 = vrot.lane.b32.xlu0 %v959, 16
        %v1044 = vpop.permute.xlu0 %1043
        %1047 = vrot.lane.b32.xlu0 %v1035, 24
        %v1048 = vpop.permute.xlu0 %1047
        %v1050 = vsel %vm383, %v807, %v1040
        %vm1051 = vcmask 130048
        %v1052 = vsel %vm1051, %v1050, %v1044
        %vm1053 = vcmask 195584
        %v1054 = vsel %vm1053, %v1052, %v1048
        %1056 = vrot.lane.b32.xlu0 %v371, 120
        %v1057 = vpop.permute.xlu0 %1056
        %1058 = vrot.lane.b32.xlu0 %v371, 112
        %v1059 = vpop.permute.xlu0 %1058
        %1060 = vrot.lane.b32.xlu0 %v371, 104
        %v1061 = vpop.permute.xlu0 %1060
        %1062 = vrot.lane.b32.xlu0 %v371, 96
        %v1063 = vpop.permute.xlu0 %1062
        %v1064 = vsel %vm383, %v371, 0
        %v1066 = vsel %vm383, %v1063, 0
        %1068 = vmatprep.subr.mxu0 0.0
        %1069 = vmatpush1.xpose.msra.mxu0 0.0
        %1070 = vmatprep.subr.mxu0 0.0
        %1071 = vmatpush1.xpose.msra.mxu0 0.0
        %1072 = vmatprep.subr.mxu0 0.0
        %1073 = vmatpush1.xpose.msra.mxu0 0.0
        %1074 = vmatprep.subr.mxu0 0.0
        %1075 = vmatpush1.xpose.msra.mxu0 0.0
        %1076 = vmatprep.subr.mxu0 0.0
        %1077 = vmatpush1.xpose.msra.mxu0 0.0
        %1078 = vmatprep.subr.mxu0 0.0
        %1079 = vmatpush1.xpose.msra.mxu0 0.0
        %1080 = vmatprep.subr.mxu0 0.0
        %1081 = vmatpush1.xpose.msra.mxu0 0.0
        %1082 = vmatprep.subr.mxu0 0.0
        %1083 = vmatpush1.xpose.msra.mxu0 0.0
        %1084 = vmatprep.subr.mxu0 0.0
        %1085 = vmatpush1.xpose.msra.mxu0 0.0
        %1086 = vmatprep.subr.mxu0 0.0
        %1087 = vmatpush1.xpose.msra.mxu0 0.0
        %1088 = vmatprep.subr.mxu0 0.0
        %1089 = vmatpush1.xpose.msra.mxu0 0.0
        %1090 = vmatprep.subr.mxu0 0.0
        %1091 = vmatpush1.xpose.msra.mxu0 0.0
        %1092 = vmatprep.subr.mxu0 0.0
        %1093 = vmatpush1.xpose.msra.mxu0 0.0
        %1094 = vmatprep.subr.mxu0 0.0
        %1095 = vmatpush1.xpose.msra.mxu0 0.0
        %1096 = vmatprep.subr.mxu0 0.0
        %1097 = vmatpush1.xpose.msra.mxu0 0.0
        %1098 = vmatprep.subr.mxu0 0.0
        %1099 = vmatpush1.xpose.msra.mxu0 %v1066
        %1100 = vmatprep.subr.mxu0 0.0
        %1101 = vmatpush2.xpose.msra.mxu0 0.0
        %1102 = vmatprep.subr.mxu0 0.0
        %1103 = vmatpush2.xpose.msra.mxu0 0.0
        %1104 = vmatprep.subr.mxu0 0.0
        %1105 = vmatpush2.xpose.msra.mxu0 0.0
        %1106 = vmatprep.subr.mxu0 0.0
        %1107 = vmatpush2.xpose.msra.mxu0 0.0
        %1108 = vmatprep.subr.mxu0 0.0
        %1109 = vmatpush2.xpose.msra.mxu0 0.0
        %1110 = vmatprep.subr.mxu0 0.0
        %1111 = vmatpush2.xpose.msra.mxu0 0.0
        %1112 = vmatprep.subr.mxu0 0.0
        %1113 = vmatpush2.xpose.msra.mxu0 0.0
        %1114 = vmatprep.subr.mxu0 0.0
        %1115 = vmatpush2.xpose.msra.mxu0 0.0
        %1116 = vmatprep.subr.mxu0 0.0
        %1117 = vmatpush2.xpose.msra.mxu0 0.0
        %1118 = vmatprep.subr.mxu0 0.0
        %1119 = vmatpush2.xpose.msra.mxu0 0.0
        %1120 = vmatprep.subr.mxu0 0.0
        %1121 = vmatpush2.xpose.msra.mxu0 0.0
        %1122 = vmatprep.subr.mxu0 0.0
        %1123 = vmatpush2.xpose.msra.mxu0 0.0
        %1124 = vmatprep.subr.mxu0 0.0
        %1125 = vmatpush2.xpose.msra.mxu0 0.0
        %1126 = vmatprep.subr.mxu0 0.0
        %1127 = vmatpush2.xpose.msra.mxu0 0.0
        %1128 = vmatprep.subr.mxu0 0.0
        %1129 = vmatpush2.xpose.msra.mxu0 0.0
        %1130 = vmatprep.subr.mxu0 0.0
        %1131 = vmatpush2.xpose.msra.mxu0 0.0
        %1132 = vmatprep.mubr.f32.mxu0 0.0
        %1133 = vmatmul.mubr.f32.gmra.mxu0 %v1064
        %v1134 = vpop.f32.mrf.mxu0
        %v1135 = vadd.f32 0.0, %v1134
        %v1136 = vpop.f32.mrf.mxu0
        %1137 = vdwg.mxu0
        %1138 = vrot.lane.b32.xlu0 %v1057, 96
        %v1139 = vpop.permute.xlu0 %1138
        %v1140 = vsel %vm383, %v1057, 0
        %v1142 = vsel %vm383, %v1139, 0
        %1144 = vmatprep.subr.mxu0 0.0
        %1145 = vmatpush1.xpose.msra.mxu0 0.0
        %1146 = vmatprep.subr.mxu0 0.0
        %1147 = vmatpush1.xpose.msra.mxu0 0.0
        %1148 = vmatprep.subr.mxu0 0.0
        %1149 = vmatpush1.xpose.msra.mxu0 0.0
        %1150 = vmatprep.subr.mxu0 0.0
        %1151 = vmatpush1.xpose.msra.mxu0 0.0
        %1152 = vmatprep.subr.mxu0 0.0
        %1153 = vmatpush1.xpose.msra.mxu0 0.0
        %1154 = vmatprep.subr.mxu0 0.0
        %1155 = vmatpush1.xpose.msra.mxu0 0.0
        %1156 = vmatprep.subr.mxu0 0.0
        %1157 = vmatpush1.xpose.msra.mxu0 0.0
        %1158 = vmatprep.subr.mxu0 0.0
        %1159 = vmatpush1.xpose.msra.mxu0 0.0
        %1160 = vmatprep.subr.mxu0 0.0
        %1161 = vmatpush1.xpose.msra.mxu0 0.0
        %1162 = vmatprep.subr.mxu0 0.0
        %1163 = vmatpush1.xpose.msra.mxu0 0.0
        %1164 = vmatprep.subr.mxu0 0.0
        %1165 = vmatpush1.xpose.msra.mxu0 0.0
        %1166 = vmatprep.subr.mxu0 0.0
        %1167 = vmatpush1.xpose.msra.mxu0 0.0
        %1168 = vmatprep.subr.mxu0 0.0
        %1169 = vmatpush1.xpose.msra.mxu0 0.0
        %1170 = vmatprep.subr.mxu0 0.0
        %1171 = vmatpush1.xpose.msra.mxu0 0.0
        %1172 = vmatprep.subr.mxu0 0.0
        %1173 = vmatpush1.xpose.msra.mxu0 0.0
        %1174 = vmatprep.subr.mxu0 0.0
        %1175 = vmatpush1.xpose.msra.mxu0 %v1142
        %1176 = vmatprep.subr.mxu0 0.0
        %1177 = vmatpush2.xpose.msra.mxu0 0.0
        %1178 = vmatprep.subr.mxu0 0.0
        %1179 = vmatpush2.xpose.msra.mxu0 0.0
        %1180 = vmatprep.subr.mxu0 0.0
        %1181 = vmatpush2.xpose.msra.mxu0 0.0
        %1182 = vmatprep.subr.mxu0 0.0
        %1183 = vmatpush2.xpose.msra.mxu0 0.0
        %1184 = vmatprep.subr.mxu0 0.0
        %1185 = vmatpush2.xpose.msra.mxu0 0.0
        %1186 = vmatprep.subr.mxu0 0.0
        %1187 = vmatpush2.xpose.msra.mxu0 0.0
        %1188 = vmatprep.subr.mxu0 0.0
        %1189 = vmatpush2.xpose.msra.mxu0 0.0
        %1190 = vmatprep.subr.mxu0 0.0
        %1191 = vmatpush2.xpose.msra.mxu0 0.0
        %1192 = vmatprep.subr.mxu0 0.0
        %1193 = vmatpush2.xpose.msra.mxu0 0.0
        %1194 = vmatprep.subr.mxu0 0.0
        %1195 = vmatpush2.xpose.msra.mxu0 0.0
        %1196 = vmatprep.subr.mxu0 0.0
        %1197 = vmatpush2.xpose.msra.mxu0 0.0
        %1198 = vmatprep.subr.mxu0 0.0
        %1199 = vmatpush2.xpose.msra.mxu0 0.0
        %1200 = vmatprep.subr.mxu0 0.0
        %1201 = vmatpush2.xpose.msra.mxu0 0.0
        %1202 = vmatprep.subr.mxu0 0.0
        %1203 = vmatpush2.xpose.msra.mxu0 0.0
        %1204 = vmatprep.subr.mxu0 0.0
        %1205 = vmatpush2.xpose.msra.mxu0 0.0
        %1206 = vmatprep.subr.mxu0 0.0
        %1207 = vmatpush2.xpose.msra.mxu0 0.0
        %1208 = vmatprep.mubr.f32.mxu0 0.0
        %1209 = vmatmul.mubr.f32.gmra.mxu0 %v1140
        %v1210 = vpop.f32.mrf.mxu0
        %v1211 = vadd.f32 0.0, %v1210
        %v1212 = vpop.f32.mrf.mxu0
        %1213 = vdwg.mxu0
        %1214 = vrot.lane.b32.xlu0 %v1059, 96
        %v1215 = vpop.permute.xlu0 %1214
        %v1216 = vsel %vm383, %v1059, 0
        %v1218 = vsel %vm383, %v1215, 0
        %1220 = vmatprep.subr.mxu0 0.0
        %1221 = vmatpush1.xpose.msra.mxu0 0.0
        %1222 = vmatprep.subr.mxu0 0.0
        %1223 = vmatpush1.xpose.msra.mxu0 0.0
        %1224 = vmatprep.subr.mxu0 0.0
        %1225 = vmatpush1.xpose.msra.mxu0 0.0
        %1226 = vmatprep.subr.mxu0 0.0
        %1227 = vmatpush1.xpose.msra.mxu0 0.0
        %1228 = vmatprep.subr.mxu0 0.0
        %1229 = vmatpush1.xpose.msra.mxu0 0.0
        %1230 = vmatprep.subr.mxu0 0.0
        %1231 = vmatpush1.xpose.msra.mxu0 0.0
        %1232 = vmatprep.subr.mxu0 0.0
        %1233 = vmatpush1.xpose.msra.mxu0 0.0
        %1234 = vmatprep.subr.mxu0 0.0
        %1235 = vmatpush1.xpose.msra.mxu0 0.0
        %1236 = vmatprep.subr.mxu0 0.0
        %1237 = vmatpush1.xpose.msra.mxu0 0.0
        %1238 = vmatprep.subr.mxu0 0.0
        %1239 = vmatpush1.xpose.msra.mxu0 0.0
        %1240 = vmatprep.subr.mxu0 0.0
        %1241 = vmatpush1.xpose.msra.mxu0 0.0
        %1242 = vmatprep.subr.mxu0 0.0
        %1243 = vmatpush1.xpose.msra.mxu0 0.0
        %1244 = vmatprep.subr.mxu0 0.0
        %1245 = vmatpush1.xpose.msra.mxu0 0.0
        %1246 = vmatprep.subr.mxu0 0.0
        %1247 = vmatpush1.xpose.msra.mxu0 0.0
        %1248 = vmatprep.subr.mxu0 0.0
        %1249 = vmatpush1.xpose.msra.mxu0 0.0
        %1250 = vmatprep.subr.mxu0 0.0
        %1251 = vmatpush1.xpose.msra.mxu0 %v1218
        %1252 = vmatprep.subr.mxu0 0.0
        %1253 = vmatpush2.xpose.msra.mxu0 0.0
        %1254 = vmatprep.subr.mxu0 0.0
        %1255 = vmatpush2.xpose.msra.mxu0 0.0
        %1256 = vmatprep.subr.mxu0 0.0
        %1257 = vmatpush2.xpose.msra.mxu0 0.0
        %1258 = vmatprep.subr.mxu0 0.0
        %1259 = vmatpush2.xpose.msra.mxu0 0.0
        %1260 = vmatprep.subr.mxu0 0.0
        %1261 = vmatpush2.xpose.msra.mxu0 0.0
        %1262 = vmatprep.subr.mxu0 0.0
        %1263 = vmatpush2.xpose.msra.mxu0 0.0
        %1264 = vmatprep.subr.mxu0 0.0
        %1265 = vmatpush2.xpose.msra.mxu0 0.0
        %1266 = vmatprep.subr.mxu0 0.0
        %1267 = vmatpush2.xpose.msra.mxu0 0.0
        %1268 = vmatprep.subr.mxu0 0.0
        %1269 = vmatpush2.xpose.msra.mxu0 0.0
        %1270 = vmatprep.subr.mxu0 0.0
        %1271 = vmatpush2.xpose.msra.mxu0 0.0
        %1272 = vmatprep.subr.mxu0 0.0
        %1273 = vmatpush2.xpose.msra.mxu0 0.0
        %1274 = vmatprep.subr.mxu0 0.0
        %1275 = vmatpush2.xpose.msra.mxu0 0.0
        %1276 = vmatprep.subr.mxu0 0.0
        %1277 = vmatpush2.xpose.msra.mxu0 0.0
        %1278 = vmatprep.subr.mxu0 0.0
        %1279 = vmatpush2.xpose.msra.mxu0 0.0
        %1280 = vmatprep.subr.mxu0 0.0
        %1281 = vmatpush2.xpose.msra.mxu0 0.0
        %1282 = vmatprep.subr.mxu0 0.0
        %1283 = vmatpush2.xpose.msra.mxu0 0.0
        %1284 = vmatprep.mubr.f32.mxu0 0.0
        %1285 = vmatmul.mubr.f32.gmra.mxu0 %v1216
        %v1286 = vpop.f32.mrf.mxu0
        %v1287 = vadd.f32 0.0, %v1286
        %v1288 = vpop.f32.mrf.mxu0
        %1289 = vdwg.mxu0
        %1290 = vrot.lane.b32.xlu0 %v1061, 96
        %v1291 = vpop.permute.xlu0 %1290
        %v1292 = vsel %vm383, %v1061, 0
        %v1294 = vsel %vm383, %v1291, 0
        %1296 = vmatprep.subr.mxu0 0.0
        %1297 = vmatpush1.xpose.msra.mxu0 0.0
        %1298 = vmatprep.subr.mxu0 0.0
        %1299 = vmatpush1.xpose.msra.mxu0 0.0
        %1300 = vmatprep.subr.mxu0 0.0
        %1301 = vmatpush1.xpose.msra.mxu0 0.0
        %1302 = vmatprep.subr.mxu0 0.0
        %1303 = vmatpush1.xpose.msra.mxu0 0.0
        %1304 = vmatprep.subr.mxu0 0.0
        %1305 = vmatpush1.xpose.msra.mxu0 0.0
        %1306 = vmatprep.subr.mxu0 0.0
        %1307 = vmatpush1.xpose.msra.mxu0 0.0
        %1308 = vmatprep.subr.mxu0 0.0
        %1309 = vmatpush1.xpose.msra.mxu0 0.0
        %1310 = vmatprep.subr.mxu0 0.0
        %1311 = vmatpush1.xpose.msra.mxu0 0.0
        %1312 = vmatprep.subr.mxu0 0.0
        %1313 = vmatpush1.xpose.msra.mxu0 0.0
        %1314 = vmatprep.subr.mxu0 0.0
        %1315 = vmatpush1.xpose.msra.mxu0 0.0
        %1316 = vmatprep.subr.mxu0 0.0
        %1317 = vmatpush1.xpose.msra.mxu0 0.0
        %1318 = vmatprep.subr.mxu0 0.0
        %1319 = vmatpush1.xpose.msra.mxu0 0.0
        %1320 = vmatprep.subr.mxu0 0.0
        %1321 = vmatpush1.xpose.msra.mxu0 0.0
        %1322 = vmatprep.subr.mxu0 0.0
        %1323 = vmatpush1.xpose.msra.mxu0 0.0
        %1324 = vmatprep.subr.mxu0 0.0
        %1325 = vmatpush1.xpose.msra.mxu0 0.0
        %1326 = vmatprep.subr.mxu0 0.0
        %1327 = vmatpush1.xpose.msra.mxu0 %v1294
        %1328 = vmatprep.subr.mxu0 0.0
        %1329 = vmatpush2.xpose.msra.mxu0 0.0
        %1330 = vmatprep.subr.mxu0 0.0
        %1331 = vmatpush2.xpose.msra.mxu0 0.0
        %1332 = vmatprep.subr.mxu0 0.0
        %1333 = vmatpush2.xpose.msra.mxu0 0.0
        %1334 = vmatprep.subr.mxu0 0.0
        %1335 = vmatpush2.xpose.msra.mxu0 0.0
        %1336 = vmatprep.subr.mxu0 0.0
        %1337 = vmatpush2.xpose.msra.mxu0 0.0
        %1338 = vmatprep.subr.mxu0 0.0
        %1339 = vmatpush2.xpose.msra.mxu0 0.0
        %1340 = vmatprep.subr.mxu0 0.0
        %1341 = vmatpush2.xpose.msra.mxu0 0.0
        %1342 = vmatprep.subr.mxu0 0.0
        %1343 = vmatpush2.xpose.msra.mxu0 0.0
        %1344 = vmatprep.subr.mxu0 0.0
        %1345 = vmatpush2.xpose.msra.mxu0 0.0
        %1346 = vmatprep.subr.mxu0 0.0
        %1347 = vmatpush2.xpose.msra.mxu0 0.0
        %1348 = vmatprep.subr.mxu0 0.0
        %1349 = vmatpush2.xpose.msra.mxu0 0.0
        %1350 = vmatprep.subr.mxu0 0.0
        %1351 = vmatpush2.xpose.msra.mxu0 0.0
        %1352 = vmatprep.subr.mxu0 0.0
        %1353 = vmatpush2.xpose.msra.mxu0 0.0
        %1354 = vmatprep.subr.mxu0 0.0
        %1355 = vmatpush2.xpose.msra.mxu0 0.0
        %1356 = vmatprep.subr.mxu0 0.0
        %1357 = vmatpush2.xpose.msra.mxu0 0.0
        %1358 = vmatprep.subr.mxu0 0.0
        %1359 = vmatpush2.xpose.msra.mxu0 0.0
        %1360 = vmatprep.mubr.f32.mxu0 0.0
        %1361 = vmatmul.mubr.f32.gmra.mxu0 %v1292
        %v1362 = vpop.f32.mrf.mxu0
        %v1363 = vadd.f32 0.0, %v1362
        %v1364 = vpop.f32.mrf.mxu0
        %1365 = vdwg.mxu0
        %v1366 = vmul.f32 %v1135, 0.35355338
        %v1367 = vmul.f32 %v1211, 0.35355338
        %v1368 = vmul.f32 %v1287, 0.35355338
        %v1369 = vmul.f32 %v1363, 0.35355338
        %v1370 = vsel %vm383, %v1366, -inf
        %1371 = vmax.xlane.f32.xlu0 %v1370
        %v1372 = vpop.xlane.xlu0 %1371
        %v1373 = vsel %vm383, %v1367, -inf
        %1374 = vmax.xlane.f32.xlu0 %v1373
        %v1375 = vpop.xlane.xlu0 %1374
        %v1376 = vsel %vm383, %v1368, -inf
        %1377 = vmax.xlane.f32.xlu0 %v1376
        %v1378 = vpop.xlane.xlu0 %1377
        %v1379 = vsel %vm383, %v1369, -inf
        %1380 = vmax.xlane.f32.xlu0 %v1379
        %v1381 = vpop.xlane.xlu0 %1380
        %v1382 = vsub.f32 %v1366, %v1372
        %v1383 = vsub.f32 %v1367, %v1375
        %v1384 = vsub.f32 %v1368, %v1378
        %v1385 = vsub.f32 %v1369, %v1381
        %v1386 = vmul.f32 %v1382, 1.442695
        %v1387 = vpow.pop %v1386
        %v1388 = vmul.f32 %v1383, 1.442695
        %v1389 = vpow.pop %v1388
        %v1390 = vmul.f32 %v1384, 1.442695
        %v1391 = vpow.pop %v1390
        %v1392 = vmul.f32 %v1385, 1.442695
        %v1393 = vpow.pop %v1392
        %v1394 = vsel %vm383, %v1387, 0.0
        %1395 = vadd.xlane.f32.xlu0 %v1394
        %v1396 = vpop.xlane.xlu0 %1395
        %v1397 = vsel %vm383, %v1389, 0.0
        %1398 = vadd.xlane.f32.xlu0 %v1397
        %v1399 = vpop.xlane.xlu0 %1398
        %v1400 = vsel %vm383, %v1391, 0.0
        %1401 = vadd.xlane.f32.xlu0 %v1400
        %v1402 = vpop.xlane.xlu0 %1401
        %v1403 = vsel %vm383, %v1393, 0.0
        %1404 = vadd.xlane.f32.xlu0 %v1403
        %v1405 = vpop.xlane.xlu0 %1404
        %v1406 = vrcp.pop %v1396
        %v1407 = vrcp.pop %v1399
        %v1408 = vrcp.pop %v1402
        %v1409 = vrcp.pop %v1405
        %v1410 = vmul.f32 %v1387, %v1406
        %v1411 = vmul.f32 %v1389, %v1407
        %v1412 = vmul.f32 %v1391, %v1408
        %v1413 = vmul.f32 %v1393, %v1409
        %1414 = vrot.lane.b32.xlu0 %v371, 64
        %v1415 = vpop.permute.xlu0 %1414
        %v1418 = vsel %vm383, %v1410, 0
        %1420 = vmatprep.subr.mxu0 0.0
        %1421 = vmatpush1.msra.mxu0 0.0
        %1422 = vmatprep.subr.mxu0 0.0
        %1423 = vmatpush1.msra.mxu0 0.0
        %1424 = vmatprep.subr.mxu0 0.0
        %1425 = vmatpush1.msra.mxu0 0.0
        %1426 = vmatprep.subr.mxu0 0.0
        %1427 = vmatpush1.msra.mxu0 0.0
        %1428 = vmatprep.subr.mxu0 0.0
        %1429 = vmatpush1.msra.mxu0 0.0
        %1430 = vmatprep.subr.mxu0 0.0
        %1431 = vmatpush1.msra.mxu0 0.0
        %1432 = vmatprep.subr.mxu0 0.0
        %1433 = vmatpush1.msra.mxu0 0.0
        %1434 = vmatprep.subr.mxu0 0.0
        %1435 = vmatpush1.msra.mxu0 0.0
        %1436 = vmatprep.subr.mxu0 0.0
        %1437 = vmatpush1.msra.mxu0 0.0
        %1438 = vmatprep.subr.mxu0 0.0
        %1439 = vmatpush1.msra.mxu0 0.0
        %1440 = vmatprep.subr.mxu0 0.0
        %1441 = vmatpush1.msra.mxu0 0.0
        %1442 = vmatprep.subr.mxu0 0.0
        %1443 = vmatpush1.msra.mxu0 0.0
        %1444 = vmatprep.subr.mxu0 0.0
        %1445 = vmatpush1.msra.mxu0 0.0
        %1446 = vmatprep.subr.mxu0 0.0
        %1447 = vmatpush1.msra.mxu0 0.0
        %1448 = vmatprep.subr.mxu0 0.0
        %1449 = vmatpush1.msra.mxu0 0.0
        %1450 = vmatprep.subr.mxu0 0.0
        %1451 = vmatpush1.msra.mxu0 %v1415
        %1452 = vmatprep.subr.mxu0 0.0
        %1453 = vmatpush2.msra.mxu0 0.0
        %1454 = vmatprep.subr.mxu0 0.0
        %1455 = vmatpush2.msra.mxu0 0.0
        %1456 = vmatprep.subr.mxu0 0.0
        %1457 = vmatpush2.msra.mxu0 0.0
        %1458 = vmatprep.subr.mxu0 0.0
        %1459 = vmatpush2.msra.mxu0 0.0
        %1460 = vmatprep.subr.mxu0 0.0
        %1461 = vmatpush2.msra.mxu0 0.0
        %1462 = vmatprep.subr.mxu0 0.0
        %1463 = vmatpush2.msra.mxu0 0.0
        %1464 = vmatprep.subr.mxu0 0.0
        %1465 = vmatpush2.msra.mxu0 0.0
        %1466 = vmatprep.subr.mxu0 0.0
        %1467 = vmatpush2.msra.mxu0 0.0
        %1468 = vmatprep.subr.mxu0 0.0
        %1469 = vmatpush2.msra.mxu0 0.0
        %1470 = vmatprep.subr.mxu0 0.0
        %1471 = vmatpush2.msra.mxu0 0.0
        %1472 = vmatprep.subr.mxu0 0.0
        %1473 = vmatpush2.msra.mxu0 0.0
        %1474 = vmatprep.subr.mxu0 0.0
        %1475 = vmatpush2.msra.mxu0 0.0
        %1476 = vmatprep.subr.mxu0 0.0
        %1477 = vmatpush2.msra.mxu0 0.0
        %1478 = vmatprep.subr.mxu0 0.0
        %1479 = vmatpush2.msra.mxu0 0.0
        %1480 = vmatprep.subr.mxu0 0.0
        %1481 = vmatpush2.msra.mxu0 0.0
        %1482 = vmatprep.subr.mxu0 0.0
        %1483 = vmatpush2.msra.mxu0 0.0
        %1484 = vmatprep.mubr.f32.mxu0 0.0
        %1485 = vmatmul.mubr.f32.gmra.mxu0 %v1418
        %v1486 = vpop.f32.mrf.mxu0
        %v1487 = vadd.f32 0.0, %v1486
        %v1488 = vpop.f32.mrf.mxu0
        %1489 = vdwg.mxu0
        %1490 = vrot.lane.b32.xlu0 %v1057, 64
        %v1491 = vpop.permute.xlu0 %1490
        %v1494 = vsel %vm383, %v1411, 0
        %1496 = vmatprep.subr.mxu0 0.0
        %1497 = vmatpush1.msra.mxu0 0.0
        %1498 = vmatprep.subr.mxu0 0.0
        %1499 = vmatpush1.msra.mxu0 0.0
        %1500 = vmatprep.subr.mxu0 0.0
        %1501 = vmatpush1.msra.mxu0 0.0
        %1502 = vmatprep.subr.mxu0 0.0
        %1503 = vmatpush1.msra.mxu0 0.0
        %1504 = vmatprep.subr.mxu0 0.0
        %1505 = vmatpush1.msra.mxu0 0.0
        %1506 = vmatprep.subr.mxu0 0.0
        %1507 = vmatpush1.msra.mxu0 0.0
        %1508 = vmatprep.subr.mxu0 0.0
        %1509 = vmatpush1.msra.mxu0 0.0
        %1510 = vmatprep.subr.mxu0 0.0
        %1511 = vmatpush1.msra.mxu0 0.0
        %1512 = vmatprep.subr.mxu0 0.0
        %1513 = vmatpush1.msra.mxu0 0.0
        %1514 = vmatprep.subr.mxu0 0.0
        %1515 = vmatpush1.msra.mxu0 0.0
        %1516 = vmatprep.subr.mxu0 0.0
        %1517 = vmatpush1.msra.mxu0 0.0
        %1518 = vmatprep.subr.mxu0 0.0
        %1519 = vmatpush1.msra.mxu0 0.0
        %1520 = vmatprep.subr.mxu0 0.0
        %1521 = vmatpush1.msra.mxu0 0.0
        %1522 = vmatprep.subr.mxu0 0.0
        %1523 = vmatpush1.msra.mxu0 0.0
        %1524 = vmatprep.subr.mxu0 0.0
        %1525 = vmatpush1.msra.mxu0 0.0
        %1526 = vmatprep.subr.mxu0 0.0
        %1527 = vmatpush1.msra.mxu0 %v1491
        %1528 = vmatprep.subr.mxu0 0.0
        %1529 = vmatpush2.msra.mxu0 0.0
        %1530 = vmatprep.subr.mxu0 0.0
        %1531 = vmatpush2.msra.mxu0 0.0
        %1532 = vmatprep.subr.mxu0 0.0
        %1533 = vmatpush2.msra.mxu0 0.0
        %1534 = vmatprep.subr.mxu0 0.0
        %1535 = vmatpush2.msra.mxu0 0.0
        %1536 = vmatprep.subr.mxu0 0.0
        %1537 = vmatpush2.msra.mxu0 0.0
        %1538 = vmatprep.subr.mxu0 0.0
        %1539 = vmatpush2.msra.mxu0 0.0
        %1540 = vmatprep.subr.mxu0 0.0
        %1541 = vmatpush2.msra.mxu0 0.0
        %1542 = vmatprep.subr.mxu0 0.0
        %1543 = vmatpush2.msra.mxu0 0.0
        %1544 = vmatprep.subr.mxu0 0.0
        %1545 = vmatpush2.msra.mxu0 0.0
        %1546 = vmatprep.subr.mxu0 0.0
        %1547 = vmatpush2.msra.mxu0 0.0
        %1548 = vmatprep.subr.mxu0 0.0
        %1549 = vmatpush2.msra.mxu0 0.0
        %1550 = vmatprep.subr.mxu0 0.0
        %1551 = vmatpush2.msra.mxu0 0.0
        %1552 = vmatprep.subr.mxu0 0.0
        %1553 = vmatpush2.msra.mxu0 0.0
        %1554 = vmatprep.subr.mxu0 0.0
        %1555 = vmatpush2.msra.mxu0 0.0
        %1556 = vmatprep.subr.mxu0 0.0
        %1557 = vmatpush2.msra.mxu0 0.0
        %1558 = vmatprep.subr.mxu0 0.0
        %1559 = vmatpush2.msra.mxu0 0.0
        %1560 = vmatprep.mubr.f32.mxu0 0.0
        %1561 = vmatmul.mubr.f32.gmra.mxu0 %v1494
        %v1562 = vpop.f32.mrf.mxu0
        %v1563 = vadd.f32 0.0, %v1562
        %v1564 = vpop.f32.mrf.mxu0
        %1565 = vdwg.mxu0
        %1566 = vrot.lane.b32.xlu0 %v1059, 64
        %v1567 = vpop.permute.xlu0 %1566
        %v1570 = vsel %vm383, %v1412, 0
        %1572 = vmatprep.subr.mxu0 0.0
        %1573 = vmatpush1.msra.mxu0 0.0
        %1574 = vmatprep.subr.mxu0 0.0
        %1575 = vmatpush1.msra.mxu0 0.0
        %1576 = vmatprep.subr.mxu0 0.0
        %1577 = vmatpush1.msra.mxu0 0.0
        %1578 = vmatprep.subr.mxu0 0.0
        %1579 = vmatpush1.msra.mxu0 0.0
        %1580 = vmatprep.subr.mxu0 0.0
        %1581 = vmatpush1.msra.mxu0 0.0
        %1582 = vmatprep.subr.mxu0 0.0
        %1583 = vmatpush1.msra.mxu0 0.0
        %1584 = vmatprep.subr.mxu0 0.0
        %1585 = vmatpush1.msra.mxu0 0.0
        %1586 = vmatprep.subr.mxu0 0.0
        %1587 = vmatpush1.msra.mxu0 0.0
        %1588 = vmatprep.subr.mxu0 0.0
        %1589 = vmatpush1.msra.mxu0 0.0
        %1590 = vmatprep.subr.mxu0 0.0
        %1591 = vmatpush1.msra.mxu0 0.0
        %1592 = vmatprep.subr.mxu0 0.0
        %1593 = vmatpush1.msra.mxu0 0.0
        %1594 = vmatprep.subr.mxu0 0.0
        %1595 = vmatpush1.msra.mxu0 0.0
        %1596 = vmatprep.subr.mxu0 0.0
        %1597 = vmatpush1.msra.mxu0 0.0
        %1598 = vmatprep.subr.mxu0 0.0
        %1599 = vmatpush1.msra.mxu0 0.0
        %1600 = vmatprep.subr.mxu0 0.0
        %1601 = vmatpush1.msra.mxu0 0.0
        %1602 = vmatprep.subr.mxu0 0.0
        %1603 = vmatpush1.msra.mxu0 %v1567
        %1604 = vmatprep.subr.mxu0 0.0
        %1605 = vmatpush2.msra.mxu0 0.0
        %1606 = vmatprep.subr.mxu0 0.0
        %1607 = vmatpush2.msra.mxu0 0.0
        %1608 = vmatprep.subr.mxu0 0.0
        %1609 = vmatpush2.msra.mxu0 0.0
        %1610 = vmatprep.subr.mxu0 0.0
        %1611 = vmatpush2.msra.mxu0 0.0
        %1612 = vmatprep.subr.mxu0 0.0
        %1613 = vmatpush2.msra.mxu0 0.0
        %1614 = vmatprep.subr.mxu0 0.0
        %1615 = vmatpush2.msra.mxu0 0.0
        %1616 = vmatprep.subr.mxu0 0.0
        %1617 = vmatpush2.msra.mxu0 0.0
        %1618 = vmatprep.subr.mxu0 0.0
        %1619 = vmatpush2.msra.mxu0 0.0
        %1620 = vmatprep.subr.mxu0 0.0
        %1621 = vmatpush2.msra.mxu0 0.0
        %1622 = vmatprep.subr.mxu0 0.0
        %1623 = vmatpush2.msra.mxu0 0.0
        %1624 = vmatprep.subr.mxu0 0.0
        %1625 = vmatpush2.msra.mxu0 0.0
        %1626 = vmatprep.subr.mxu0 0.0
        %1627 = vmatpush2.msra.mxu0 0.0
        %1628 = vmatprep.subr.mxu0 0.0
        %1629 = vmatpush2.msra.mxu0 0.0
        %1630 = vmatprep.subr.mxu0 0.0
        %1631 = vmatpush2.msra.mxu0 0.0
        %1632 = vmatprep.subr.mxu0 0.0
        %1633 = vmatpush2.msra.mxu0 0.0
        %1634 = vmatprep.subr.mxu0 0.0
        %1635 = vmatpush2.msra.mxu0 0.0
        %1636 = vmatprep.mubr.f32.mxu0 0.0
        %1637 = vmatmul.mubr.f32.gmra.mxu0 %v1570
        %v1638 = vpop.f32.mrf.mxu0
        %v1639 = vadd.f32 0.0, %v1638
        %v1640 = vpop.f32.mrf.mxu0
        %1641 = vdwg.mxu0
        %1642 = vrot.lane.b32.xlu0 %v1061, 64
        %v1643 = vpop.permute.xlu0 %1642
        %v1646 = vsel %vm383, %v1413, 0
        %1648 = vmatprep.subr.mxu0 0.0
        %1649 = vmatpush1.msra.mxu0 0.0
        %1650 = vmatprep.subr.mxu0 0.0
        %1651 = vmatpush1.msra.mxu0 0.0
        %1652 = vmatprep.subr.mxu0 0.0
        %1653 = vmatpush1.msra.mxu0 0.0
        %1654 = vmatprep.subr.mxu0 0.0
        %1655 = vmatpush1.msra.mxu0 0.0
        %1656 = vmatprep.subr.mxu0 0.0
        %1657 = vmatpush1.msra.mxu0 0.0
        %1658 = vmatprep.subr.mxu0 0.0
        %1659 = vmatpush1.msra.mxu0 0.0
        %1660 = vmatprep.subr.mxu0 0.0
        %1661 = vmatpush1.msra.mxu0 0.0
        %1662 = vmatprep.subr.mxu0 0.0
        %1663 = vmatpush1.msra.mxu0 0.0
        %1664 = vmatprep.subr.mxu0 0.0
        %1665 = vmatpush1.msra.mxu0 0.0
        %1666 = vmatprep.subr.mxu0 0.0
        %1667 = vmatpush1.msra.mxu0 0.0
        %1668 = vmatprep.subr.mxu0 0.0
        %1669 = vmatpush1.msra.mxu0 0.0
        %1670 = vmatprep.subr.mxu0 0.0
        %1671 = vmatpush1.msra.mxu0 0.0
        %1672 = vmatprep.subr.mxu0 0.0
        %1673 = vmatpush1.msra.mxu0 0.0
        %1674 = vmatprep.subr.mxu0 0.0
        %1675 = vmatpush1.msra.mxu0 0.0
        %1676 = vmatprep.subr.mxu0 0.0
        %1677 = vmatpush1.msra.mxu0 0.0
        %1678 = vmatprep.subr.mxu0 0.0
        %1679 = vmatpush1.msra.mxu0 %v1643
        %1680 = vmatprep.subr.mxu0 0.0
        %1681 = vmatpush2.msra.mxu0 0.0
        %1682 = vmatprep.subr.mxu0 0.0
        %1683 = vmatpush2.msra.mxu0 0.0
        %1684 = vmatprep.subr.mxu0 0.0
        %1685 = vmatpush2.msra.mxu0 0.0
        %1686 = vmatprep.subr.mxu0 0.0
        %1687 = vmatpush2.msra.mxu0 0.0
        %1688 = vmatprep.subr.mxu0 0.0
        %1689 = vmatpush2.msra.mxu0 0.0
        %1690 = vmatprep.subr.mxu0 0.0
        %1691 = vmatpush2.msra.mxu0 0.0
        %1692 = vmatprep.subr.mxu0 0.0
        %1693 = vmatpush2.msra.mxu0 0.0
        %1694 = vmatprep.subr.mxu0 0.0
        %1695 = vmatpush2.msra.mxu0 0.0
        %1696 = vmatprep.subr.mxu0 0.0
        %1697 = vmatpush2.msra.mxu0 0.0
        %1698 = vmatprep.subr.mxu0 0.0
        %1699 = vmatpush2.msra.mxu0 0.0
        %1700 = vmatprep.subr.mxu0 0.0
        %1701 = vmatpush2.msra.mxu0 0.0
        %1702 = vmatprep.subr.mxu0 0.0
        %1703 = vmatpush2.msra.mxu0 0.0
        %1704 = vmatprep.subr.mxu0 0.0
        %1705 = vmatpush2.msra.mxu0 0.0
        %1706 = vmatprep.subr.mxu0 0.0
        %1707 = vmatpush2.msra.mxu0 0.0
        %1708 = vmatprep.subr.mxu0 0.0
        %1709 = vmatpush2.msra.mxu0 0.0
        %1710 = vmatprep.subr.mxu0 0.0
        %1711 = vmatpush2.msra.mxu0 0.0
        %1712 = vmatprep.mubr.f32.mxu0 0.0
        %1713 = vmatmul.mubr.f32.gmra.mxu0 %v1646
        %v1714 = vpop.f32.mrf.mxu0
        %v1715 = vadd.f32 0.0, %v1714
        %v1716 = vpop.f32.mrf.mxu0
        %1717 = vdwg.mxu0
        %1719 = vrot.lane.b32.xlu0 %v1563, 8
        %v1720 = vpop.permute.xlu0 %1719
        %1723 = vrot.lane.b32.xlu0 %v1639, 16
        %v1724 = vpop.permute.xlu0 %1723
        %1727 = vrot.lane.b32.xlu0 %v1715, 24
        %v1728 = vpop.permute.xlu0 %1727
        %v1730 = vsel %vm383, %v1487, %v1720
        %v1731 = vsel %vm1051, %v1730, %v1724
        %v1732 = vsel %vm1053, %v1731, %v1728
        %v1733 = vld [vmem:[%s3] sm:$0x1]
        %v1734 = vld [vmem:[%s4] sm:$0x1]
        %v1735 = vsel %vm292, %v1054, 0.0
        %1736 = vadd.xlane.f32.xlu0 %v1735
        %v1737 = vpop.xlane.xlu0 %1736
        %v1738 = vsel %vm292, %v1732, 0.0
        %1739 = vadd.xlane.f32.xlu0 %v1738
        %v1740 = vpop.xlane.xlu0 %1739
        %v1741 = vrcp.pop 32.0
        %v1742 = vmul.f32 %v1737, %v1741
        %v1743 = vmul.f32 %v1740, %v1741
        %v1744 = vsub.f32 %v1054, %v1742
        %v1745 = vsub.f32 %v1732, %v1743
        %v1746 = vmul.f32 %v1744, %v1744
        %v1747 = vmul.f32 %v1745, %v1745
        %v1748 = vsel %vm292, %v1746, 0.0
        %1749 = vadd.xlane.f32.xlu0 %v1748
        %v1750 = vpop.xlane.xlu0 %1749
        %v1751 = vsel %vm292, %v1747, 0.0
        %1752 = vadd.xlane.f32.xlu0 %v1751
        %v1753 = vpop.xlane.xlu0 %1752
        %v1754 = vmul.f32 %v1750, %v1741
        %v1755 = vmul.f32 %v1753, %v1741
        %v1756 = vadd.f32 %v1754, 1e-05
        %v1757 = vadd.f32 %v1755, 1e-05
        %v1758 = vrsqrt.pop %v1756
        %v1759 = vrsqrt.pop %v1757
        %v1760 = vmul.f32 %v1744, %v1758
        %v1761 = vmul.f32 %v1745, %v1759
        %v1763 = vlaneseq
        %v1764 = vshrl.u32 %v1763, 7
        %v1765 = vsub.s32 0, %v1764
        %v1766 = vrot.slane %v1733, %v1765
        %v1768 = vmul.f32 %v1760, %v1766
        %v1769 = vmul.f32 %v1761, %v1766
        %v1771 = vlaneseq
        %v1772 = vshrl.u32 %v1771, 7
        %v1773 = vsub.s32 0, %v1772
        %v1774 = vrot.slane %v1734, %v1773
        %v1776 = vadd.f32 %v1768, %v1774
        %v1777 = vadd.f32 %v1769, %v1774
        %v1778 = vld [vmem:[%s5] sm:$0xff]
        %v1779 = vld [vmem:[%s5 + $0x8] sm:$0xff]
        %v1780 = vld [vmem:[%s5 + $0x10] sm:$0xff]
        %v1781 = vld [vmem:[%s5 + $0x18] sm:$0xff]
        %v1782 = vld [vmem:[%s6] sm:$0x1]
        %v1784 = vlaneseq
        %v1785 = vshrl.u32 %v1784, 7
        %v1786 = vsub.s32 0, %v1785
        %v1787 = vrot.slane %v1782, %v1786
        %v1790 = vsel %vm292, %v1776, 0
        %v1793 = vsel %vm292, %v1777, 0
        %1795 = vmatprep.subr.mxu0 0.0
        %1796 = vmatpush1.msra.mxu0 0.0
        %1797 = vmatprep.subr.mxu0 0.0
        %1798 = vmatpush1.msra.mxu0 0.0
        %1799 = vmatprep.subr.mxu0 0.0
        %1800 = vmatpush1.msra.mxu0 0.0
        %1801 = vmatprep.subr.mxu0 0.0
        %1802 = vmatpush1.msra.mxu0 0.0
        %1803 = vmatprep.subr.mxu0 0.0
        %1804 = vmatpush1.msra.mxu0 0.0
        %1805 = vmatprep.subr.mxu0 0.0
        %1806 = vmatpush1.msra.mxu0 0.0
        %1807 = vmatprep.subr.mxu0 0.0
        %1808 = vmatpush1.msra.mxu0 0.0
        %1809 = vmatprep.subr.mxu0 0.0
        %1810 = vmatpush1.msra.mxu0 0.0
        %1811 = vmatprep.subr.mxu0 0.0
        %1812 = vmatpush1.msra.mxu0 0.0
        %1813 = vmatprep.subr.mxu0 0.0
        %1814 = vmatpush1.msra.mxu0 0.0
        %1815 = vmatprep.subr.mxu0 0.0
        %1816 = vmatpush1.msra.mxu0 0.0
        %1817 = vmatprep.subr.mxu0 0.0
        %1818 = vmatpush1.msra.mxu0 0.0
        %1819 = vmatprep.subr.mxu0 0.0
        %1820 = vmatpush1.msra.mxu0 %v1781
        %1821 = vmatprep.subr.mxu0 0.0
        %1822 = vmatpush1.msra.mxu0 %v1780
        %1823 = vmatprep.subr.mxu0 0.0
        %1824 = vmatpush1.msra.mxu0 %v1779
        %1825 = vmatprep.subr.mxu0 0.0
        %1826 = vmatpush1.msra.mxu0 %v1778
        %1827 = vmatprep.subr.mxu0 0.0
        %1828 = vmatpush2.msra.mxu0 0.0
        %1829 = vmatprep.subr.mxu0 0.0
        %1830 = vmatpush2.msra.mxu0 0.0
        %1831 = vmatprep.subr.mxu0 0.0
        %1832 = vmatpush2.msra.mxu0 0.0
        %1833 = vmatprep.subr.mxu0 0.0
        %1834 = vmatpush2.msra.mxu0 0.0
        %1835 = vmatprep.subr.mxu0 0.0
        %1836 = vmatpush2.msra.mxu0 0.0
        %1837 = vmatprep.subr.mxu0 0.0
        %1838 = vmatpush2.msra.mxu0 0.0
        %1839 = vmatprep.subr.mxu0 0.0
        %1840 = vmatpush2.msra.mxu0 0.0
        %1841 = vmatprep.subr.mxu0 0.0
        %1842 = vmatpush2.msra.mxu0 0.0
        %1843 = vmatprep.subr.mxu0 0.0
        %1844 = vmatpush2.msra.mxu0 0.0
        %1845 = vmatprep.subr.mxu0 0.0
        %1846 = vmatpush2.msra.mxu0 0.0
        %1847 = vmatprep.subr.mxu0 0.0
        %1848 = vmatpush2.msra.mxu0 0.0
        %1849 = vmatprep.subr.mxu0 0.0
        %1850 = vmatpush2.msra.mxu0 0.0
        %1851 = vmatprep.subr.mxu0 0.0
        %1852 = vmatpush2.msra.mxu0 0.0
        %1853 = vmatprep.subr.mxu0 0.0
        %1854 = vmatpush2.msra.mxu0 0.0
        %1855 = vmatprep.subr.mxu0 0.0
        %1856 = vmatpush2.msra.mxu0 0.0
        %1857 = vmatprep.subr.mxu0 0.0
        %1858 = vmatpush2.msra.mxu0 0.0
        %1859 = vmatprep.mubr.f32.mxu0 0.0
        %1860 = vmatmul.mubr.f32.gmra.mxu0 %v1790
        %v1861 = vpop.f32.mrf.mxu0
        %v1862 = vadd.f32 %v1787, %v1861
        %v1863 = vpop.f32.mrf.mxu0
        %1864 = vmatprep.mubr.f32.mxu0 0.0
        %1865 = vmatmul.mubr.f32.gmra.mxu0 %v1793
        %v1866 = vpop.f32.mrf.mxu0
        %v1867 = vadd.f32 %v1787, %v1866
        %v1868 = vpop.f32.mrf.mxu0
        %1869 = vdwg.mxu0
        %v1870 = vsel %vm292, %v1862, 0.0
        %v1871 = vrot.slane %v1870, 4
        %v1872 = vadd.f32 %v1870, %v1871
        %v1873 = vrot.slane %v1872, 2
        %v1874 = vadd.f32 %v1872, %v1873
        %v1875 = vrot.slane %v1874, 1
        %v1876 = vadd.f32 %v1874, %v1875
        %v1877 = vsel %vm292, %v1867, 0.0
        %v1878 = vrot.slane %v1877, 4
        %v1879 = vadd.f32 %v1877, %v1878
        %v1880 = vrot.slane %v1879, 2
        %v1881 = vadd.f32 %v1879, %v1880
        %v1882 = vrot.slane %v1881, 1
        %v1883 = vadd.f32 %v1881, %v1882
        %vm1884 = vcmask 1040384
        %v1885 = vsel %vm1884, %v1876, %v1883
        %vm1886 = vcmask 254976
        %1887 = vst.msk [vmem:[%s272] sm:$0x3] %vm1886, %v1885
        %s1888 = sand.u32 %s181, 1
        %s1889 = scalar_lea.sflag [#allocation3], %s1888
        %s1890 = sand.u32 %s181, 1
        %s1891 = smul.addr %s1890, 2
        %s1892 = scalar_lea.vmem [#allocation2], %s1891
        // Predicated region
        $region49: #{run.2} parent=47 // pred_check
          %p1893 = pneg %p191
        $region50: #{run.2} parent=47 // pred_check_branch
          %1895 = sbr.rel (%p1893) target = $region52
        $region51: #{run.2} parent=47 // pred_region
          %s1897 = ssub.s32 32, 32
          %1898 = vsyncadd %s1889, %s1897
          %s1899 = smul.addr %s21, 32
          %s1900 = scalar_lea.hbm %s7, %s1899
          %s1902 = sshll.u32 %s1892, 4
          %s1903 = int_to_ptr.vmem [resolvable:$true] %s1902
          %1905 = dma.vmem_to_hbm [thread:$0]  %s1903, 32, %s1900, %s1889
        $region52: #{run.2} parent=47 // pred_fallthru
          _
      $region48: #{run.2} parent=5 // pred_fallthru
        _
      %p1906 = scmp.le.s32.totalorder 2, %s16
      // Predicated region
      $region53: #{run.2} parent=5 // pred_check
        %p1907 = pneg %p1906
      $region54: #{run.2} parent=5 // pred_check_branch
        %1909 = sbr.rel (%p1907) target = $region56
      $region55: #{run.2} parent=5 // pred_region
        %s1910 = ssub.s32 %s16, 2
        // Predicated region
        $region57: #{run.2} parent=55 // pred_check
          %p1911 = pneg %p197
        $region58: #{run.2} parent=55 // pred_check_branch
          %1913 = sbr.rel (%p1911) target = $region60
        $region59: #{run.2} parent=55 // pred_region
          %s1914 = sand.u32 %s182, 1
          %s1915 = scalar_lea.sflag [#allocation3], %s1914
          %s1916 = sand.u32 %s182, 1
          %s1917 = smul.addr %s1916, 2
          %s1918 = scalar_lea.vmem [#allocation2], %s1917
          %1919 = dma.done %s1915, 32
        $region60: #{run.2} parent=55 // pred_fallthru
          _
      $region56: #{run.2} parent=5 // pred_fallthru
        _
    $region6: #{run.2} parent=1 // loop_footer
      %s20 = sadd.s32 1, %s16
    $region7: #{run.2} parent=1 // loop_footer_branch
      %15 = sbr.rel target = $region3
    $region8: #{run.2} parent=1 // loop_exit
      _
    %1920 = vsyncpa [#allocation3], 1
    %s1921 = scalar_lea.sflag [#allocation3], 1
    %1922 = vsyncpa %s1921, 1

// kernel: run.3
$region0: #{run.3}
  #allocation0 [shape = 'u32[]', space=smem, size = 0x4, offset = 0x4, fixed_abs, tag = 'smem constant byte address 0x4 - core index']
  #allocation1 [shape = 'u32[144,128]{1,0:T(1,128)}', space=vmem, size = 0x12000, scoped, tag = 'internal scratch']
  #allocation2 [shape = 'f32[1,1]{1,0:T(1,128)S(1)}', space=vmem, size = 0x200, scoped, tag = 'scoped memory for run.3']
  %s0 = inlined_call_operand.vmem [shape: f32[2,2,8,32], index: 0, kind: input, shape index: {}]
  %s1 = inlined_call_operand.vmem [shape: f32[32,96], index: 1, kind: input, shape index: {}]
  %s2 = inlined_call_operand.vmem [shape: f32[1,96], index: 2, kind: input, shape index: {}]
  %s3 = inlined_call_operand.vmem [shape: f32[1,32], index: 3, kind: input, shape index: {}]
  %s4 = inlined_call_operand.vmem [shape: f32[1,32], index: 4, kind: input, shape index: {}]
  %s5 = inlined_call_operand.vmem [shape: f32[32,1], index: 5, kind: input, shape index: {}]
  %s6 = inlined_call_operand.<no memory space> [shape: f32[1,1], index: 6, kind: input, shape index: {}]
  %s7 = inlined_call_operand.vmem [shape: f32[32,32], index: 7, kind: input, shape index: {}]
  %s8 = inlined_call_operand.vmem [shape: f32[1,32], index: 8, kind: input, shape index: {}]
  %s9 = inlined_call_operand.hbm [shape: f32[2,1,32], index: 9, kind: output, shape index: {}]
  %s10 = sld [smem:[#allocation0]]
  $region69: #{run.3} parent=0
    _
  %s12 = ssub.s32 1, %s10
  %s13 = scalar_select 0, %s12, %s10
  %v14 = vstv %s6
  %15 = vst [vmem:[#allocation2] sm:$0x1] %v14
  $region1: #{run.3} parent=0
    #allocation3 [shape = 'u8[1024]{0}', space=vmem, size = 0x400, scoped, tag = 'output window, operand 0']
    #allocation4 [shape = 's32[2]{0}', space=sflag, size = 0x8, scoped, tag = 'scoped memory for run.3']
    %16 = vsyncpa [#allocation4], 0
    %s17 = scalar_lea.sflag [#allocation4], 1
    %18 = vsyncpa %s17, 0
    loop: start=0, step=1, limit=4
    $region2: #{run.3} parent=1 // loop_pre_header
      _
    $region3: #{run.3} parent=1 // loop_header
      %s20 = sphi 0, %s24
      %p21 = scmp.ge.s32.totalorder %s20, 4
      %s30 = sphi 0, %s32
      %s33 = sphi 0, %s30
      %s34 = sphi 0, %s33
      %s50 = sphi 0, %s34
      %s54 = sphi 0, %s54
      %s56 = sphi 0, %s54
      %s57 = sphi 0, %s56
      %s71 = sphi 0, %s57
      %s75 = sphi 0, %s75
      %s77 = sphi 0, %s75
      %s78 = sphi 0, %s77
      %s92 = sphi 0, %s78
      %s96 = sphi 0, %s96
      %s98 = sphi 0, %s96
      %s99 = sphi 0, %s98
      %s113 = sphi 0, %s99
      %s117 = sphi 0, %s117
      %s119 = sphi 0, %s117
      %s120 = sphi 0, %s119
      %s134 = sphi 0, %s120
      %s138 = sphi 0, %s138
      %s140 = sphi 0, %s138
      %s141 = sphi 0, %s140
      %s155 = sphi 0, %s141
      %s159 = sphi 0, %s159
      %s161 = sphi 0, %s159
      %s162 = sphi 0, %s161
      %s176 = sphi 0, %s162
      %s180 = sphi 0, %s180
      %s182 = sphi 0, %s180
      %s183 = sphi 0, %s182
      %s197 = sphi 0, %s183
      %s201 = sphi 0, %s201
      %s203 = sphi 0, %s201
      %s204 = sphi 0, %s203
      %s218 = sphi 0, %s204
      %s224 = sphi 0, %s226
      %s227 = sphi 0, %s224
      %s228 = sphi 0, %s227
      %s244 = sphi 0, %s228
    $region4: #{run.3} parent=1 // loop_header_branch
      %23 = sbr.rel (%p21) target = $region8
    $region5: #{run.3} parent=1 // loop_body
      %s25 = ssub.s32 %s20, 1
      %s26 = ssub.s32 %s20, 2
      %s27 = sadd.s32 %s20, 1
      %s28 = ssub.s32 %s20, %s27
      %p29 = scmp.eq.s32.totalorder %s28, 0
      %s31 = sadd.s32 %s30, 1
      %s32 = scalar_select %p29, %s30, %s31
      %p35 = pneg %p29
      %p36 = scmp.eq.s32.totalorder %s20, 1
      %p37 = por %p35, %p36
      %p38 = scmp.ne.s32.totalorder %s30, %s33
      %p39 = scmp.eq.s32.totalorder %s20, 0
      %p40 = por %p38, %p39
      %p41 = scmp.ne.s32.totalorder %s30, %s33
      %p42 = scmp.eq.s32.totalorder %s25, 1
      %p43 = por %p41, %p42
      %p44 = scmp.ne.s32.totalorder %s33, %s34
      %p45 = scmp.eq.s32.totalorder %s25, 0
      %p46 = por %p44, %p45
      %p47 = scmp.ne.s32.totalorder %s33, %s34
      %p48 = scmp.eq.s32.totalorder %s26, 1
      %p49 = por %p47, %p48
      %p51 = scmp.ne.s32.totalorder %s34, %s50
      %p52 = scmp.eq.s32.totalorder %s26, 0
      %p53 = por %p51, %p52
      %s55 = sadd.s32 %s54, 1
      %p58 = scmp.eq.s32.totalorder %s20, 1
      %p59 = scmp.ne.s32.totalorder %s54, %s56
      %p60 = scmp.eq.s32.totalorder %s20, 0
      %p61 = por %p59, %p60
      %p62 = scmp.ne.s32.totalorder %s54, %s56
      %p63 = scmp.eq.s32.totalorder %s25, 1
      %p64 = por %p62, %p63
      %p65 = scmp.ne.s32.totalorder %s56, %s57
      %p66 = scmp.eq.s32.totalorder %s25, 0
      %p67 = por %p65, %p66
      %p68 = scmp.ne.s32.totalorder %s56, %s57
      %p69 = scmp.eq.s32.totalorder %s26, 1
      %p70 = por %p68, %p69
      %p72 = scmp.ne.s32.totalorder %s57, %s71
      %p73 = scmp.eq.s32.totalorder %s26, 0
      %p74 = por %p72, %p73
      %s76 = sadd.s32 %s75, 1
      %p79 = scmp.eq.s32.totalorder %s20, 1
      %p80 = scmp.ne.s32.totalorder %s75, %s77
      %p81 = scmp.eq.s32.totalorder %s20, 0
      %p82 = por %p80, %p81
      %p83 = scmp.ne.s32.totalorder %s75, %s77
      %p84 = scmp.eq.s32.totalorder %s25, 1
      %p85 = por %p83, %p84
      %p86 = scmp.ne.s32.totalorder %s77, %s78
      %p87 = scmp.eq.s32.totalorder %s25, 0
      %p88 = por %p86, %p87
      %p89 = scmp.ne.s32.totalorder %s77, %s78
      %p90 = scmp.eq.s32.totalorder %s26, 1
      %p91 = por %p89, %p90
      %p93 = scmp.ne.s32.totalorder %s78, %s92
      %p94 = scmp.eq.s32.totalorder %s26, 0
      %p95 = por %p93, %p94
      %s97 = sadd.s32 %s96, 1
      %p100 = scmp.eq.s32.totalorder %s20, 1
      %p101 = scmp.ne.s32.totalorder %s96, %s98
      %p102 = scmp.eq.s32.totalorder %s20, 0
      %p103 = por %p101, %p102
      %p104 = scmp.ne.s32.totalorder %s96, %s98
      %p105 = scmp.eq.s32.totalorder %s25, 1
      %p106 = por %p104, %p105
      %p107 = scmp.ne.s32.totalorder %s98, %s99
      %p108 = scmp.eq.s32.totalorder %s25, 0
      %p109 = por %p107, %p108
      %p110 = scmp.ne.s32.totalorder %s98, %s99
      %p111 = scmp.eq.s32.totalorder %s26, 1
      %p112 = por %p110, %p111
      %p114 = scmp.ne.s32.totalorder %s99, %s113
      %p115 = scmp.eq.s32.totalorder %s26, 0
      %p116 = por %p114, %p115
      %s118 = sadd.s32 %s117, 1
      %p121 = scmp.eq.s32.totalorder %s20, 1
      %p122 = scmp.ne.s32.totalorder %s117, %s119
      %p123 = scmp.eq.s32.totalorder %s20, 0
      %p124 = por %p122, %p123
      %p125 = scmp.ne.s32.totalorder %s117, %s119
      %p126 = scmp.eq.s32.totalorder %s25, 1
      %p127 = por %p125, %p126
      %p128 = scmp.ne.s32.totalorder %s119, %s120
      %p129 = scmp.eq.s32.totalorder %s25, 0
      %p130 = por %p128, %p129
      %p131 = scmp.ne.s32.totalorder %s119, %s120
      %p132 = scmp.eq.s32.totalorder %s26, 1
      %p133 = por %p131, %p132
      %p135 = scmp.ne.s32.totalorder %s120, %s134
      %p136 = scmp.eq.s32.totalorder %s26, 0
      %p137 = por %p135, %p136
      %s139 = sadd.s32 %s138, 1
      %p142 = scmp.eq.s32.totalorder %s20, 1
      %p143 = scmp.ne.s32.totalorder %s138, %s140
      %p144 = scmp.eq.s32.totalorder %s20, 0
      %p145 = por %p143, %p144
      %p146 = scmp.ne.s32.totalorder %s138, %s140
      %p147 = scmp.eq.s32.totalorder %s25, 1
      %p148 = por %p146, %p147
      %p149 = scmp.ne.s32.totalorder %s140, %s141
      %p150 = scmp.eq.s32.totalorder %s25, 0
      %p151 = por %p149, %p150
      %p152 = scmp.ne.s32.totalorder %s140, %s141
      %p153 = scmp.eq.s32.totalorder %s26, 1
      %p154 = por %p152, %p153
      %p156 = scmp.ne.s32.totalorder %s141, %s155
      %p157 = scmp.eq.s32.totalorder %s26, 0
      %p158 = por %p156, %p157
      %s160 = sadd.s32 %s159, 1
      %p163 = scmp.eq.s32.totalorder %s20, 1
      %p164 = scmp.ne.s32.totalorder %s159, %s161
      %p165 = scmp.eq.s32.totalorder %s20, 0
      %p166 = por %p164, %p165
      %p167 = scmp.ne.s32.totalorder %s159, %s161
      %p168 = scmp.eq.s32.totalorder %s25, 1
      %p169 = por %p167, %p168
      %p170 = scmp.ne.s32.totalorder %s161, %s162
      %p171 = scmp.eq.s32.totalorder %s25, 0
      %p172 = por %p170, %p171
      %p173 = scmp.ne.s32.totalorder %s161, %s162
      %p174 = scmp.eq.s32.totalorder %s26, 1
      %p175 = por %p173, %p174
      %p177 = scmp.ne.s32.totalorder %s162, %s176
      %p178 = scmp.eq.s32.totalorder %s26, 0
      %p179 = por %p177, %p178
      %s181 = sadd.s32 %s180, 1
      %p184 = scmp.eq.s32.totalorder %s20, 1
      %p185 = scmp.ne.s32.totalorder %s180, %s182
      %p186 = scmp.eq.s32.totalorder %s20, 0
      %p187 = por %p185, %p186
      %p188 = scmp.ne.s32.totalorder %s180, %s182
      %p189 = scmp.eq.s32.totalorder %s25, 1
      %p190 = por %p188, %p189
      %p191 = scmp.ne.s32.totalorder %s182, %s183
      %p192 = scmp.eq.s32.totalorder %s25, 0
      %p193 = por %p191, %p192
      %p194 = scmp.ne.s32.totalorder %s182, %s183
      %p195 = scmp.eq.s32.totalorder %s26, 1
      %p196 = por %p194, %p195
      %p198 = scmp.ne.s32.totalorder %s183, %s197
      %p199 = scmp.eq.s32.totalorder %s26, 0
      %p200 = por %p198, %p199
      %s202 = sadd.s32 %s201, 1
      %p205 = scmp.eq.s32.totalorder %s20, 1
      %p206 = scmp.ne.s32.totalorder %s201, %s203
      %p207 = scmp.eq.s32.totalorder %s20, 0
      %p208 = por %p206, %p207
      %p209 = scmp.ne.s32.totalorder %s201, %s203
      %p210 = scmp.eq.s32.totalorder %s25, 1
      %p211 = por %p209, %p210
      %p212 = scmp.ne.s32.totalorder %s203, %s204
      %p213 = scmp.eq.s32.totalorder %s25, 0
      %p214 = por %p212, %p213
      %p215 = scmp.ne.s32.totalorder %s203, %s204
      %p216 = scmp.eq.s32.totalorder %s26, 1
      %p217 = por %p215, %p216
      %p219 = scmp.ne.s32.totalorder %s204, %s218
      %p220 = scmp.eq.s32.totalorder %s26, 0
      %p221 = por %p219, %p220
      %s222 = ssub.s32 %s20, %s27
      %p223 = scmp.eq.s32.totalorder %s222, 0
      %s225 = sadd.s32 %s224, 1
      %s226 = scalar_select %p223, %s224, %s225
      %p229 = pneg %p223
      %p230 = scmp.eq.s32.totalorder %s20, 1
      %p231 = por %p229, %p230
      %p232 = scmp.ne.s32.totalorder %s224, %s227
      %p233 = scmp.eq.s32.totalorder %s20, 0
      %p234 = por %p232, %p233
      %p235 = scmp.ne.s32.totalorder %s224, %s227
      %p236 = scmp.eq.s32.totalorder %s25, 1
      %p237 = por %p235, %p236
      %p238 = scmp.ne.s32.totalorder %s227, %s228
      %p239 = scmp.eq.s32.totalorder %s25, 0
      %p240 = por %p238, %p239
      %p241 = scmp.ne.s32.totalorder %s227, %s228
      %p242 = scmp.eq.s32.totalorder %s26, 1
      %p243 = por %p241, %p242
      %p245 = scmp.ne.s32.totalorder %s228, %s244
      %p246 = scmp.eq.s32.totalorder %s26, 0
      %p247 = por %p245, %p246
      %p248 = scmp.le.s32.totalorder 1, %s20
      %p249 = scmp.lt.s32.totalorder %s20, 3
      %p250 = pnand %p248, %p249
      %p251 = pneg %p250
      // Predicated region
      $region9: #{run.3} parent=5 // pred_check
        _
      $region10: #{run.3} parent=5 // pred_check_branch
        %253 = sbr.rel (%p250) target = $region12
      $region11: #{run.3} parent=5 // pred_region
        %s254 = ssub.s32 %s20, 1
        // Predicated region
        $region13: #{run.3} parent=11 // pred_check
          %p255 = pneg %p67
        $region14: #{run.3} parent=11 // pred_check_branch
          %257 = sbr.rel (%p255) target = $region16
        $region15: #{run.3} parent=11 // pred_region
          _
        $region16: #{run.3} parent=11 // pred_fallthru
          _
        // Predicated region
        $region17: #{run.3} parent=11 // pred_check
          %p258 = pneg %p88
        $region18: #{run.3} parent=11 // pred_check_branch
          %260 = sbr.rel (%p258) target = $region20
        $region19: #{run.3} parent=11 // pred_region
          _
        $region20: #{run.3} parent=11 // pred_fallthru
          _
        // Predicated region
        $region21: #{run.3} parent=11 // pred_check
          %p261 = pneg %p109
        $region22: #{run.3} parent=11 // pred_check_branch
          %263 = sbr.rel (%p261) target = $region24
        $region23: #{run.3} parent=11 // pred_region
          _
        $region24: #{run.3} parent=11 // pred_fallthru
          _
        // Predicated region
        $region25: #{run.3} parent=11 // pred_check
          %p264 = pneg %p130
        $region26: #{run.3} parent=11 // pred_check_branch
          %266 = sbr.rel (%p264) target = $region28
        $region27: #{run.3} parent=11 // pred_region
          _
        $region28: #{run.3} parent=11 // pred_fallthru
          _
        // Predicated region
        $region29: #{run.3} parent=11 // pred_check
          %p267 = pneg %p151
        $region30: #{run.3} parent=11 // pred_check_branch
          %269 = sbr.rel (%p267) target = $region32
        $region31: #{run.3} parent=11 // pred_region
          _
        $region32: #{run.3} parent=11 // pred_fallthru
          _
        // Predicated region
        $region33: #{run.3} parent=11 // pred_check
          %p270 = pneg %p172
        $region34: #{run.3} parent=11 // pred_check_branch
          %272 = sbr.rel (%p270) target = $region36
        $region35: #{run.3} parent=11 // pred_region
          _
        $region36: #{run.3} parent=11 // pred_fallthru
          _
        // Predicated region
        $region37: #{run.3} parent=11 // pred_check
          %p273 = pneg %p193
        $region38: #{run.3} parent=11 // pred_check_branch
          %275 = sbr.rel (%p273) target = $region40
        $region39: #{run.3} parent=11 // pred_region
          _
        $region40: #{run.3} parent=11 // pred_fallthru
          _
        // Predicated region
        $region41: #{run.3} parent=11 // pred_check
          %p276 = pneg %p214
        $region42: #{run.3} parent=11 // pred_check_branch
          %278 = sbr.rel (%p276) target = $region44
        $region43: #{run.3} parent=11 // pred_region
          _
        $region44: #{run.3} parent=11 // pred_fallthru
          _
      $region12: #{run.3} parent=5 // pred_fallthru
        _
      %p279 = scmp.lt.s32.totalorder %s20, 2
      // Predicated region
      $region45: #{run.3} parent=5 // pred_check
        %p280 = pneg %p279
      $region46: #{run.3} parent=5 // pred_check_branch
        %282 = sbr.rel (%p280) target = $region48
      $region47: #{run.3} parent=5 // pred_region
        // Predicated region
        $region49: #{run.3} parent=47 // pred_check
          %p283 = pneg %p40
        $region50: #{run.3} parent=47 // pred_check_branch
          %285 = sbr.rel (%p283) target = $region52
        $region51: #{run.3} parent=47 // pred_region
          %p286 = scmp.lt.s32.totalorder %s20, 1
          %s287 = scalar_select %p286, %s20, 1
          %s288 = smul.addr %s287, 2
          %s289 = smul.addr %s288, 8
          %s290 = scalar_lea.vmem %s0, %s289
        $region52: #{run.3} parent=47 // pred_fallthru
          _
      $region48: #{run.3} parent=5 // pred_fallthru
        _
      %p291 = scmp.le.s32.totalorder 1, %s20
      %p292 = scmp.lt.s32.totalorder %s20, 3
      %p293 = pnand %p291, %p292
      %p294 = pneg %p293
      // Predicated region
      $region53: #{run.3} parent=5 // pred_check
        _
      $region54: #{run.3} parent=5 // pred_check_branch
        %296 = sbr.rel (%p293) target = $region56
      $region55: #{run.3} parent=5 // pred_region
        %s297 = ssub.s32 %s20, 1
        %p298 = scmp.lt.s32.totalorder %s25, 1
        %s299 = scalar_select %p298, %s25, 1
        %s300 = smul.addr %s299, 2
        %s301 = smul.addr %s300, 8
        %s302 = scalar_lea.vmem %s0, %s301
        %p303 = pneg %p46
        %p304 = pneg %p43
        %p305 = pneg %p67
        %p306 = pneg %p64
        %p307 = pneg %p88
        %p308 = pneg %p85
        %p309 = pneg %p109
        %p310 = pneg %p106
        %p311 = pneg %p130
        %p312 = pneg %p127
        %p313 = pneg %p151
        %p314 = pneg %p148
        %p315 = pneg %p172
        %p316 = pneg %p169
        %p317 = pneg %p193
        %p318 = pneg %p190
        %p319 = pneg %p214
        %p320 = pneg %p211
        %p321 = pneg %p240
        %p322 = pneg %p237
        %s323 = sand.u32 %s227, 1
        %s324 = scalar_lea.sflag [#allocation4], %s323
        %s325 = sand.u32 %s227, 1
        %s326 = scalar_lea.vmem [#allocation3], %s325
        %p327 = scmp.lt.s32.totalorder %s25, 1
        %s328 = scalar_select %p327, %s25, 1
        %s329 = smul.addr %s328, 2
        %s330 = smul.addr %s329, 8
        %s331 = scalar_lea.vmem %s0, %s330
        %v332 = vld [vmem:[%s3] sm:$0x1]
        %v333 = vld [vmem:[%s4] sm:$0x1]
        %v334 = vld [vmem:[%s331] sm:$0xff]
        %v335 = vld [vmem:[%s331 + $0x8] sm:$0xff]
        %v336 = vld [vmem:[%s1] sm:$0xff]
        %v337 = vld [vmem:[%s1 + $0x8] sm:$0xff]
        %v338 = vld [vmem:[%s1 + $0x10] sm:$0xff]
        %v339 = vld [vmem:[%s1 + $0x18] sm:$0xff]
        %v340 = vld [vmem:[%s2] sm:$0x1]
        %v342 = vlaneseq
        %v343 = vshrl.u32 %v342, 7
        %v344 = vsub.s32 0, %v343
        %v345 = vrot.slane %v340, %v344
        %vm347 = vcmask 261120
        %v349 = vsel %vm347, %v334, 0
        %v352 = vsel %vm347, %v335, 0
        %354 = vmatprep.subr.mxu0 0.0
        %355 = vmatpush1.msra.mxu0 0.0
        %356 = vmatprep.subr.mxu0 0.0
        %357 = vmatpush1.msra.mxu0 0.0
        %358 = vmatprep.subr.mxu0 0.0
        %359 = vmatpush1.msra.mxu0 0.0
        %360 = vmatprep.subr.mxu0 0.0
        %361 = vmatpush1.msra.mxu0 0.0
        %362 = vmatprep.subr.mxu0 0.0
        %363 = vmatpush1.msra.mxu0 0.0
        %364 = vmatprep.subr.mxu0 0.0
        %365 = vmatpush1.msra.mxu0 0.0
        %366 = vmatprep.subr.mxu0 0.0
        %367 = vmatpush1.msra.mxu0 0.0
        %368 = vmatprep.subr.mxu0 0.0
        %369 = vmatpush1.msra.mxu0 0.0
        %370 = vmatprep.subr.mxu0 0.0
        %371 = vmatpush1.msra.mxu0 0.0
        %372 = vmatprep.subr.mxu0 0.0
        %373 = vmatpush1.msra.mxu0 0.0
        %374 = vmatprep.subr.mxu0 0.0
        %375 = vmatpush1.msra.mxu0 0.0
        %376 = vmatprep.subr.mxu0 0.0
        %377 = vmatpush1.msra.mxu0 0.0
        %378 = vmatprep.subr.mxu0 0.0
        %379 = vmatpush1.msra.mxu0 %v339
        %380 = vmatprep.subr.mxu0 0.0
        %381 = vmatpush1.msra.mxu0 %v338
        %382 = vmatprep.subr.mxu0 0.0
        %383 = vmatpush1.msra.mxu0 %v337
        %384 = vmatprep.subr.mxu0 0.0
        %385 = vmatpush1.msra.mxu0 %v336
        %386 = vmatprep.subr.mxu0 0.0
        %387 = vmatpush2.msra.mxu0 0.0
        %388 = vmatprep.subr.mxu0 0.0
        %389 = vmatpush2.msra.mxu0 0.0
        %390 = vmatprep.subr.mxu0 0.0
        %391 = vmatpush2.msra.mxu0 0.0
        %392 = vmatprep.subr.mxu0 0.0
        %393 = vmatpush2.msra.mxu0 0.0
        %394 = vmatprep.subr.mxu0 0.0
        %395 = vmatpush2.msra.mxu0 0.0
        %396 = vmatprep.subr.mxu0 0.0
        %397 = vmatpush2.msra.mxu0 0.0
        %398 = vmatprep.subr.mxu0 0.0
        %399 = vmatpush2.msra.mxu0 0.0
        %400 = vmatprep.subr.mxu0 0.0
        %401 = vmatpush2.msra.mxu0 0.0
        %402 = vmatprep.subr.mxu0 0.0
        %403 = vmatpush2.msra.mxu0 0.0
        %404 = vmatprep.subr.mxu0 0.0
        %405 = vmatpush2.msra.mxu0 0.0
        %406 = vmatprep.subr.mxu0 0.0
        %407 = vmatpush2.msra.mxu0 0.0
        %408 = vmatprep.subr.mxu0 0.0
        %409 = vmatpush2.msra.mxu0 0.0
        %410 = vmatprep.subr.mxu0 0.0
        %411 = vmatpush2.msra.mxu0 0.0
        %412 = vmatprep.subr.mxu0 0.0
        %413 = vmatpush2.msra.mxu0 0.0
        %414 = vmatprep.subr.mxu0 0.0
        %415 = vmatpush2.msra.mxu0 0.0
        %416 = vmatprep.subr.mxu0 0.0
        %417 = vmatpush2.msra.mxu0 0.0
        %418 = vmatprep.mubr.f32.mxu0 0.0
        %419 = vmatmul.mubr.f32.gmra.mxu0 %v349
        %v420 = vpop.f32.mrf.mxu0
        %v421 = vadd.f32 %v345, %v420
        %v422 = vpop.f32.mrf.mxu0
        %423 = vmatprep.mubr.f32.mxu0 0.0
        %424 = vmatmul.mubr.f32.gmra.mxu0 %v352
        %v425 = vpop.f32.mrf.mxu0
        %v426 = vadd.f32 %v345, %v425
        %v427 = vpop.f32.mrf.mxu0
        %428 = vdwg.mxu0
        %430 = vrot.lane.b32.xlu0 %v421, 120
        %v431 = vpop.permute.xlu0 %430
        %432 = vrot.lane.b32.xlu0 %v421, 112
        %v433 = vpop.permute.xlu0 %432
        %434 = vrot.lane.b32.xlu0 %v421, 104
        %v435 = vpop.permute.xlu0 %434
        %436 = vrot.lane.b32.xlu0 %v421, 96
        %v437 = vpop.permute.xlu0 %436
        %vm438 = vcmask 64512
        %v439 = vsel %vm438, %v421, 0
        %v441 = vsel %vm438, %v437, 0
        %443 = vmatprep.subr.mxu0 0.0
        %444 = vmatpush1.xpose.msra.mxu0 0.0
        %445 = vmatprep.subr.mxu0 0.0
        %446 = vmatpush1.xpose.msra.mxu0 0.0
        %447 = vmatprep.subr.mxu0 0.0
        %448 = vmatpush1.xpose.msra.mxu0 0.0
        %449 = vmatprep.subr.mxu0 0.0
        %450 = vmatpush1.xpose.msra.mxu0 0.0
        %451 = vmatprep.subr.mxu0 0.0
        %452 = vmatpush1.xpose.msra.mxu0 0.0
        %453 = vmatprep.subr.mxu0 0.0
        %454 = vmatpush1.xpose.msra.mxu0 0.0
        %455 = vmatprep.subr.mxu0 0.0
        %456 = vmatpush1.xpose.msra.mxu0 0.0
        %457 = vmatprep.subr.mxu0 0.0
        %458 = vmatpush1.xpose.msra.mxu0 0.0
        %459 = vmatprep.subr.mxu0 0.0
        %460 = vmatpush1.xpose.msra.mxu0 0.0
        %461 = vmatprep.subr.mxu0 0.0
        %462 = vmatpush1.xpose.msra.mxu0 0.0
        %463 = vmatprep.subr.mxu0 0.0
        %464 = vmatpush1.xpose.msra.mxu0 0.0
        %465 = vmatprep.subr.mxu0 0.0
        %466 = vmatpush1.xpose.msra.mxu0 0.0
        %467 = vmatprep.subr.mxu0 0.0
        %468 = vmatpush1.xpose.msra.mxu0 0.0
        %469 = vmatprep.subr.mxu0 0.0
        %470 = vmatpush1.xpose.msra.mxu0 0.0
        %471 = vmatprep.subr.mxu0 0.0
        %472 = vmatpush1.xpose.msra.mxu0 0.0
        %473 = vmatprep.subr.mxu0 0.0
        %474 = vmatpush1.xpose.msra.mxu0 %v441
        %475 = vmatprep.subr.mxu0 0.0
        %476 = vmatpush2.xpose.msra.mxu0 0.0
        %477 = vmatprep.subr.mxu0 0.0
        %478 = vmatpush2.xpose.msra.mxu0 0.0
        %479 = vmatprep.subr.mxu0 0.0
        %480 = vmatpush2.xpose.msra.mxu0 0.0
        %481 = vmatprep.subr.mxu0 0.0
        %482 = vmatpush2.xpose.msra.mxu0 0.0
        %483 = vmatprep.subr.mxu0 0.0
        %484 = vmatpush2.xpose.msra.mxu0 0.0
        %485 = vmatprep.subr.mxu0 0.0
        %486 = vmatpush2.xpose.msra.mxu0 0.0
        %487 = vmatprep.subr.mxu0 0.0
        %488 = vmatpush2.xpose.msra.mxu0 0.0
        %489 = vmatprep.subr.mxu0 0.0
        %490 = vmatpush2.xpose.msra.mxu0 0.0
        %491 = vmatprep.subr.mxu0 0.0
        %492 = vmatpush2.xpose.msra.mxu0 0.0
        %493 = vmatprep.subr.mxu0 0.0
        %494 = vmatpush2.xpose.msra.mxu0 0.0
        %495 = vmatprep.subr.mxu0 0.0
        %496 = vmatpush2.xpose.msra.mxu0 0.0
        %497 = vmatprep.subr.mxu0 0.0
        %498 = vmatpush2.xpose.msra.mxu0 0.0
        %499 = vmatprep.subr.mxu0 0.0
        %500 = vmatpush2.xpose.msra.mxu0 0.0
        %501 = vmatprep.subr.mxu0 0.0
        %502 = vmatpush2.xpose.msra.mxu0 0.0
        %503 = vmatprep.subr.mxu0 0.0
        %504 = vmatpush2.xpose.msra.mxu0 0.0
        %505 = vmatprep.subr.mxu0 0.0
        %506 = vmatpush2.xpose.msra.mxu0 0.0
        %507 = vmatprep.mubr.f32.mxu0 0.0
        %508 = vmatmul.mubr.f32.gmra.mxu0 %v439
        %v509 = vpop.f32.mrf.mxu0
        %v510 = vadd.f32 0.0, %v509
        %v511 = vpop.f32.mrf.mxu0
        %512 = vdwg.mxu0
        %513 = vrot.lane.b32.xlu0 %v431, 96
        %v514 = vpop.permute.xlu0 %513
        %v515 = vsel %vm438, %v431, 0
        %v517 = vsel %vm438, %v514, 0
        %519 = vmatprep.subr.mxu0 0.0
        %520 = vmatpush1.xpose.msra.mxu0 0.0
        %521 = vmatprep.subr.mxu0 0.0
        %522 = vmatpush1.xpose.msra.mxu0 0.0
        %523 = vmatprep.subr.mxu0 0.0
        %524 = vmatpush1.xpose.msra.mxu0 0.0
        %525 = vmatprep.subr.mxu0 0.0
        %526 = vmatpush1.xpose.msra.mxu0 0.0
        %527 = vmatprep.subr.mxu0 0.0
        %528 = vmatpush1.xpose.msra.mxu0 0.0
        %529 = vmatprep.subr.mxu0 0.0
        %530 = vmatpush1.xpose.msra.mxu0 0.0
        %531 = vmatprep.subr.mxu0 0.0
        %532 = vmatpush1.xpose.msra.mxu0 0.0
        %533 = vmatprep.subr.mxu0 0.0
        %534 = vmatpush1.xpose.msra.mxu0 0.0
        %535 = vmatprep.subr.mxu0 0.0
        %536 = vmatpush1.xpose.msra.mxu0 0.0
        %537 = vmatprep.subr.mxu0 0.0
        %538 = vmatpush1.xpose.msra.mxu0 0.0
        %539 = vmatprep.subr.mxu0 0.0
        %540 = vmatpush1.xpose.msra.mxu0 0.0
        %541 = vmatprep.subr.mxu0 0.0
        %542 = vmatpush1.xpose.msra.mxu0 0.0
        %543 = vmatprep.subr.mxu0 0.0
        %544 = vmatpush1.xpose.msra.mxu0 0.0
        %545 = vmatprep.subr.mxu0 0.0
        %546 = vmatpush1.xpose.msra.mxu0 0.0
        %547 = vmatprep.subr.mxu0 0.0
        %548 = vmatpush1.xpose.msra.mxu0 0.0
        %549 = vmatprep.subr.mxu0 0.0
        %550 = vmatpush1.xpose.msra.mxu0 %v517
        %551 = vmatprep.subr.mxu0 0.0
        %552 = vmatpush2.xpose.msra.mxu0 0.0
        %553 = vmatprep.subr.mxu0 0.0
        %554 = vmatpush2.xpose.msra.mxu0 0.0
        %555 = vmatprep.subr.mxu0 0.0
        %556 = vmatpush2.xpose.msra.mxu0 0.0
        %557 = vmatprep.subr.mxu0 0.0
        %558 = vmatpush2.xpose.msra.mxu0 0.0
        %559 = vmatprep.subr.mxu0 0.0
        %560 = vmatpush2.xpose.msra.mxu0 0.0
        %561 = vmatprep.subr.mxu0 0.0
        %562 = vmatpush2.xpose.msra.mxu0 0.0
        %563 = vmatprep.subr.mxu0 0.0
        %564 = vmatpush2.xpose.msra.mxu0 0.0
        %565 = vmatprep.subr.mxu0 0.0
        %566 = vmatpush2.xpose.msra.mxu0 0.0
        %567 = vmatprep.subr.mxu0 0.0
        %568 = vmatpush2.xpose.msra.mxu0 0.0
        %569 = vmatprep.subr.mxu0 0.0
        %570 = vmatpush2.xpose.msra.mxu0 0.0
        %571 = vmatprep.subr.mxu0 0.0
        %572 = vmatpush2.xpose.msra.mxu0 0.0
        %573 = vmatprep.subr.mxu0 0.0
        %574 = vmatpush2.xpose.msra.mxu0 0.0
        %575 = vmatprep.subr.mxu0 0.0
        %576 = vmatpush2.xpose.msra.mxu0 0.0
        %577 = vmatprep.subr.mxu0 0.0
        %578 = vmatpush2.xpose.msra.mxu0 0.0
        %579 = vmatprep.subr.mxu0 0.0
        %580 = vmatpush2.xpose.msra.mxu0 0.0
        %581 = vmatprep.subr.mxu0 0.0
        %582 = vmatpush2.xpose.msra.mxu0 0.0
        %583 = vmatprep.mubr.f32.mxu0 0.0
        %584 = vmatmul.mubr.f32.gmra.mxu0 %v515
        %v585 = vpop.f32.mrf.mxu0
        %v586 = vadd.f32 0.0, %v585
        %v587 = vpop.f32.mrf.mxu0
        %588 = vdwg.mxu0
        %589 = vrot.lane.b32.xlu0 %v433, 96
        %v590 = vpop.permute.xlu0 %589
        %v591 = vsel %vm438, %v433, 0
        %v593 = vsel %vm438, %v590, 0
        %595 = vmatprep.subr.mxu0 0.0
        %596 = vmatpush1.xpose.msra.mxu0 0.0
        %597 = vmatprep.subr.mxu0 0.0
        %598 = vmatpush1.xpose.msra.mxu0 0.0
        %599 = vmatprep.subr.mxu0 0.0
        %600 = vmatpush1.xpose.msra.mxu0 0.0
        %601 = vmatprep.subr.mxu0 0.0
        %602 = vmatpush1.xpose.msra.mxu0 0.0
        %603 = vmatprep.subr.mxu0 0.0
        %604 = vmatpush1.xpose.msra.mxu0 0.0
        %605 = vmatprep.subr.mxu0 0.0
        %606 = vmatpush1.xpose.msra.mxu0 0.0
        %607 = vmatprep.subr.mxu0 0.0
        %608 = vmatpush1.xpose.msra.mxu0 0.0
        %609 = vmatprep.subr.mxu0 0.0
        %610 = vmatpush1.xpose.msra.mxu0 0.0
        %611 = vmatprep.subr.mxu0 0.0
        %612 = vmatpush1.xpose.msra.mxu0 0.0
        %613 = vmatprep.subr.mxu0 0.0
        %614 = vmatpush1.xpose.msra.mxu0 0.0
        %615 = vmatprep.subr.mxu0 0.0
        %616 = vmatpush1.xpose.msra.mxu0 0.0
        %617 = vmatprep.subr.mxu0 0.0
        %618 = vmatpush1.xpose.msra.mxu0 0.0
        %619 = vmatprep.subr.mxu0 0.0
        %620 = vmatpush1.xpose.msra.mxu0 0.0
        %621 = vmatprep.subr.mxu0 0.0
        %622 = vmatpush1.xpose.msra.mxu0 0.0
        %623 = vmatprep.subr.mxu0 0.0
        %624 = vmatpush1.xpose.msra.mxu0 0.0
        %625 = vmatprep.subr.mxu0 0.0
        %626 = vmatpush1.xpose.msra.mxu0 %v593
        %627 = vmatprep.subr.mxu0 0.0
        %628 = vmatpush2.xpose.msra.mxu0 0.0
        %629 = vmatprep.subr.mxu0 0.0
        %630 = vmatpush2.xpose.msra.mxu0 0.0
        %631 = vmatprep.subr.mxu0 0.0
        %632 = vmatpush2.xpose.msra.mxu0 0.0
        %633 = vmatprep.subr.mxu0 0.0
        %634 = vmatpush2.xpose.msra.mxu0 0.0
        %635 = vmatprep.subr.mxu0 0.0
        %636 = vmatpush2.xpose.msra.mxu0 0.0
        %637 = vmatprep.subr.mxu0 0.0
        %638 = vmatpush2.xpose.msra.mxu0 0.0
        %639 = vmatprep.subr.mxu0 0.0
        %640 = vmatpush2.xpose.msra.mxu0 0.0
        %641 = vmatprep.subr.mxu0 0.0
        %642 = vmatpush2.xpose.msra.mxu0 0.0
        %643 = vmatprep.subr.mxu0 0.0
        %644 = vmatpush2.xpose.msra.mxu0 0.0
        %645 = vmatprep.subr.mxu0 0.0
        %646 = vmatpush2.xpose.msra.mxu0 0.0
        %647 = vmatprep.subr.mxu0 0.0
        %648 = vmatpush2.xpose.msra.mxu0 0.0
        %649 = vmatprep.subr.mxu0 0.0
        %650 = vmatpush2.xpose.msra.mxu0 0.0
        %651 = vmatprep.subr.mxu0 0.0
        %652 = vmatpush2.xpose.msra.mxu0 0.0
        %653 = vmatprep.subr.mxu0 0.0
        %654 = vmatpush2.xpose.msra.mxu0 0.0
        %655 = vmatprep.subr.mxu0 0.0
        %656 = vmatpush2.xpose.msra.mxu0 0.0
        %657 = vmatprep.subr.mxu0 0.0
        %658 = vmatpush2.xpose.msra.mxu0 0.0
        %659 = vmatprep.mubr.f32.mxu0 0.0
        %660 = vmatmul.mubr.f32.gmra.mxu0 %v591
        %v661 = vpop.f32.mrf.mxu0
        %v662 = vadd.f32 0.0, %v661
        %v663 = vpop.f32.mrf.mxu0
        %664 = vdwg.mxu0
        %665 = vrot.lane.b32.xlu0 %v435, 96
        %v666 = vpop.permute.xlu0 %665
        %v667 = vsel %vm438, %v435, 0
        %v669 = vsel %vm438, %v666, 0
        %671 = vmatprep.subr.mxu0 0.0
        %672 = vmatpush1.xpose.msra.mxu0 0.0
        %673 = vmatprep.subr.mxu0 0.0
        %674 = vmatpush1.xpose.msra.mxu0 0.0
        %675 = vmatprep.subr.mxu0 0.0
        %676 = vmatpush1.xpose.msra.mxu0 0.0
        %677 = vmatprep.subr.mxu0 0.0
        %678 = vmatpush1.xpose.msra.mxu0 0.0
        %679 = vmatprep.subr.mxu0 0.0
        %680 = vmatpush1.xpose.msra.mxu0 0.0
        %681 = vmatprep.subr.mxu0 0.0
        %682 = vmatpush1.xpose.msra.mxu0 0.0
        %683 = vmatprep.subr.mxu0 0.0
        %684 = vmatpush1.xpose.msra.mxu0 0.0
        %685 = vmatprep.subr.mxu0 0.0
        %686 = vmatpush1.xpose.msra.mxu0 0.0
        %687 = vmatprep.subr.mxu0 0.0
        %688 = vmatpush1.xpose.msra.mxu0 0.0
        %689 = vmatprep.subr.mxu0 0.0
        %690 = vmatpush1.xpose.msra.mxu0 0.0
        %691 = vmatprep.subr.mxu0 0.0
        %692 = vmatpush1.xpose.msra.mxu0 0.0
        %693 = vmatprep.subr.mxu0 0.0
        %694 = vmatpush1.xpose.msra.mxu0 0.0
        %695 = vmatprep.subr.mxu0 0.0
        %696 = vmatpush1.xpose.msra.mxu0 0.0
        %697 = vmatprep.subr.mxu0 0.0
        %698 = vmatpush1.xpose.msra.mxu0 0.0
        %699 = vmatprep.subr.mxu0 0.0
        %700 = vmatpush1.xpose.msra.mxu0 0.0
        %701 = vmatprep.subr.mxu0 0.0
        %702 = vmatpush1.xpose.msra.mxu0 %v669
        %703 = vmatprep.subr.mxu0 0.0
        %704 = vmatpush2.xpose.msra.mxu0 0.0
        %705 = vmatprep.subr.mxu0 0.0
        %706 = vmatpush2.xpose.msra.mxu0 0.0
        %707 = vmatprep.subr.mxu0 0.0
        %708 = vmatpush2.xpose.msra.mxu0 0.0
        %709 = vmatprep.subr.mxu0 0.0
        %710 = vmatpush2.xpose.msra.mxu0 0.0
        %711 = vmatprep.subr.mxu0 0.0
        %712 = vmatpush2.xpose.msra.mxu0 0.0
        %713 = vmatprep.subr.mxu0 0.0
        %714 = vmatpush2.xpose.msra.mxu0 0.0
        %715 = vmatprep.subr.mxu0 0.0
        %716 = vmatpush2.xpose.msra.mxu0 0.0
        %717 = vmatprep.subr.mxu0 0.0
        %718 = vmatpush2.xpose.msra.mxu0 0.0
        %719 = vmatprep.subr.mxu0 0.0
        %720 = vmatpush2.xpose.msra.mxu0 0.0
        %721 = vmatprep.subr.mxu0 0.0
        %722 = vmatpush2.xpose.msra.mxu0 0.0
        %723 = vmatprep.subr.mxu0 0.0
        %724 = vmatpush2.xpose.msra.mxu0 0.0
        %725 = vmatprep.subr.mxu0 0.0
        %726 = vmatpush2.xpose.msra.mxu0 0.0
        %727 = vmatprep.subr.mxu0 0.0
        %728 = vmatpush2.xpose.msra.mxu0 0.0
        %729 = vmatprep.subr.mxu0 0.0
        %730 = vmatpush2.xpose.msra.mxu0 0.0
        %731 = vmatprep.subr.mxu0 0.0
        %732 = vmatpush2.xpose.msra.mxu0 0.0
        %733 = vmatprep.subr.mxu0 0.0
        %734 = vmatpush2.xpose.msra.mxu0 0.0
        %735 = vmatprep.mubr.f32.mxu0 0.0
        %736 = vmatmul.mubr.f32.gmra.mxu0 %v667
        %v737 = vpop.f32.mrf.mxu0
        %v738 = vadd.f32 0.0, %v737
        %v739 = vpop.f32.mrf.mxu0
        %740 = vdwg.mxu0
        %v741 = vmul.f32 %v510, 0.35355338
        %v742 = vmul.f32 %v586, 0.35355338
        %v743 = vmul.f32 %v662, 0.35355338
        %v744 = vmul.f32 %v738, 0.35355338
        %v745 = vsel %vm438, %v741, -inf
        %746 = vmax.xlane.f32.xlu0 %v745
        %v747 = vpop.xlane.xlu0 %746
        %v748 = vsel %vm438, %v742, -inf
        %749 = vmax.xlane.f32.xlu0 %v748
        %v750 = vpop.xlane.xlu0 %749
        %v751 = vsel %vm438, %v743, -inf
        %752 = vmax.xlane.f32.xlu0 %v751
        %v753 = vpop.xlane.xlu0 %752
        %v754 = vsel %vm438, %v744, -inf
        %755 = vmax.xlane.f32.xlu0 %v754
        %v756 = vpop.xlane.xlu0 %755
        %v757 = vsub.f32 %v741, %v747
        %v758 = vsub.f32 %v742, %v750
        %v759 = vsub.f32 %v743, %v753
        %v760 = vsub.f32 %v744, %v756
        %v761 = vmul.f32 %v757, 1.442695
        %v762 = vpow.pop %v761
        %v763 = vmul.f32 %v758, 1.442695
        %v764 = vpow.pop %v763
        %v765 = vmul.f32 %v759, 1.442695
        %v766 = vpow.pop %v765
        %v767 = vmul.f32 %v760, 1.442695
        %v768 = vpow.pop %v767
        %v769 = vsel %vm438, %v762, 0.0
        %770 = vadd.xlane.f32.xlu0 %v769
        %v771 = vpop.xlane.xlu0 %770
        %v772 = vsel %vm438, %v764, 0.0
        %773 = vadd.xlane.f32.xlu0 %v772
        %v774 = vpop.xlane.xlu0 %773
        %v775 = vsel %vm438, %v766, 0.0
        %776 = vadd.xlane.f32.xlu0 %v775
        %v777 = vpop.xlane.xlu0 %776
        %v778 = vsel %vm438, %v768, 0.0
        %779 = vadd.xlane.f32.xlu0 %v778
        %v780 = vpop.xlane.xlu0 %779
        %v781 = vrcp.pop %v771
        %v782 = vrcp.pop %v774
        %v783 = vrcp.pop %v777
        %v784 = vrcp.pop %v780
        %v785 = vmul.f32 %v762, %v781
        %v786 = vmul.f32 %v764, %v782
        %v787 = vmul.f32 %v766, %v783
        %v788 = vmul.f32 %v768, %v784
        %789 = vrot.lane.b32.xlu0 %v421, 64
        %v790 = vpop.permute.xlu0 %789
        %v793 = vsel %vm438, %v785, 0
        %795 = vmatprep.subr.mxu0 0.0
        %796 = vmatpush1.msra.mxu0 0.0
        %797 = vmatprep.subr.mxu0 0.0
        %798 = vmatpush1.msra.mxu0 0.0
        %799 = vmatprep.subr.mxu0 0.0
        %800 = vmatpush1.msra.mxu0 0.0
        %801 = vmatprep.subr.mxu0 0.0
        %802 = vmatpush1.msra.mxu0 0.0
        %803 = vmatprep.subr.mxu0 0.0
        %804 = vmatpush1.msra.mxu0 0.0
        %805 = vmatprep.subr.mxu0 0.0
        %806 = vmatpush1.msra.mxu0 0.0
        %807 = vmatprep.subr.mxu0 0.0
        %808 = vmatpush1.msra.mxu0 0.0
        %809 = vmatprep.subr.mxu0 0.0
        %810 = vmatpush1.msra.mxu0 0.0
        %811 = vmatprep.subr.mxu0 0.0
        %812 = vmatpush1.msra.mxu0 0.0
        %813 = vmatprep.subr.mxu0 0.0
        %814 = vmatpush1.msra.mxu0 0.0
        %815 = vmatprep.subr.mxu0 0.0
        %816 = vmatpush1.msra.mxu0 0.0
        %817 = vmatprep.subr.mxu0 0.0
        %818 = vmatpush1.msra.mxu0 0.0
        %819 = vmatprep.subr.mxu0 0.0
        %820 = vmatpush1.msra.mxu0 0.0
        %821 = vmatprep.subr.mxu0 0.0
        %822 = vmatpush1.msra.mxu0 0.0
        %823 = vmatprep.subr.mxu0 0.0
        %824 = vmatpush1.msra.mxu0 0.0
        %825 = vmatprep.subr.mxu0 0.0
        %826 = vmatpush1.msra.mxu0 %v790
        %827 = vmatprep.subr.mxu0 0.0
        %828 = vmatpush2.msra.mxu0 0.0
        %829 = vmatprep.subr.mxu0 0.0
        %830 = vmatpush2.msra.mxu0 0.0
        %831 = vmatprep.subr.mxu0 0.0
        %832 = vmatpush2.msra.mxu0 0.0
        %833 = vmatprep.subr.mxu0 0.0
        %834 = vmatpush2.msra.mxu0 0.0
        %835 = vmatprep.subr.mxu0 0.0
        %836 = vmatpush2.msra.mxu0 0.0
        %837 = vmatprep.subr.mxu0 0.0
        %838 = vmatpush2.msra.mxu0 0.0
        %839 = vmatprep.subr.mxu0 0.0
        %840 = vmatpush2.msra.mxu0 0.0
        %841 = vmatprep.subr.mxu0 0.0
        %842 = vmatpush2.msra.mxu0 0.0
        %843 = vmatprep.subr.mxu0 0.0
        %844 = vmatpush2.msra.mxu0 0.0
        %845 = vmatprep.subr.mxu0 0.0
        %846 = vmatpush2.msra.mxu0 0.0
        %847 = vmatprep.subr.mxu0 0.0
        %848 = vmatpush2.msra.mxu0 0.0
        %849 = vmatprep.subr.mxu0 0.0
        %850 = vmatpush2.msra.mxu0 0.0
        %851 = vmatprep.subr.mxu0 0.0
        %852 = vmatpush2.msra.mxu0 0.0
        %853 = vmatprep.subr.mxu0 0.0
        %854 = vmatpush2.msra.mxu0 0.0
        %855 = vmatprep.subr.mxu0 0.0
        %856 = vmatpush2.msra.mxu0 0.0
        %857 = vmatprep.subr.mxu0 0.0
        %858 = vmatpush2.msra.mxu0 0.0
        %859 = vmatprep.mubr.f32.mxu0 0.0
        %860 = vmatmul.mubr.f32.gmra.mxu0 %v793
        %v861 = vpop.f32.mrf.mxu0
        %v862 = vadd.f32 0.0, %v861
        %v863 = vpop.f32.mrf.mxu0
        %864 = vdwg.mxu0
        %865 = vrot.lane.b32.xlu0 %v431, 64
        %v866 = vpop.permute.xlu0 %865
        %v869 = vsel %vm438, %v786, 0
        %871 = vmatprep.subr.mxu0 0.0
        %872 = vmatpush1.msra.mxu0 0.0
        %873 = vmatprep.subr.mxu0 0.0
        %874 = vmatpush1.msra.mxu0 0.0
        %875 = vmatprep.subr.mxu0 0.0
        %876 = vmatpush1.msra.mxu0 0.0
        %877 = vmatprep.subr.mxu0 0.0
        %878 = vmatpush1.msra.mxu0 0.0
        %879 = vmatprep.subr.mxu0 0.0
        %880 = vmatpush1.msra.mxu0 0.0
        %881 = vmatprep.subr.mxu0 0.0
        %882 = vmatpush1.msra.mxu0 0.0
        %883 = vmatprep.subr.mxu0 0.0
        %884 = vmatpush1.msra.mxu0 0.0
        %885 = vmatprep.subr.mxu0 0.0
        %886 = vmatpush1.msra.mxu0 0.0
        %887 = vmatprep.subr.mxu0 0.0
        %888 = vmatpush1.msra.mxu0 0.0
        %889 = vmatprep.subr.mxu0 0.0
        %890 = vmatpush1.msra.mxu0 0.0
        %891 = vmatprep.subr.mxu0 0.0
        %892 = vmatpush1.msra.mxu0 0.0
        %893 = vmatprep.subr.mxu0 0.0
        %894 = vmatpush1.msra.mxu0 0.0
        %895 = vmatprep.subr.mxu0 0.0
        %896 = vmatpush1.msra.mxu0 0.0
        %897 = vmatprep.subr.mxu0 0.0
        %898 = vmatpush1.msra.mxu0 0.0
        %899 = vmatprep.subr.mxu0 0.0
        %900 = vmatpush1.msra.mxu0 0.0
        %901 = vmatprep.subr.mxu0 0.0
        %902 = vmatpush1.msra.mxu0 %v866
        %903 = vmatprep.subr.mxu0 0.0
        %904 = vmatpush2.msra.mxu0 0.0
        %905 = vmatprep.subr.mxu0 0.0
        %906 = vmatpush2.msra.mxu0 0.0
        %907 = vmatprep.subr.mxu0 0.0
        %908 = vmatpush2.msra.mxu0 0.0
        %909 = vmatprep.subr.mxu0 0.0
        %910 = vmatpush2.msra.mxu0 0.0
        %911 = vmatprep.subr.mxu0 0.0
        %912 = vmatpush2.msra.mxu0 0.0
        %913 = vmatprep.subr.mxu0 0.0
        %914 = vmatpush2.msra.mxu0 0.0
        %915 = vmatprep.subr.mxu0 0.0
        %916 = vmatpush2.msra.mxu0 0.0
        %917 = vmatprep.subr.mxu0 0.0
        %918 = vmatpush2.msra.mxu0 0.0
        %919 = vmatprep.subr.mxu0 0.0
        %920 = vmatpush2.msra.mxu0 0.0
        %921 = vmatprep.subr.mxu0 0.0
        %922 = vmatpush2.msra.mxu0 0.0
        %923 = vmatprep.subr.mxu0 0.0
        %924 = vmatpush2.msra.mxu0 0.0
        %925 = vmatprep.subr.mxu0 0.0
        %926 = vmatpush2.msra.mxu0 0.0
        %927 = vmatprep.subr.mxu0 0.0
        %928 = vmatpush2.msra.mxu0 0.0
        %929 = vmatprep.subr.mxu0 0.0
        %930 = vmatpush2.msra.mxu0 0.0
        %931 = vmatprep.subr.mxu0 0.0
        %932 = vmatpush2.msra.mxu0 0.0
        %933 = vmatprep.subr.mxu0 0.0
        %934 = vmatpush2.msra.mxu0 0.0
        %935 = vmatprep.mubr.f32.mxu0 0.0
        %936 = vmatmul.mubr.f32.gmra.mxu0 %v869
        %v937 = vpop.f32.mrf.mxu0
        %v938 = vadd.f32 0.0, %v937
        %v939 = vpop.f32.mrf.mxu0
        %940 = vdwg.mxu0
        %941 = vrot.lane.b32.xlu0 %v433, 64
        %v942 = vpop.permute.xlu0 %941
        %v945 = vsel %vm438, %v787, 0
        %947 = vmatprep.subr.mxu0 0.0
        %948 = vmatpush1.msra.mxu0 0.0
        %949 = vmatprep.subr.mxu0 0.0
        %950 = vmatpush1.msra.mxu0 0.0
        %951 = vmatprep.subr.mxu0 0.0
        %952 = vmatpush1.msra.mxu0 0.0
        %953 = vmatprep.subr.mxu0 0.0
        %954 = vmatpush1.msra.mxu0 0.0
        %955 = vmatprep.subr.mxu0 0.0
        %956 = vmatpush1.msra.mxu0 0.0
        %957 = vmatprep.subr.mxu0 0.0
        %958 = vmatpush1.msra.mxu0 0.0
        %959 = vmatprep.subr.mxu0 0.0
        %960 = vmatpush1.msra.mxu0 0.0
        %961 = vmatprep.subr.mxu0 0.0
        %962 = vmatpush1.msra.mxu0 0.0
        %963 = vmatprep.subr.mxu0 0.0
        %964 = vmatpush1.msra.mxu0 0.0
        %965 = vmatprep.subr.mxu0 0.0
        %966 = vmatpush1.msra.mxu0 0.0
        %967 = vmatprep.subr.mxu0 0.0
        %968 = vmatpush1.msra.mxu0 0.0
        %969 = vmatprep.subr.mxu0 0.0
        %970 = vmatpush1.msra.mxu0 0.0
        %971 = vmatprep.subr.mxu0 0.0
        %972 = vmatpush1.msra.mxu0 0.0
        %973 = vmatprep.subr.mxu0 0.0
        %974 = vmatpush1.msra.mxu0 0.0
        %975 = vmatprep.subr.mxu0 0.0
        %976 = vmatpush1.msra.mxu0 0.0
        %977 = vmatprep.subr.mxu0 0.0
        %978 = vmatpush1.msra.mxu0 %v942
        %979 = vmatprep.subr.mxu0 0.0
        %980 = vmatpush2.msra.mxu0 0.0
        %981 = vmatprep.subr.mxu0 0.0
        %982 = vmatpush2.msra.mxu0 0.0
        %983 = vmatprep.subr.mxu0 0.0
        %984 = vmatpush2.msra.mxu0 0.0
        %985 = vmatprep.subr.mxu0 0.0
        %986 = vmatpush2.msra.mxu0 0.0
        %987 = vmatprep.subr.mxu0 0.0
        %988 = vmatpush2.msra.mxu0 0.0
        %989 = vmatprep.subr.mxu0 0.0
        %990 = vmatpush2.msra.mxu0 0.0
        %991 = vmatprep.subr.mxu0 0.0
        %992 = vmatpush2.msra.mxu0 0.0
        %993 = vmatprep.subr.mxu0 0.0
        %994 = vmatpush2.msra.mxu0 0.0
        %995 = vmatprep.subr.mxu0 0.0
        %996 = vmatpush2.msra.mxu0 0.0
        %997 = vmatprep.subr.mxu0 0.0
        %998 = vmatpush2.msra.mxu0 0.0
        %999 = vmatprep.subr.mxu0 0.0
        %1000 = vmatpush2.msra.mxu0 0.0
        %1001 = vmatprep.subr.mxu0 0.0
        %1002 = vmatpush2.msra.mxu0 0.0
        %1003 = vmatprep.subr.mxu0 0.0
        %1004 = vmatpush2.msra.mxu0 0.0
        %1005 = vmatprep.subr.mxu0 0.0
        %1006 = vmatpush2.msra.mxu0 0.0
        %1007 = vmatprep.subr.mxu0 0.0
        %1008 = vmatpush2.msra.mxu0 0.0
        %1009 = vmatprep.subr.mxu0 0.0
        %1010 = vmatpush2.msra.mxu0 0.0
        %1011 = vmatprep.mubr.f32.mxu0 0.0
        %1012 = vmatmul.mubr.f32.gmra.mxu0 %v945
        %v1013 = vpop.f32.mrf.mxu0
        %v1014 = vadd.f32 0.0, %v1013
        %v1015 = vpop.f32.mrf.mxu0
        %1016 = vdwg.mxu0
        %1017 = vrot.lane.b32.xlu0 %v435, 64
        %v1018 = vpop.permute.xlu0 %1017
        %v1021 = vsel %vm438, %v788, 0
        %1023 = vmatprep.subr.mxu0 0.0
        %1024 = vmatpush1.msra.mxu0 0.0
        %1025 = vmatprep.subr.mxu0 0.0
        %1026 = vmatpush1.msra.mxu0 0.0
        %1027 = vmatprep.subr.mxu0 0.0
        %1028 = vmatpush1.msra.mxu0 0.0
        %1029 = vmatprep.subr.mxu0 0.0
        %1030 = vmatpush1.msra.mxu0 0.0
        %1031 = vmatprep.subr.mxu0 0.0
        %1032 = vmatpush1.msra.mxu0 0.0
        %1033 = vmatprep.subr.mxu0 0.0
        %1034 = vmatpush1.msra.mxu0 0.0
        %1035 = vmatprep.subr.mxu0 0.0
        %1036 = vmatpush1.msra.mxu0 0.0
        %1037 = vmatprep.subr.mxu0 0.0
        %1038 = vmatpush1.msra.mxu0 0.0
        %1039 = vmatprep.subr.mxu0 0.0
        %1040 = vmatpush1.msra.mxu0 0.0
        %1041 = vmatprep.subr.mxu0 0.0
        %1042 = vmatpush1.msra.mxu0 0.0
        %1043 = vmatprep.subr.mxu0 0.0
        %1044 = vmatpush1.msra.mxu0 0.0
        %1045 = vmatprep.subr.mxu0 0.0
        %1046 = vmatpush1.msra.mxu0 0.0
        %1047 = vmatprep.subr.mxu0 0.0
        %1048 = vmatpush1.msra.mxu0 0.0
        %1049 = vmatprep.subr.mxu0 0.0
        %1050 = vmatpush1.msra.mxu0 0.0
        %1051 = vmatprep.subr.mxu0 0.0
        %1052 = vmatpush1.msra.mxu0 0.0
        %1053 = vmatprep.subr.mxu0 0.0
        %1054 = vmatpush1.msra.mxu0 %v1018
        %1055 = vmatprep.subr.mxu0 0.0
        %1056 = vmatpush2.msra.mxu0 0.0
        %1057 = vmatprep.subr.mxu0 0.0
        %1058 = vmatpush2.msra.mxu0 0.0
        %1059 = vmatprep.subr.mxu0 0.0
        %1060 = vmatpush2.msra.mxu0 0.0
        %1061 = vmatprep.subr.mxu0 0.0
        %1062 = vmatpush2.msra.mxu0 0.0
        %1063 = vmatprep.subr.mxu0 0.0
        %1064 = vmatpush2.msra.mxu0 0.0
        %1065 = vmatprep.subr.mxu0 0.0
        %1066 = vmatpush2.msra.mxu0 0.0
        %1067 = vmatprep.subr.mxu0 0.0
        %1068 = vmatpush2.msra.mxu0 0.0
        %1069 = vmatprep.subr.mxu0 0.0
        %1070 = vmatpush2.msra.mxu0 0.0
        %1071 = vmatprep.subr.mxu0 0.0
        %1072 = vmatpush2.msra.mxu0 0.0
        %1073 = vmatprep.subr.mxu0 0.0
        %1074 = vmatpush2.msra.mxu0 0.0
        %1075 = vmatprep.subr.mxu0 0.0
        %1076 = vmatpush2.msra.mxu0 0.0
        %1077 = vmatprep.subr.mxu0 0.0
        %1078 = vmatpush2.msra.mxu0 0.0
        %1079 = vmatprep.subr.mxu0 0.0
        %1080 = vmatpush2.msra.mxu0 0.0
        %1081 = vmatprep.subr.mxu0 0.0
        %1082 = vmatpush2.msra.mxu0 0.0
        %1083 = vmatprep.subr.mxu0 0.0
        %1084 = vmatpush2.msra.mxu0 0.0
        %1085 = vmatprep.subr.mxu0 0.0
        %1086 = vmatpush2.msra.mxu0 0.0
        %1087 = vmatprep.mubr.f32.mxu0 0.0
        %1088 = vmatmul.mubr.f32.gmra.mxu0 %v1021
        %v1089 = vpop.f32.mrf.mxu0
        %v1090 = vadd.f32 0.0, %v1089
        %v1091 = vpop.f32.mrf.mxu0
        %1092 = vdwg.mxu0
        %1094 = vrot.lane.b32.xlu0 %v938, 8
        %v1095 = vpop.permute.xlu0 %1094
        %1098 = vrot.lane.b32.xlu0 %v1014, 16
        %v1099 = vpop.permute.xlu0 %1098
        %1102 = vrot.lane.b32.xlu0 %v1090, 24
        %v1103 = vpop.permute.xlu0 %1102
        %v1105 = vsel %vm438, %v862, %v1095
        %vm1106 = vcmask 130048
        %v1107 = vsel %vm1106, %v1105, %v1099
        %vm1108 = vcmask 195584
        %v1109 = vsel %vm1108, %v1107, %v1103
        %v1110 = vsel %vm347, %v1109, -inf
        %v1111 = vrot.slane %v1110, 4
        %v1112 = vmax.f32 %v1110, %v1111
        %v1113 = vrot.slane %v1112, 2
        %v1114 = vmax.f32 %v1112, %v1113
        %v1115 = vrot.slane %v1114, 1
        %v1116 = vmax.f32 %v1114, %v1115
        %1118 = vrot.lane.b32.xlu0 %v426, 120
        %v1119 = vpop.permute.xlu0 %1118
        %1120 = vrot.lane.b32.xlu0 %v426, 112
        %v1121 = vpop.permute.xlu0 %1120
        %1122 = vrot.lane.b32.xlu0 %v426, 104
        %v1123 = vpop.permute.xlu0 %1122
        %1124 = vrot.lane.b32.xlu0 %v426, 96
        %v1125 = vpop.permute.xlu0 %1124
        %v1126 = vsel %vm438, %v426, 0
        %v1128 = vsel %vm438, %v1125, 0
        %1130 = vmatprep.subr.mxu0 0.0
        %1131 = vmatpush1.xpose.msra.mxu0 0.0
        %1132 = vmatprep.subr.mxu0 0.0
        %1133 = vmatpush1.xpose.msra.mxu0 0.0
        %1134 = vmatprep.subr.mxu0 0.0
        %1135 = vmatpush1.xpose.msra.mxu0 0.0
        %1136 = vmatprep.subr.mxu0 0.0
        %1137 = vmatpush1.xpose.msra.mxu0 0.0
        %1138 = vmatprep.subr.mxu0 0.0
        %1139 = vmatpush1.xpose.msra.mxu0 0.0
        %1140 = vmatprep.subr.mxu0 0.0
        %1141 = vmatpush1.xpose.msra.mxu0 0.0
        %1142 = vmatprep.subr.mxu0 0.0
        %1143 = vmatpush1.xpose.msra.mxu0 0.0
        %1144 = vmatprep.subr.mxu0 0.0
        %1145 = vmatpush1.xpose.msra.mxu0 0.0
        %1146 = vmatprep.subr.mxu0 0.0
        %1147 = vmatpush1.xpose.msra.mxu0 0.0
        %1148 = vmatprep.subr.mxu0 0.0
        %1149 = vmatpush1.xpose.msra.mxu0 0.0
        %1150 = vmatprep.subr.mxu0 0.0
        %1151 = vmatpush1.xpose.msra.mxu0 0.0
        %1152 = vmatprep.subr.mxu0 0.0
        %1153 = vmatpush1.xpose.msra.mxu0 0.0
        %1154 = vmatprep.subr.mxu0 0.0
        %1155 = vmatpush1.xpose.msra.mxu0 0.0
        %1156 = vmatprep.subr.mxu0 0.0
        %1157 = vmatpush1.xpose.msra.mxu0 0.0
        %1158 = vmatprep.subr.mxu0 0.0
        %1159 = vmatpush1.xpose.msra.mxu0 0.0
        %1160 = vmatprep.subr.mxu0 0.0
        %1161 = vmatpush1.xpose.msra.mxu0 %v1128
        %1162 = vmatprep.subr.mxu0 0.0
        %1163 = vmatpush2.xpose.msra.mxu0 0.0
        %1164 = vmatprep.subr.mxu0 0.0
        %1165 = vmatpush2.xpose.msra.mxu0 0.0
        %1166 = vmatprep.subr.mxu0 0.0
        %1167 = vmatpush2.xpose.msra.mxu0 0.0
        %1168 = vmatprep.subr.mxu0 0.0
        %1169 = vmatpush2.xpose.msra.mxu0 0.0
        %1170 = vmatprep.subr.mxu0 0.0
        %1171 = vmatpush2.xpose.msra.mxu0 0.0
        %1172 = vmatprep.subr.mxu0 0.0
        %1173 = vmatpush2.xpose.msra.mxu0 0.0
        %1174 = vmatprep.subr.mxu0 0.0
        %1175 = vmatpush2.xpose.msra.mxu0 0.0
        %1176 = vmatprep.subr.mxu0 0.0
        %1177 = vmatpush2.xpose.msra.mxu0 0.0
        %1178 = vmatprep.subr.mxu0 0.0
        %1179 = vmatpush2.xpose.msra.mxu0 0.0
        %1180 = vmatprep.subr.mxu0 0.0
        %1181 = vmatpush2.xpose.msra.mxu0 0.0
        %1182 = vmatprep.subr.mxu0 0.0
        %1183 = vmatpush2.xpose.msra.mxu0 0.0
        %1184 = vmatprep.subr.mxu0 0.0
        %1185 = vmatpush2.xpose.msra.mxu0 0.0
        %1186 = vmatprep.subr.mxu0 0.0
        %1187 = vmatpush2.xpose.msra.mxu0 0.0
        %1188 = vmatprep.subr.mxu0 0.0
        %1189 = vmatpush2.xpose.msra.mxu0 0.0
        %1190 = vmatprep.subr.mxu0 0.0
        %1191 = vmatpush2.xpose.msra.mxu0 0.0
        %1192 = vmatprep.subr.mxu0 0.0
        %1193 = vmatpush2.xpose.msra.mxu0 0.0
        %1194 = vmatprep.mubr.f32.mxu0 0.0
        %1195 = vmatmul.mubr.f32.gmra.mxu0 %v1126
        %v1196 = vpop.f32.mrf.mxu0
        %v1197 = vadd.f32 0.0, %v1196
        %v1198 = vpop.f32.mrf.mxu0
        %1199 = vdwg.mxu0
        %1200 = vrot.lane.b32.xlu0 %v1119, 96
        %v1201 = vpop.permute.xlu0 %1200
        %v1202 = vsel %vm438, %v1119, 0
        %v1204 = vsel %vm438, %v1201, 0
        %1206 = vmatprep.subr.mxu0 0.0
        %1207 = vmatpush1.xpose.msra.mxu0 0.0
        %1208 = vmatprep.subr.mxu0 0.0
        %1209 = vmatpush1.xpose.msra.mxu0 0.0
        %1210 = vmatprep.subr.mxu0 0.0
        %1211 = vmatpush1.xpose.msra.mxu0 0.0
        %1212 = vmatprep.subr.mxu0 0.0
        %1213 = vmatpush1.xpose.msra.mxu0 0.0
        %1214 = vmatprep.subr.mxu0 0.0
        %1215 = vmatpush1.xpose.msra.mxu0 0.0
        %1216 = vmatprep.subr.mxu0 0.0
        %1217 = vmatpush1.xpose.msra.mxu0 0.0
        %1218 = vmatprep.subr.mxu0 0.0
        %1219 = vmatpush1.xpose.msra.mxu0 0.0
        %1220 = vmatprep.subr.mxu0 0.0
        %1221 = vmatpush1.xpose.msra.mxu0 0.0
        %1222 = vmatprep.subr.mxu0 0.0
        %1223 = vmatpush1.xpose.msra.mxu0 0.0
        %1224 = vmatprep.subr.mxu0 0.0
        %1225 = vmatpush1.xpose.msra.mxu0 0.0
        %1226 = vmatprep.subr.mxu0 0.0
        %1227 = vmatpush1.xpose.msra.mxu0 0.0
        %1228 = vmatprep.subr.mxu0 0.0
        %1229 = vmatpush1.xpose.msra.mxu0 0.0
        %1230 = vmatprep.subr.mxu0 0.0
        %1231 = vmatpush1.xpose.msra.mxu0 0.0
        %1232 = vmatprep.subr.mxu0 0.0
        %1233 = vmatpush1.xpose.msra.mxu0 0.0
        %1234 = vmatprep.subr.mxu0 0.0
        %1235 = vmatpush1.xpose.msra.mxu0 0.0
        %1236 = vmatprep.subr.mxu0 0.0
        %1237 = vmatpush1.xpose.msra.mxu0 %v1204
        %1238 = vmatprep.subr.mxu0 0.0
        %1239 = vmatpush2.xpose.msra.mxu0 0.0
        %1240 = vmatprep.subr.mxu0 0.0
        %1241 = vmatpush2.xpose.msra.mxu0 0.0
        %1242 = vmatprep.subr.mxu0 0.0
        %1243 = vmatpush2.xpose.msra.mxu0 0.0
        %1244 = vmatprep.subr.mxu0 0.0
        %1245 = vmatpush2.xpose.msra.mxu0 0.0
        %1246 = vmatprep.subr.mxu0 0.0
        %1247 = vmatpush2.xpose.msra.mxu0 0.0
        %1248 = vmatprep.subr.mxu0 0.0
        %1249 = vmatpush2.xpose.msra.mxu0 0.0
        %1250 = vmatprep.subr.mxu0 0.0
        %1251 = vmatpush2.xpose.msra.mxu0 0.0
        %1252 = vmatprep.subr.mxu0 0.0
        %1253 = vmatpush2.xpose.msra.mxu0 0.0
        %1254 = vmatprep.subr.mxu0 0.0
        %1255 = vmatpush2.xpose.msra.mxu0 0.0
        %1256 = vmatprep.subr.mxu0 0.0
        %1257 = vmatpush2.xpose.msra.mxu0 0.0
        %1258 = vmatprep.subr.mxu0 0.0
        %1259 = vmatpush2.xpose.msra.mxu0 0.0
        %1260 = vmatprep.subr.mxu0 0.0
        %1261 = vmatpush2.xpose.msra.mxu0 0.0
        %1262 = vmatprep.subr.mxu0 0.0
        %1263 = vmatpush2.xpose.msra.mxu0 0.0
        %1264 = vmatprep.subr.mxu0 0.0
        %1265 = vmatpush2.xpose.msra.mxu0 0.0
        %1266 = vmatprep.subr.mxu0 0.0
        %1267 = vmatpush2.xpose.msra.mxu0 0.0
        %1268 = vmatprep.subr.mxu0 0.0
        %1269 = vmatpush2.xpose.msra.mxu0 0.0
        %1270 = vmatprep.mubr.f32.mxu0 0.0
        %1271 = vmatmul.mubr.f32.gmra.mxu0 %v1202
        %v1272 = vpop.f32.mrf.mxu0
        %v1273 = vadd.f32 0.0, %v1272
        %v1274 = vpop.f32.mrf.mxu0
        %1275 = vdwg.mxu0
        %1276 = vrot.lane.b32.xlu0 %v1121, 96
        %v1277 = vpop.permute.xlu0 %1276
        %v1278 = vsel %vm438, %v1121, 0
        %v1280 = vsel %vm438, %v1277, 0
        %1282 = vmatprep.subr.mxu0 0.0
        %1283 = vmatpush1.xpose.msra.mxu0 0.0
        %1284 = vmatprep.subr.mxu0 0.0
        %1285 = vmatpush1.xpose.msra.mxu0 0.0
        %1286 = vmatprep.subr.mxu0 0.0
        %1287 = vmatpush1.xpose.msra.mxu0 0.0
        %1288 = vmatprep.subr.mxu0 0.0
        %1289 = vmatpush1.xpose.msra.mxu0 0.0
        %1290 = vmatprep.subr.mxu0 0.0
        %1291 = vmatpush1.xpose.msra.mxu0 0.0
        %1292 = vmatprep.subr.mxu0 0.0
        %1293 = vmatpush1.xpose.msra.mxu0 0.0
        %1294 = vmatprep.subr.mxu0 0.0
        %1295 = vmatpush1.xpose.msra.mxu0 0.0
        %1296 = vmatprep.subr.mxu0 0.0
        %1297 = vmatpush1.xpose.msra.mxu0 0.0
        %1298 = vmatprep.subr.mxu0 0.0
        %1299 = vmatpush1.xpose.msra.mxu0 0.0
        %1300 = vmatprep.subr.mxu0 0.0
        %1301 = vmatpush1.xpose.msra.mxu0 0.0
        %1302 = vmatprep.subr.mxu0 0.0
        %1303 = vmatpush1.xpose.msra.mxu0 0.0
        %1304 = vmatprep.subr.mxu0 0.0
        %1305 = vmatpush1.xpose.msra.mxu0 0.0
        %1306 = vmatprep.subr.mxu0 0.0
        %1307 = vmatpush1.xpose.msra.mxu0 0.0
        %1308 = vmatprep.subr.mxu0 0.0
        %1309 = vmatpush1.xpose.msra.mxu0 0.0
        %1310 = vmatprep.subr.mxu0 0.0
        %1311 = vmatpush1.xpose.msra.mxu0 0.0
        %1312 = vmatprep.subr.mxu0 0.0
        %1313 = vmatpush1.xpose.msra.mxu0 %v1280
        %1314 = vmatprep.subr.mxu0 0.0
        %1315 = vmatpush2.xpose.msra.mxu0 0.0
        %1316 = vmatprep.subr.mxu0 0.0
        %1317 = vmatpush2.xpose.msra.mxu0 0.0
        %1318 = vmatprep.subr.mxu0 0.0
        %1319 = vmatpush2.xpose.msra.mxu0 0.0
        %1320 = vmatprep.subr.mxu0 0.0
        %1321 = vmatpush2.xpose.msra.mxu0 0.0
        %1322 = vmatprep.subr.mxu0 0.0
        %1323 = vmatpush2.xpose.msra.mxu0 0.0
        %1324 = vmatprep.subr.mxu0 0.0
        %1325 = vmatpush2.xpose.msra.mxu0 0.0
        %1326 = vmatprep.subr.mxu0 0.0
        %1327 = vmatpush2.xpose.msra.mxu0 0.0
        %1328 = vmatprep.subr.mxu0 0.0
        %1329 = vmatpush2.xpose.msra.mxu0 0.0
        %1330 = vmatprep.subr.mxu0 0.0
        %1331 = vmatpush2.xpose.msra.mxu0 0.0
        %1332 = vmatprep.subr.mxu0 0.0
        %1333 = vmatpush2.xpose.msra.mxu0 0.0
        %1334 = vmatprep.subr.mxu0 0.0
        %1335 = vmatpush2.xpose.msra.mxu0 0.0
        %1336 = vmatprep.subr.mxu0 0.0
        %1337 = vmatpush2.xpose.msra.mxu0 0.0
        %1338 = vmatprep.subr.mxu0 0.0
        %1339 = vmatpush2.xpose.msra.mxu0 0.0
        %1340 = vmatprep.subr.mxu0 0.0
        %1341 = vmatpush2.xpose.msra.mxu0 0.0
        %1342 = vmatprep.subr.mxu0 0.0
        %1343 = vmatpush2.xpose.msra.mxu0 0.0
        %1344 = vmatprep.subr.mxu0 0.0
        %1345 = vmatpush2.xpose.msra.mxu0 0.0
        %1346 = vmatprep.mubr.f32.mxu0 0.0
        %1347 = vmatmul.mubr.f32.gmra.mxu0 %v1278
        %v1348 = vpop.f32.mrf.mxu0
        %v1349 = vadd.f32 0.0, %v1348
        %v1350 = vpop.f32.mrf.mxu0
        %1351 = vdwg.mxu0
        %1352 = vrot.lane.b32.xlu0 %v1123, 96
        %v1353 = vpop.permute.xlu0 %1352
        %v1354 = vsel %vm438, %v1123, 0
        %v1356 = vsel %vm438, %v1353, 0
        %1358 = vmatprep.subr.mxu0 0.0
        %1359 = vmatpush1.xpose.msra.mxu0 0.0
        %1360 = vmatprep.subr.mxu0 0.0
        %1361 = vmatpush1.xpose.msra.mxu0 0.0
        %1362 = vmatprep.subr.mxu0 0.0
        %1363 = vmatpush1.xpose.msra.mxu0 0.0
        %1364 = vmatprep.subr.mxu0 0.0
        %1365 = vmatpush1.xpose.msra.mxu0 0.0
        %1366 = vmatprep.subr.mxu0 0.0
        %1367 = vmatpush1.xpose.msra.mxu0 0.0
        %1368 = vmatprep.subr.mxu0 0.0
        %1369 = vmatpush1.xpose.msra.mxu0 0.0
        %1370 = vmatprep.subr.mxu0 0.0
        %1371 = vmatpush1.xpose.msra.mxu0 0.0
        %1372 = vmatprep.subr.mxu0 0.0
        %1373 = vmatpush1.xpose.msra.mxu0 0.0
        %1374 = vmatprep.subr.mxu0 0.0
        %1375 = vmatpush1.xpose.msra.mxu0 0.0
        %1376 = vmatprep.subr.mxu0 0.0
        %1377 = vmatpush1.xpose.msra.mxu0 0.0
        %1378 = vmatprep.subr.mxu0 0.0
        %1379 = vmatpush1.xpose.msra.mxu0 0.0
        %1380 = vmatprep.subr.mxu0 0.0
        %1381 = vmatpush1.xpose.msra.mxu0 0.0
        %1382 = vmatprep.subr.mxu0 0.0
        %1383 = vmatpush1.xpose.msra.mxu0 0.0
        %1384 = vmatprep.subr.mxu0 0.0
        %1385 = vmatpush1.xpose.msra.mxu0 0.0
        %1386 = vmatprep.subr.mxu0 0.0
        %1387 = vmatpush1.xpose.msra.mxu0 0.0
        %1388 = vmatprep.subr.mxu0 0.0
        %1389 = vmatpush1.xpose.msra.mxu0 %v1356
        %1390 = vmatprep.subr.mxu0 0.0
        %1391 = vmatpush2.xpose.msra.mxu0 0.0
        %1392 = vmatprep.subr.mxu0 0.0
        %1393 = vmatpush2.xpose.msra.mxu0 0.0
        %1394 = vmatprep.subr.mxu0 0.0
        %1395 = vmatpush2.xpose.msra.mxu0 0.0
        %1396 = vmatprep.subr.mxu0 0.0
        %1397 = vmatpush2.xpose.msra.mxu0 0.0
        %1398 = vmatprep.subr.mxu0 0.0
        %1399 = vmatpush2.xpose.msra.mxu0 0.0
        %1400 = vmatprep.subr.mxu0 0.0
        %1401 = vmatpush2.xpose.msra.mxu0 0.0
        %1402 = vmatprep.subr.mxu0 0.0
        %1403 = vmatpush2.xpose.msra.mxu0 0.0
        %1404 = vmatprep.subr.mxu0 0.0
        %1405 = vmatpush2.xpose.msra.mxu0 0.0
        %1406 = vmatprep.subr.mxu0 0.0
        %1407 = vmatpush2.xpose.msra.mxu0 0.0
        %1408 = vmatprep.subr.mxu0 0.0
        %1409 = vmatpush2.xpose.msra.mxu0 0.0
        %1410 = vmatprep.subr.mxu0 0.0
        %1411 = vmatpush2.xpose.msra.mxu0 0.0
        %1412 = vmatprep.subr.mxu0 0.0
        %1413 = vmatpush2.xpose.msra.mxu0 0.0
        %1414 = vmatprep.subr.mxu0 0.0
        %1415 = vmatpush2.xpose.msra.mxu0 0.0
        %1416 = vmatprep.subr.mxu0 0.0
        %1417 = vmatpush2.xpose.msra.mxu0 0.0
        %1418 = vmatprep.subr.mxu0 0.0
        %1419 = vmatpush2.xpose.msra.mxu0 0.0
        %1420 = vmatprep.subr.mxu0 0.0
        %1421 = vmatpush2.xpose.msra.mxu0 0.0
        %1422 = vmatprep.mubr.f32.mxu0 0.0
        %1423 = vmatmul.mubr.f32.gmra.mxu0 %v1354
        %v1424 = vpop.f32.mrf.mxu0
        %v1425 = vadd.f32 0.0, %v1424
        %v1426 = vpop.f32.mrf.mxu0
        %1427 = vdwg.mxu0
        %v1428 = vmul.f32 %v1197, 0.35355338
        %v1429 = vmul.f32 %v1273, 0.35355338
        %v1430 = vmul.f32 %v1349, 0.35355338
        %v1431 = vmul.f32 %v1425, 0.35355338
        %v1432 = vsel %vm438, %v1428, -inf
        %1433 = vmax.xlane.f32.xlu0 %v1432
        %v1434 = vpop.xlane.xlu0 %1433
        %v1435 = vsel %vm438, %v1429, -inf
        %1436 = vmax.xlane.f32.xlu0 %v1435
        %v1437 = vpop.xlane.xlu0 %1436
        %v1438 = vsel %vm438, %v1430, -inf
        %1439 = vmax.xlane.f32.xlu0 %v1438
        %v1440 = vpop.xlane.xlu0 %1439
        %v1441 = vsel %vm438, %v1431, -inf
        %1442 = vmax.xlane.f32.xlu0 %v1441
        %v1443 = vpop.xlane.xlu0 %1442
        %v1444 = vsub.f32 %v1428, %v1434
        %v1445 = vsub.f32 %v1429, %v1437
        %v1446 = vsub.f32 %v1430, %v1440
        %v1447 = vsub.f32 %v1431, %v1443
        %v1448 = vmul.f32 %v1444, 1.442695
        %v1449 = vpow.pop %v1448
        %v1450 = vmul.f32 %v1445, 1.442695
        %v1451 = vpow.pop %v1450
        %v1452 = vmul.f32 %v1446, 1.442695
        %v1453 = vpow.pop %v1452
        %v1454 = vmul.f32 %v1447, 1.442695
        %v1455 = vpow.pop %v1454
        %v1456 = vsel %vm438, %v1449, 0.0
        %1457 = vadd.xlane.f32.xlu0 %v1456
        %v1458 = vpop.xlane.xlu0 %1457
        %v1459 = vsel %vm438, %v1451, 0.0
        %1460 = vadd.xlane.f32.xlu0 %v1459
        %v1461 = vpop.xlane.xlu0 %1460
        %v1462 = vsel %vm438, %v1453, 0.0
        %1463 = vadd.xlane.f32.xlu0 %v1462
        %v1464 = vpop.xlane.xlu0 %1463
        %v1465 = vsel %vm438, %v1455, 0.0
        %1466 = vadd.xlane.f32.xlu0 %v1465
        %v1467 = vpop.xlane.xlu0 %1466
        %v1468 = vrcp.pop %v1458
        %v1469 = vrcp.pop %v1461
        %v1470 = vrcp.pop %v1464
        %v1471 = vrcp.pop %v1467
        %v1472 = vmul.f32 %v1449, %v1468
        %v1473 = vmul.f32 %v1451, %v1469
        %v1474 = vmul.f32 %v1453, %v1470
        %v1475 = vmul.f32 %v1455, %v1471
        %1476 = vrot.lane.b32.xlu0 %v426, 64
        %v1477 = vpop.permute.xlu0 %1476
        %v1480 = vsel %vm438, %v1472, 0
        %1482 = vmatprep.subr.mxu0 0.0
        %1483 = vmatpush1.msra.mxu0 0.0
        %1484 = vmatprep.subr.mxu0 0.0
        %1485 = vmatpush1.msra.mxu0 0.0
        %1486 = vmatprep.subr.mxu0 0.0
        %1487 = vmatpush1.msra.mxu0 0.0
        %1488 = vmatprep.subr.mxu0 0.0
        %1489 = vmatpush1.msra.mxu0 0.0
        %1490 = vmatprep.subr.mxu0 0.0
        %1491 = vmatpush1.msra.mxu0 0.0
        %1492 = vmatprep.subr.mxu0 0.0
        %1493 = vmatpush1.msra.mxu0 0.0
        %1494 = vmatprep.subr.mxu0 0.0
        %1495 = vmatpush1.msra.mxu0 0.0
        %1496 = vmatprep.subr.mxu0 0.0
        %1497 = vmatpush1.msra.mxu0 0.0
        %1498 = vmatprep.subr.mxu0 0.0
        %1499 = vmatpush1.msra.mxu0 0.0
        %1500 = vmatprep.subr.mxu0 0.0
        %1501 = vmatpush1.msra.mxu0 0.0
        %1502 = vmatprep.subr.mxu0 0.0
        %1503 = vmatpush1.msra.mxu0 0.0
        %1504 = vmatprep.subr.mxu0 0.0
        %1505 = vmatpush1.msra.mxu0 0.0
        %1506 = vmatprep.subr.mxu0 0.0
        %1507 = vmatpush1.msra.mxu0 0.0
        %1508 = vmatprep.subr.mxu0 0.0
        %1509 = vmatpush1.msra.mxu0 0.0
        %1510 = vmatprep.subr.mxu0 0.0
        %1511 = vmatpush1.msra.mxu0 0.0
        %1512 = vmatprep.subr.mxu0 0.0
        %1513 = vmatpush1.msra.mxu0 %v1477
        %1514 = vmatprep.subr.mxu0 0.0
        %1515 = vmatpush2.msra.mxu0 0.0
        %1516 = vmatprep.subr.mxu0 0.0
        %1517 = vmatpush2.msra.mxu0 0.0
        %1518 = vmatprep.subr.mxu0 0.0
        %1519 = vmatpush2.msra.mxu0 0.0
        %1520 = vmatprep.subr.mxu0 0.0
        %1521 = vmatpush2.msra.mxu0 0.0
        %1522 = vmatprep.subr.mxu0 0.0
        %1523 = vmatpush2.msra.mxu0 0.0
        %1524 = vmatprep.subr.mxu0 0.0
        %1525 = vmatpush2.msra.mxu0 0.0
        %1526 = vmatprep.subr.mxu0 0.0
        %1527 = vmatpush2.msra.mxu0 0.0
        %1528 = vmatprep.subr.mxu0 0.0
        %1529 = vmatpush2.msra.mxu0 0.0
        %1530 = vmatprep.subr.mxu0 0.0
        %1531 = vmatpush2.msra.mxu0 0.0
        %1532 = vmatprep.subr.mxu0 0.0
        %1533 = vmatpush2.msra.mxu0 0.0
        %1534 = vmatprep.subr.mxu0 0.0
        %1535 = vmatpush2.msra.mxu0 0.0
        %1536 = vmatprep.subr.mxu0 0.0
        %1537 = vmatpush2.msra.mxu0 0.0
        %1538 = vmatprep.subr.mxu0 0.0
        %1539 = vmatpush2.msra.mxu0 0.0
        %1540 = vmatprep.subr.mxu0 0.0
        %1541 = vmatpush2.msra.mxu0 0.0
        %1542 = vmatprep.subr.mxu0 0.0
        %1543 = vmatpush2.msra.mxu0 0.0
        %1544 = vmatprep.subr.mxu0 0.0
        %1545 = vmatpush2.msra.mxu0 0.0
        %1546 = vmatprep.mubr.f32.mxu0 0.0
        %1547 = vmatmul.mubr.f32.gmra.mxu0 %v1480
        %v1548 = vpop.f32.mrf.mxu0
        %v1549 = vadd.f32 0.0, %v1548
        %v1550 = vpop.f32.mrf.mxu0
        %1551 = vdwg.mxu0
        %1552 = vrot.lane.b32.xlu0 %v1119, 64
        %v1553 = vpop.permute.xlu0 %1552
        %v1556 = vsel %vm438, %v1473, 0
        %1558 = vmatprep.subr.mxu0 0.0
        %1559 = vmatpush1.msra.mxu0 0.0
        %1560 = vmatprep.subr.mxu0 0.0
        %1561 = vmatpush1.msra.mxu0 0.0
        %1562 = vmatprep.subr.mxu0 0.0
        %1563 = vmatpush1.msra.mxu0 0.0
        %1564 = vmatprep.subr.mxu0 0.0
        %1565 = vmatpush1.msra.mxu0 0.0
        %1566 = vmatprep.subr.mxu0 0.0
        %1567 = vmatpush1.msra.mxu0 0.0
        %1568 = vmatprep.subr.mxu0 0.0
        %1569 = vmatpush1.msra.mxu0 0.0
        %1570 = vmatprep.subr.mxu0 0.0
        %1571 = vmatpush1.msra.mxu0 0.0
        %1572 = vmatprep.subr.mxu0 0.0
        %1573 = vmatpush1.msra.mxu0 0.0
        %1574 = vmatprep.subr.mxu0 0.0
        %1575 = vmatpush1.msra.mxu0 0.0
        %1576 = vmatprep.subr.mxu0 0.0
        %1577 = vmatpush1.msra.mxu0 0.0
        %1578 = vmatprep.subr.mxu0 0.0
        %1579 = vmatpush1.msra.mxu0 0.0
        %1580 = vmatprep.subr.mxu0 0.0
        %1581 = vmatpush1.msra.mxu0 0.0
        %1582 = vmatprep.subr.mxu0 0.0
        %1583 = vmatpush1.msra.mxu0 0.0
        %1584 = vmatprep.subr.mxu0 0.0
        %1585 = vmatpush1.msra.mxu0 0.0
        %1586 = vmatprep.subr.mxu0 0.0
        %1587 = vmatpush1.msra.mxu0 0.0
        %1588 = vmatprep.subr.mxu0 0.0
        %1589 = vmatpush1.msra.mxu0 %v1553
        %1590 = vmatprep.subr.mxu0 0.0
        %1591 = vmatpush2.msra.mxu0 0.0
        %1592 = vmatprep.subr.mxu0 0.0
        %1593 = vmatpush2.msra.mxu0 0.0
        %1594 = vmatprep.subr.mxu0 0.0
        %1595 = vmatpush2.msra.mxu0 0.0
        %1596 = vmatprep.subr.mxu0 0.0
        %1597 = vmatpush2.msra.mxu0 0.0
        %1598 = vmatprep.subr.mxu0 0.0
        %1599 = vmatpush2.msra.mxu0 0.0
        %1600 = vmatprep.subr.mxu0 0.0
        %1601 = vmatpush2.msra.mxu0 0.0
        %1602 = vmatprep.subr.mxu0 0.0
        %1603 = vmatpush2.msra.mxu0 0.0
        %1604 = vmatprep.subr.mxu0 0.0
        %1605 = vmatpush2.msra.mxu0 0.0
        %1606 = vmatprep.subr.mxu0 0.0
        %1607 = vmatpush2.msra.mxu0 0.0
        %1608 = vmatprep.subr.mxu0 0.0
        %1609 = vmatpush2.msra.mxu0 0.0
        %1610 = vmatprep.subr.mxu0 0.0
        %1611 = vmatpush2.msra.mxu0 0.0
        %1612 = vmatprep.subr.mxu0 0.0
        %1613 = vmatpush2.msra.mxu0 0.0
        %1614 = vmatprep.subr.mxu0 0.0
        %1615 = vmatpush2.msra.mxu0 0.0
        %1616 = vmatprep.subr.mxu0 0.0
        %1617 = vmatpush2.msra.mxu0 0.0
        %1618 = vmatprep.subr.mxu0 0.0
        %1619 = vmatpush2.msra.mxu0 0.0
        %1620 = vmatprep.subr.mxu0 0.0
        %1621 = vmatpush2.msra.mxu0 0.0
        %1622 = vmatprep.mubr.f32.mxu0 0.0
        %1623 = vmatmul.mubr.f32.gmra.mxu0 %v1556
        %v1624 = vpop.f32.mrf.mxu0
        %v1625 = vadd.f32 0.0, %v1624
        %v1626 = vpop.f32.mrf.mxu0
        %1627 = vdwg.mxu0
        %1628 = vrot.lane.b32.xlu0 %v1121, 64
        %v1629 = vpop.permute.xlu0 %1628
        %v1632 = vsel %vm438, %v1474, 0
        %1634 = vmatprep.subr.mxu0 0.0
        %1635 = vmatpush1.msra.mxu0 0.0
        %1636 = vmatprep.subr.mxu0 0.0
        %1637 = vmatpush1.msra.mxu0 0.0
        %1638 = vmatprep.subr.mxu0 0.0
        %1639 = vmatpush1.msra.mxu0 0.0
        %1640 = vmatprep.subr.mxu0 0.0
        %1641 = vmatpush1.msra.mxu0 0.0
        %1642 = vmatprep.subr.mxu0 0.0
        %1643 = vmatpush1.msra.mxu0 0.0
        %1644 = vmatprep.subr.mxu0 0.0
        %1645 = vmatpush1.msra.mxu0 0.0
        %1646 = vmatprep.subr.mxu0 0.0
        %1647 = vmatpush1.msra.mxu0 0.0
        %1648 = vmatprep.subr.mxu0 0.0
        %1649 = vmatpush1.msra.mxu0 0.0
        %1650 = vmatprep.subr.mxu0 0.0
        %1651 = vmatpush1.msra.mxu0 0.0
        %1652 = vmatprep.subr.mxu0 0.0
        %1653 = vmatpush1.msra.mxu0 0.0
        %1654 = vmatprep.subr.mxu0 0.0
        %1655 = vmatpush1.msra.mxu0 0.0
        %1656 = vmatprep.subr.mxu0 0.0
        %1657 = vmatpush1.msra.mxu0 0.0
        %1658 = vmatprep.subr.mxu0 0.0
        %1659 = vmatpush1.msra.mxu0 0.0
        %1660 = vmatprep.subr.mxu0 0.0
        %1661 = vmatpush1.msra.mxu0 0.0
        %1662 = vmatprep.subr.mxu0 0.0
        %1663 = vmatpush1.msra.mxu0 0.0
        %1664 = vmatprep.subr.mxu0 0.0
        %1665 = vmatpush1.msra.mxu0 %v1629
        %1666 = vmatprep.subr.mxu0 0.0
        %1667 = vmatpush2.msra.mxu0 0.0
        %1668 = vmatprep.subr.mxu0 0.0
        %1669 = vmatpush2.msra.mxu0 0.0
        %1670 = vmatprep.subr.mxu0 0.0
        %1671 = vmatpush2.msra.mxu0 0.0
        %1672 = vmatprep.subr.mxu0 0.0
        %1673 = vmatpush2.msra.mxu0 0.0
        %1674 = vmatprep.subr.mxu0 0.0
        %1675 = vmatpush2.msra.mxu0 0.0
        %1676 = vmatprep.subr.mxu0 0.0
        %1677 = vmatpush2.msra.mxu0 0.0
        %1678 = vmatprep.subr.mxu0 0.0
        %1679 = vmatpush2.msra.mxu0 0.0
        %1680 = vmatprep.subr.mxu0 0.0
        %1681 = vmatpush2.msra.mxu0 0.0
        %1682 = vmatprep.subr.mxu0 0.0
        %1683 = vmatpush2.msra.mxu0 0.0
        %1684 = vmatprep.subr.mxu0 0.0
        %1685 = vmatpush2.msra.mxu0 0.0
        %1686 = vmatprep.subr.mxu0 0.0
        %1687 = vmatpush2.msra.mxu0 0.0
        %1688 = vmatprep.subr.mxu0 0.0
        %1689 = vmatpush2.msra.mxu0 0.0
        %1690 = vmatprep.subr.mxu0 0.0
        %1691 = vmatpush2.msra.mxu0 0.0
        %1692 = vmatprep.subr.mxu0 0.0
        %1693 = vmatpush2.msra.mxu0 0.0
        %1694 = vmatprep.subr.mxu0 0.0
        %1695 = vmatpush2.msra.mxu0 0.0
        %1696 = vmatprep.subr.mxu0 0.0
        %1697 = vmatpush2.msra.mxu0 0.0
        %1698 = vmatprep.mubr.f32.mxu0 0.0
        %1699 = vmatmul.mubr.f32.gmra.mxu0 %v1632
        %v1700 = vpop.f32.mrf.mxu0
        %v1701 = vadd.f32 0.0, %v1700
        %v1702 = vpop.f32.mrf.mxu0
        %1703 = vdwg.mxu0
        %1704 = vrot.lane.b32.xlu0 %v1123, 64
        %v1705 = vpop.permute.xlu0 %1704
        %v1708 = vsel %vm438, %v1475, 0
        %1710 = vmatprep.subr.mxu0 0.0
        %1711 = vmatpush1.msra.mxu0 0.0
        %1712 = vmatprep.subr.mxu0 0.0
        %1713 = vmatpush1.msra.mxu0 0.0
        %1714 = vmatprep.subr.mxu0 0.0
        %1715 = vmatpush1.msra.mxu0 0.0
        %1716 = vmatprep.subr.mxu0 0.0
        %1717 = vmatpush1.msra.mxu0 0.0
        %1718 = vmatprep.subr.mxu0 0.0
        %1719 = vmatpush1.msra.mxu0 0.0
        %1720 = vmatprep.subr.mxu0 0.0
        %1721 = vmatpush1.msra.mxu0 0.0
        %1722 = vmatprep.subr.mxu0 0.0
        %1723 = vmatpush1.msra.mxu0 0.0
        %1724 = vmatprep.subr.mxu0 0.0
        %1725 = vmatpush1.msra.mxu0 0.0
        %1726 = vmatprep.subr.mxu0 0.0
        %1727 = vmatpush1.msra.mxu0 0.0
        %1728 = vmatprep.subr.mxu0 0.0
        %1729 = vmatpush1.msra.mxu0 0.0
        %1730 = vmatprep.subr.mxu0 0.0
        %1731 = vmatpush1.msra.mxu0 0.0
        %1732 = vmatprep.subr.mxu0 0.0
        %1733 = vmatpush1.msra.mxu0 0.0
        %1734 = vmatprep.subr.mxu0 0.0
        %1735 = vmatpush1.msra.mxu0 0.0
        %1736 = vmatprep.subr.mxu0 0.0
        %1737 = vmatpush1.msra.mxu0 0.0
        %1738 = vmatprep.subr.mxu0 0.0
        %1739 = vmatpush1.msra.mxu0 0.0
        %1740 = vmatprep.subr.mxu0 0.0
        %1741 = vmatpush1.msra.mxu0 %v1705
        %1742 = vmatprep.subr.mxu0 0.0
        %1743 = vmatpush2.msra.mxu0 0.0
        %1744 = vmatprep.subr.mxu0 0.0
        %1745 = vmatpush2.msra.mxu0 0.0
        %1746 = vmatprep.subr.mxu0 0.0
        %1747 = vmatpush2.msra.mxu0 0.0
        %1748 = vmatprep.subr.mxu0 0.0
        %1749 = vmatpush2.msra.mxu0 0.0
        %1750 = vmatprep.subr.mxu0 0.0
        %1751 = vmatpush2.msra.mxu0 0.0
        %1752 = vmatprep.subr.mxu0 0.0
        %1753 = vmatpush2.msra.mxu0 0.0
        %1754 = vmatprep.subr.mxu0 0.0
        %1755 = vmatpush2.msra.mxu0 0.0
        %1756 = vmatprep.subr.mxu0 0.0
        %1757 = vmatpush2.msra.mxu0 0.0
        %1758 = vmatprep.subr.mxu0 0.0
        %1759 = vmatpush2.msra.mxu0 0.0
        %1760 = vmatprep.subr.mxu0 0.0
        %1761 = vmatpush2.msra.mxu0 0.0
        %1762 = vmatprep.subr.mxu0 0.0
        %1763 = vmatpush2.msra.mxu0 0.0
        %1764 = vmatprep.subr.mxu0 0.0
        %1765 = vmatpush2.msra.mxu0 0.0
        %1766 = vmatprep.subr.mxu0 0.0
        %1767 = vmatpush2.msra.mxu0 0.0
        %1768 = vmatprep.subr.mxu0 0.0
        %1769 = vmatpush2.msra.mxu0 0.0
        %1770 = vmatprep.subr.mxu0 0.0
        %1771 = vmatpush2.msra.mxu0 0.0
        %1772 = vmatprep.subr.mxu0 0.0
        %1773 = vmatpush2.msra.mxu0 0.0
        %1774 = vmatprep.mubr.f32.mxu0 0.0
        %1775 = vmatmul.mubr.f32.gmra.mxu0 %v1708
        %v1776 = vpop.f32.mrf.mxu0
        %v1777 = vadd.f32 0.0, %v1776
        %v1778 = vpop.f32.mrf.mxu0
        %1779 = vdwg.mxu0
        %1781 = vrot.lane.b32.xlu0 %v1625, 8
        %v1782 = vpop.permute.xlu0 %1781
        %1785 = vrot.lane.b32.xlu0 %v1701, 16
        %v1786 = vpop.permute.xlu0 %1785
        %1789 = vrot.lane.b32.xlu0 %v1777, 24
        %v1790 = vpop.permute.xlu0 %1789
        %v1792 = vsel %vm438, %v1549, %v1782
        %v1793 = vsel %vm1106, %v1792, %v1786
        %v1794 = vsel %vm1108, %v1793, %v1790
        %v1795 = vsel %vm347, %v1794, -inf
        %v1796 = vrot.slane %v1795, 4
        %v1797 = vmax.f32 %v1795, %v1796
        %v1798 = vrot.slane %v1797, 2
        %v1799 = vmax.f32 %v1797, %v1798
        %v1800 = vrot.slane %v1799, 1
        %v1801 = vmax.f32 %v1799, %v1800
        %vm1802 = vcmask 1040384
        %v1803 = vsel %vm1802, %v1116, %v1801
        %v1806 = vmul.f32 %v421, %v437
        %v1807 = vmul.f32 %v421, %v1125
        %v1808 = vmul.f32 %v426, %v437
        %v1809 = vmul.f32 %v426, %v1125
        %v1810 = vsel %vm347, %v1806, 0.0
        %v1811 = vrot.slane %v1810, 4
        %v1812 = vadd.f32 %v1810, %v1811
        %v1813 = vrot.slane %v1812, 2
        %v1814 = vadd.f32 %v1812, %v1813
        %v1815 = vrot.slane %v1814, 1
        %v1816 = vadd.f32 %v1814, %v1815
        %v1817 = vsel %vm347, %v1807, 0.0
        %v1818 = vrot.slane %v1817, 4
        %v1819 = vadd.f32 %v1817, %v1818
        %v1820 = vrot.slane %v1819, 2
        %v1821 = vadd.f32 %v1819, %v1820
        %v1822 = vrot.slane %v1821, 1
        %v1823 = vadd.f32 %v1821, %v1822
        %v1824 = vsel %vm347, %v1808, 0.0
        %v1825 = vrot.slane %v1824, 4
        %v1826 = vadd.f32 %v1824, %v1825
        %v1827 = vrot.slane %v1826, 2
        %v1828 = vadd.f32 %v1826, %v1827
        %v1829 = vrot.slane %v1828, 1
        %v1830 = vadd.f32 %v1828, %v1829
        %v1831 = vsel %vm347, %v1809, 0.0
        %v1832 = vrot.slane %v1831, 4
        %v1833 = vadd.f32 %v1831, %v1832
        %v1834 = vrot.slane %v1833, 2
        %v1835 = vadd.f32 %v1833, %v1834
        %v1836 = vrot.slane %v1835, 1
        %v1837 = vadd.f32 %v1835, %v1836
        %v1838 = vmul.f32 %v1816, 0.35355338
        %v1839 = vmul.f32 %v1823, 0.35355338
        %v1840 = vmul.f32 %v1830, 0.35355338
        %v1841 = vmul.f32 %v1837, 0.35355338
        %v1842 = vsel %vm347, %v1838, -inf
        %v1843 = vsel %vm347, %v1839, -inf
        %v1844 = vmax.f32 %v1842, %v1843
        %v1845 = vsel %vm347, %v1840, -inf
        %v1846 = vsel %vm347, %v1841, -inf
        %v1847 = vmax.f32 %v1845, %v1846
        %v1848 = vsub.f32 %v1838, %v1844
        %v1849 = vsub.f32 %v1839, %v1844
        %v1850 = vsub.f32 %v1840, %v1847
        %v1851 = vsub.f32 %v1841, %v1847
        %v1852 = vmul.f32 %v1848, 1.442695
        %v1853 = vpow.pop %v1852
        %v1854 = vmul.f32 %v1849, 1.442695
        %v1855 = vpow.pop %v1854
        %v1856 = vmul.f32 %v1850, 1.442695
        %v1857 = vpow.pop %v1856
        %v1858 = vmul.f32 %v1851, 1.442695
        %v1859 = vpow.pop %v1858
        %v1864 = vrot.slane %v1855, 7
        %vm1865 = vcmask 1041409
        %v1866 = vsel %vm1865, %v1864, %v1853
        %v1867 = vrot.slane %v1859, 7
        %v1868 = vsel %vm1865, %v1867, %v1857
        %vm1871 = vcmask 254976
        %v1872 = vsel %vm1871, %v1866, 0.0
        %v1873 = vrot.slane %v1872, 4
        %v1874 = vadd.f32 %v1872, %v1873
        %v1875 = vrot.slane %v1874, 2
        %v1876 = vadd.f32 %v1874, %v1875
        %v1877 = vrot.slane %v1876, 1
        %v1878 = vadd.f32 %v1876, %v1877
        %v1879 = vsel %vm1871, %v1868, 0.0
        %v1880 = vrot.slane %v1879, 4
        %v1881 = vadd.f32 %v1879, %v1880
        %v1882 = vrot.slane %v1881, 2
        %v1883 = vadd.f32 %v1881, %v1882
        %v1884 = vrot.slane %v1883, 1
        %v1885 = vadd.f32 %v1883, %v1884
        %v1886 = vrcp.pop %v1878
        %v1887 = vrcp.pop %v1885
        %v1888 = vlaneseq
        %v1889 = vshrl.u32 %v1888, 7
        %v1890 = vsub.s32 0, %v1889
        %v1891 = vrot.slane %v1886, %v1890
        %v1892 = vlaneseq
        %v1893 = vshrl.u32 %v1892, 7
        %v1894 = vsub.s32 0, %v1893
        %v1895 = vrot.slane %v1887, %v1894
        %v1896 = vmul.f32 %v1853, %v1891
        %v1897 = vmul.f32 %v1855, %v1891
        %v1898 = vmul.f32 %v1857, %v1895
        %v1899 = vmul.f32 %v1859, %v1895
        %v1900 = vlaneseq
        %v1901 = vshrl.u32 %v1900, 7
        %v1902 = vsub.s32 0, %v1901
        %v1903 = vrot.slane %v1896, %v1902
        %v1904 = vlaneseq
        %v1905 = vshrl.u32 %v1904, 7
        %v1906 = vsub.s32 0, %v1905
        %v1907 = vrot.slane %v1897, %v1906
        %v1908 = vlaneseq
        %v1909 = vshrl.u32 %v1908, 7
        %v1910 = vsub.s32 0, %v1909
        %v1911 = vrot.slane %v1898, %v1910
        %v1912 = vlaneseq
        %v1913 = vshrl.u32 %v1912, 7
        %v1914 = vsub.s32 0, %v1913
        %v1915 = vrot.slane %v1899, %v1914
        %v1916 = vmul.f32 %v1903, %v790
        %v1917 = vmul.f32 %v1907, %v1477
        %v1918 = vmul.f32 %v1911, %v790
        %v1919 = vmul.f32 %v1915, %v1477
        %v1920 = vsel %vm347, %v1916, 0.0
        %v1921 = vsel %vm347, %v1917, 0.0
        %v1922 = vadd.f32 %v1920, %v1921
        %v1923 = vsel %vm347, %v1918, 0.0
        %v1924 = vsel %vm347, %v1919, 0.0
        %v1925 = vadd.f32 %v1923, %v1924
        %v1926 = vsel %vm347, %v1922, -inf
        %v1927 = vrot.slane %v1926, 4
        %v1928 = vmax.f32 %v1926, %v1927
        %v1929 = vrot.slane %v1928, 2
        %v1930 = vmax.f32 %v1928, %v1929
        %v1931 = vrot.slane %v1930, 1
        %v1932 = vmax.f32 %v1930, %v1931
        %v1933 = vsel %vm347, %v1925, -inf
        %v1934 = vrot.slane %v1933, 4
        %v1935 = vmax.f32 %v1933, %v1934
        %v1936 = vrot.slane %v1935, 2
        %v1937 = vmax.f32 %v1935, %v1936
        %v1938 = vrot.slane %v1937, 1
        %v1939 = vmax.f32 %v1937, %v1938
        %v1940 = vsel %vm1871, %v1803, 0.0
        %1941 = vadd.xlane.f32.xlu0 %v1940
        %v1942 = vpop.xlane.xlu0 %1941
        %v1943 = vrcp.pop 32.0
        %v1944 = vmul.f32 %v1942, %v1943
        %v1945 = vsub.f32 %v1803, %v1944
        %v1946 = vmul.f32 %v1945, %v1945
        %v1947 = vsel %vm1871, %v1946, 0.0
        %1948 = vadd.xlane.f32.xlu0 %v1947
        %v1949 = vpop.xlane.xlu0 %1948
        %v1950 = vmul.f32 %v1949, %v1943
        %v1951 = vadd.f32 %v1950, 1e-05
        %v1952 = vrsqrt.pop %v1951
        %v1953 = vmul.f32 %v1945, %v1952
        %v1955 = vlaneseq
        %v1956 = vshrl.u32 %v1955, 7
        %v1957 = vsub.s32 0, %v1956
        %v1958 = vrot.slane %v332, %v1957
        %v1960 = vmul.f32 %v1953, %v1958
        %v1962 = vlaneseq
        %v1963 = vshrl.u32 %v1962, 7
        %v1964 = vsub.s32 0, %v1963
        %v1965 = vrot.slane %v333, %v1964
        %v1967 = vadd.f32 %v1960, %v1965
        %v1970 = vsel %vm1865, %v1939, %v1932
        %v1972 = vsel %vm1871, %v1970, 0.0
        %1973 = vadd.xlane.f32.xlu0 %v1972
        %v1974 = vpop.xlane.xlu0 %1973
        %v1975 = vmul.f32 %v1974, %v1943
        %v1977 = vrot.slane %v1975, 1
        %v1980 = vsub.f32 %v1932, %v1975
        %v1981 = vsub.f32 %v1939, %v1977
        %v1982 = vmul.f32 %v1980, %v1980
        %v1983 = vmul.f32 %v1981, %v1981
        %v1986 = vrot.slane %v1983, 7
        %v1987 = vsel %vm1865, %v1986, %v1982
        %v1989 = vsel %vm1871, %v1987, 0.0
        %1990 = vadd.xlane.f32.xlu0 %v1989
        %v1991 = vpop.xlane.xlu0 %1990
        %v1992 = vmul.f32 %v1991, %v1943
        %v1993 = vadd.f32 %v1992, 1e-05
        %v1994 = vrsqrt.pop %v1993
        %v1996 = vrot.slane %v1994, 1
        %v1999 = vmul.f32 %v1980, %v1994
        %v2000 = vmul.f32 %v1981, %v1996
        %v2001 = vmul.f32 %v1999, %v1958
        %v2002 = vmul.f32 %v2000, %v1958
        %v2003 = vadd.f32 %v2001, %v1965
        %v2004 = vadd.f32 %v2002, %v1965
        %v2007 = vrot.slane %v2004, 7
        %v2008 = vsel %vm1865, %v2007, %v2003
        %v2010 = vadd.f32 %v1967, %v2008
        %v2011 = vmul.f32 %v2010, 0.5
        %v2012 = vtanh.pop %v2011
        %v2013 = vld [vmem:[%s5] sm:$0xff]
        %v2014 = vld [vmem:[%s5 + $0x8] sm:$0xff]
        %v2015 = vld [vmem:[%s5 + $0x10] sm:$0xff]
        %v2016 = vld [vmem:[%s5 + $0x18] sm:$0xff]
        %v2017 = vld [vmem:[#allocation2] sm:$0x1]
        %v2019 = vlaneseq
        %v2020 = vshrl.u32 %v2019, 7
        %v2021 = vsub.s32 0, %v2020
        %v2022 = vrot.slane %v2017, %v2021
        %v2025 = vsel %vm347, %v2012, 0
        %2027 = vmatprep.subr.mxu0 0.0
        %2028 = vmatpush1.msra.mxu0 0.0
        %2029 = vmatprep.subr.mxu0 0.0
        %2030 = vmatpush1.msra.mxu0 0.0
        %2031 = vmatprep.subr.mxu0 0.0
        %2032 = vmatpush1.msra.mxu0 0.0
        %2033 = vmatprep.subr.mxu0 0.0
        %2034 = vmatpush1.msra.mxu0 0.0
        %2035 = vmatprep.subr.mxu0 0.0
        %2036 = vmatpush1.msra.mxu0 0.0
        %2037 = vmatprep.subr.mxu0 0.0
        %2038 = vmatpush1.msra.mxu0 0.0
        %2039 = vmatprep.subr.mxu0 0.0
        %2040 = vmatpush1.msra.mxu0 0.0
        %2041 = vmatprep.subr.mxu0 0.0
        %2042 = vmatpush1.msra.mxu0 0.0
        %2043 = vmatprep.subr.mxu0 0.0
        %2044 = vmatpush1.msra.mxu0 0.0
        %2045 = vmatprep.subr.mxu0 0.0
        %2046 = vmatpush1.msra.mxu0 0.0
        %2047 = vmatprep.subr.mxu0 0.0
        %2048 = vmatpush1.msra.mxu0 0.0
        %2049 = vmatprep.subr.mxu0 0.0
        %2050 = vmatpush1.msra.mxu0 0.0
        %2051 = vmatprep.subr.mxu0 0.0
        %2052 = vmatpush1.msra.mxu0 %v2016
        %2053 = vmatprep.subr.mxu0 0.0
        %2054 = vmatpush1.msra.mxu0 %v2015
        %2055 = vmatprep.subr.mxu0 0.0
        %2056 = vmatpush1.msra.mxu0 %v2014
        %2057 = vmatprep.subr.mxu0 0.0
        %2058 = vmatpush1.msra.mxu0 %v2013
        %2059 = vmatprep.subr.mxu0 0.0
        %2060 = vmatpush2.msra.mxu0 0.0
        %2061 = vmatprep.subr.mxu0 0.0
        %2062 = vmatpush2.msra.mxu0 0.0
        %2063 = vmatprep.subr.mxu0 0.0
        %2064 = vmatpush2.msra.mxu0 0.0
        %2065 = vmatprep.subr.mxu0 0.0
        %2066 = vmatpush2.msra.mxu0 0.0
        %2067 = vmatprep.subr.mxu0 0.0
        %2068 = vmatpush2.msra.mxu0 0.0
        %2069 = vmatprep.subr.mxu0 0.0
        %2070 = vmatpush2.msra.mxu0 0.0
        %2071 = vmatprep.subr.mxu0 0.0
        %2072 = vmatpush2.msra.mxu0 0.0
        %2073 = vmatprep.subr.mxu0 0.0
        %2074 = vmatpush2.msra.mxu0 0.0
        %2075 = vmatprep.subr.mxu0 0.0
        %2076 = vmatpush2.msra.mxu0 0.0
        %2077 = vmatprep.subr.mxu0 0.0
        %2078 = vmatpush2.msra.mxu0 0.0
        %2079 = vmatprep.subr.mxu0 0.0
        %2080 = vmatpush2.msra.mxu0 0.0
        %2081 = vmatprep.subr.mxu0 0.0
        %2082 = vmatpush2.msra.mxu0 0.0
        %2083 = vmatprep.subr.mxu0 0.0
        %2084 = vmatpush2.msra.mxu0 0.0
        %2085 = vmatprep.subr.mxu0 0.0
        %2086 = vmatpush2.msra.mxu0 0.0
        %2087 = vmatprep.subr.mxu0 0.0
        %2088 = vmatpush2.msra.mxu0 0.0
        %2089 = vmatprep.subr.mxu0 0.0
        %2090 = vmatpush2.msra.mxu0 0.0
        %2091 = vmatprep.mubr.f32.mxu0 0.0
        %2092 = vmatmul.mubr.f32.gmra.mxu0 %v2025
        %v2093 = vpop.f32.mrf.mxu0
        %v2094 = vadd.f32 %v2022, %v2093
        %v2095 = vpop.f32.mrf.mxu0
        %2096 = vdwg.mxu0
        %vm2097 = vcmask 1024
        %v2098 = vsel %vm2097, %v2094, -inf
        %v2099 = vrot.slane %v2098, 4
        %v2100 = vmax.f32 %v2098, %v2099
        %v2101 = vrot.slane %v2100, 2
        %v2102 = vmax.f32 %v2100, %v2101
        %v2103 = vrot.slane %v2102, 1
        %v2104 = vmax.f32 %v2102, %v2103
        %v2105 = vsub.f32 %v2094, %v2104
        %v2106 = vmul.f32 %v2105, 1.442695
        %v2107 = vpow.pop %v2106
        %v2108 = vsel %vm2097, %v2107, 0.0
        %v2109 = vrot.slane %v2108, 4
        %v2110 = vadd.f32 %v2108, %v2109
        %v2111 = vrot.slane %v2110, 2
        %v2112 = vadd.f32 %v2110, %v2111
        %v2113 = vrot.slane %v2112, 1
        %v2114 = vadd.f32 %v2112, %v2113
        %v2115 = vrcp.pop %v2114
        %v2116 = vmul.f32 %v2107, %v2115
        %2118 = vset.pattern.permute.xlu0 0
        %2119 = vperm.xlu0 %2118, %v2116
        %v2120 = vpop.permute.xlu0 %2119
        %v2122 = vmul.f32 %v2120, %v2011
        %v2123 = vld [vmem:[%s7] sm:$0xff]
        %v2124 = vld [vmem:[%s7 + $0x8] sm:$0xff]
        %v2125 = vld [vmem:[%s7 + $0x10] sm:$0xff]
        %v2126 = vld [vmem:[%s7 + $0x18] sm:$0xff]
        %v2127 = vld [vmem:[%s8] sm:$0x1]
        %v2129 = vlaneseq
        %v2130 = vshrl.u32 %v2129, 7
        %v2131 = vsub.s32 0, %v2130
        %v2132 = vrot.slane %v2127, %v2131
        %v2135 = vsel %vm347, %v2122, 0
        %2137 = vmatprep.subr.mxu0 0.0
        %2138 = vmatpush1.msra.mxu0 0.0
        %2139 = vmatprep.subr.mxu0 0.0
        %2140 = vmatpush1.msra.mxu0 0.0
        %2141 = vmatprep.subr.mxu0 0.0
        %2142 = vmatpush1.msra.mxu0 0.0
        %2143 = vmatprep.subr.mxu0 0.0
        %2144 = vmatpush1.msra.mxu0 0.0
        %2145 = vmatprep.subr.mxu0 0.0
        %2146 = vmatpush1.msra.mxu0 0.0
        %2147 = vmatprep.subr.mxu0 0.0
        %2148 = vmatpush1.msra.mxu0 0.0
        %2149 = vmatprep.subr.mxu0 0.0
        %2150 = vmatpush1.msra.mxu0 0.0
        %2151 = vmatprep.subr.mxu0 0.0
        %2152 = vmatpush1.msra.mxu0 0.0
        %2153 = vmatprep.subr.mxu0 0.0
        %2154 = vmatpush1.msra.mxu0 0.0
        %2155 = vmatprep.subr.mxu0 0.0
        %2156 = vmatpush1.msra.mxu0 0.0
        %2157 = vmatprep.subr.mxu0 0.0
        %2158 = vmatpush1.msra.mxu0 0.0
        %2159 = vmatprep.subr.mxu0 0.0
        %2160 = vmatpush1.msra.mxu0 0.0
        %2161 = vmatprep.subr.mxu0 0.0
        %2162 = vmatpush1.msra.mxu0 %v2126
        %2163 = vmatprep.subr.mxu0 0.0
        %2164 = vmatpush1.msra.mxu0 %v2125
        %2165 = vmatprep.subr.mxu0 0.0
        %2166 = vmatpush1.msra.mxu0 %v2124
        %2167 = vmatprep.subr.mxu0 0.0
        %2168 = vmatpush1.msra.mxu0 %v2123
        %2169 = vmatprep.subr.mxu0 0.0
        %2170 = vmatpush2.msra.mxu0 0.0
        %2171 = vmatprep.subr.mxu0 0.0
        %2172 = vmatpush2.msra.mxu0 0.0
        %2173 = vmatprep.subr.mxu0 0.0
        %2174 = vmatpush2.msra.mxu0 0.0
        %2175 = vmatprep.subr.mxu0 0.0
        %2176 = vmatpush2.msra.mxu0 0.0
        %2177 = vmatprep.subr.mxu0 0.0
        %2178 = vmatpush2.msra.mxu0 0.0
        %2179 = vmatprep.subr.mxu0 0.0
        %2180 = vmatpush2.msra.mxu0 0.0
        %2181 = vmatprep.subr.mxu0 0.0
        %2182 = vmatpush2.msra.mxu0 0.0
        %2183 = vmatprep.subr.mxu0 0.0
        %2184 = vmatpush2.msra.mxu0 0.0
        %2185 = vmatprep.subr.mxu0 0.0
        %2186 = vmatpush2.msra.mxu0 0.0
        %2187 = vmatprep.subr.mxu0 0.0
        %2188 = vmatpush2.msra.mxu0 0.0
        %2189 = vmatprep.subr.mxu0 0.0
        %2190 = vmatpush2.msra.mxu0 0.0
        %2191 = vmatprep.subr.mxu0 0.0
        %2192 = vmatpush2.msra.mxu0 0.0
        %2193 = vmatprep.subr.mxu0 0.0
        %2194 = vmatpush2.msra.mxu0 0.0
        %2195 = vmatprep.subr.mxu0 0.0
        %2196 = vmatpush2.msra.mxu0 0.0
        %2197 = vmatprep.subr.mxu0 0.0
        %2198 = vmatpush2.msra.mxu0 0.0
        %2199 = vmatprep.subr.mxu0 0.0
        %2200 = vmatpush2.msra.mxu0 0.0
        %2201 = vmatprep.mubr.f32.mxu0 0.0
        %2202 = vmatmul.mubr.f32.gmra.mxu0 %v2135
        %v2203 = vpop.f32.mrf.mxu0
        %v2204 = vadd.f32 %v2132, %v2203
        %v2205 = vpop.f32.mrf.mxu0
        %2206 = vdwg.mxu0
        %v2207 = vsel %vm1871, %v2204, 0.0
        %v2208 = vrot.slane %v2207, 4
        %v2209 = vadd.f32 %v2207, %v2208
        %v2210 = vrot.slane %v2209, 2
        %v2211 = vadd.f32 %v2209, %v2210
        %v2212 = vrot.slane %v2211, 1
        %v2213 = vadd.f32 %v2211, %v2212
        %vm2214 = vcmask 253952
        %2215 = vst.msk [vmem:[%s326] sm:$0x1] %vm2214, %v2213
        %s2216 = sand.u32 %s227, 1
        %s2217 = scalar_lea.sflag [#allocation4], %s2216
        %s2218 = sand.u32 %s227, 1
        %s2219 = scalar_lea.vmem [#allocation3], %s2218
        // Predicated region
        $region57: #{run.3} parent=55 // pred_check
          %p2220 = pneg %p237
        $region58: #{run.3} parent=55 // pred_check_branch
          %2222 = sbr.rel (%p2220) target = $region60
        $region59: #{run.3} parent=55 // pred_region
          %s2224 = ssub.s32 16, 16
          %2225 = vsyncadd %s2217, %s2224
          %s2226 = smul.addr %s25, 16
          %s2227 = scalar_lea.hbm %s9, %s2226
          %s2229 = sshll.u32 %s2219, 4
          %s2230 = int_to_ptr.vmem [resolvable:$true] %s2229
          %2232 = dma.vmem_to_hbm [thread:$0]  %s2230, 16, %s2227, %s2217
        $region60: #{run.3} parent=55 // pred_fallthru
          _
      $region56: #{run.3} parent=5 // pred_fallthru
        _
      %p2233 = scmp.le.s32.totalorder 2, %s20
      // Predicated region
      $region61: #{run.3} parent=5 // pred_check
        %p2234 = pneg %p2233
      $region62: #{run.3} parent=5 // pred_check_branch
        %2236 = sbr.rel (%p2234) target = $region64
      $region63: #{run.3} parent=5 // pred_region
        %s2237 = ssub.s32 %s20, 2
        // Predicated region
        $region65: #{run.3} parent=63 // pred_check
          %p2238 = pneg %p243
        $region66: #{run.3} parent=63 // pred_check_branch
          %2240 = sbr.rel (%p2238) target = $region68
        $region67: #{run.3} parent=63 // pred_region
          %s2241 = sand.u32 %s228, 1
          %s2242 = scalar_lea.sflag [#allocation4], %s2241
          %s2243 = sand.u32 %s228, 1
          %s2244 = scalar_lea.vmem [#allocation3], %s2243
          %2245 = dma.done %s2242, 16
        $region68: #{run.3} parent=63 // pred_fallthru
          _
      $region64: #{run.3} parent=5 // pred_fallthru
        _
    $region6: #{run.3} parent=1 // loop_footer
      %s24 = sadd.s32 1, %s20
    $region7: #{run.3} parent=1 // loop_footer_branch
      %19 = sbr.rel target = $region3
    $region8: #{run.3} parent=1 // loop_exit
      _
    %2246 = vsyncpa [#allocation4], 1
    %s2247 = scalar_lea.sflag [#allocation4], 1
    %2248 = vsyncpa %s2247, 1

</llo_original>
